<compile_context>
chip_gen: v7x
topology: tpu7x:2x2x1
jax: 0.10.0
libtpu: 0.0.40
codegen_flags: <defaults>
</compile_context>

<pallas_src>
import functools
import math

import jax
import jax.numpy as jnp
from jax.experimental import pallas as pl
from jax.experimental.pallas import tpu as pltpu


def _round_up(x, m):
    return (x + m - 1) // m * m


def _pick_tile(size, candidates):
    for c in candidates:
        if c <= size and size % c == 0:
            return c
    return size


# ----------------------------------------------------------------------------
# Pallas kernel 1: fused matmul  y = act((x @ w) * scale + bias)
# bf16 operands, f32 MXU accumulate, f32 epilogue.  Whole K is kept in VMEM
# (largest K in this model is ~5.2k -> a few MB per tile), so the grid is only
# (M-tiles, N-tiles) and there is no K padding / accumulator phase logic.
# ----------------------------------------------------------------------------
def _mm_kernel(x_ref, w_ref, s_ref, b_ref, o_ref, *, act):
    y = jnp.dot(x_ref[...], w_ref[...], preferred_element_type=jnp.float32)
    y = y * s_ref[...] + b_ref[...]
    if act == "relu":
        y = jnp.maximum(y, 0.0)
    o_ref[...] = y.astype(o_ref.dtype)


@functools.partial(jax.jit, static_argnames=("act", "out_dtype"))
def matmul_scale_bias(x, w, scale=None, bias=None, act=None, out_dtype=jnp.float32):
    """x: (M, K), w: (K, N) -> (M, N) in out_dtype."""
    M, K = x.shape
    K2, N = w.shape
    assert K == K2
    if scale is None:
        scale = jnp.ones((N,), jnp.float32)
    if bias is None:
        bias = jnp.zeros((N,), jnp.float32)

    Mp = _round_up(M, 8)
    Np = _round_up(N, 128)
    tm = _pick_tile(Mp, (512, 256, 128, 64, 32, 16, 8))
    tn = _pick_tile(Np, (512, 384, 256, 128))

    xb = x.astype(jnp.bfloat16)
    wb = w.astype(jnp.bfloat16)
    if Mp != M:
        xb = jnp.pad(xb, ((0, Mp - M), (0, 0)))
    if Np != N:
        wb = jnp.pad(wb, ((0, 0), (0, Np - N)))
    sp = jnp.pad(scale.astype(jnp.float32), (0, Np - N)).reshape(1, Np)
    bp = jnp.pad(bias.astype(jnp.float32), (0, Np - N)).reshape(1, Np)

    out = pl.pallas_call(
        functools.partial(_mm_kernel, act=act),
        out_shape=jax.ShapeDtypeStruct((Mp, Np), out_dtype),
        grid=(Mp // tm, Np // tn),
        in_specs=[
            pl.BlockSpec((tm, K), lambda i, j: (i, 0)),
            pl.BlockSpec((K, tn), lambda i, j: (0, j)),
            pl.BlockSpec((1, tn), lambda i, j: (0, j)),
            pl.BlockSpec((1, tn), lambda i, j: (0, j)),
        ],
        out_specs=pl.BlockSpec((tm, tn), lambda i, j: (i, j)),
        compiler_params=pltpu.CompilerParams(
            dimension_semantics=("parallel", "parallel")),
    )(xb, wb, sp, bp)
    return out[:M, :N]


# ----------------------------------------------------------------------------
# Pallas kernel 2: normalization over the last axis (LayerNorm).
# ----------------------------------------------------------------------------
def _norm_kernel(x_ref, g_ref, b_ref, o_ref, *, eps):
    x = x_ref[...].astype(jnp.float32)
    mu = jnp.mean(x, axis=-1, keepdims=True)
    var = jnp.mean(jnp.square(x - mu), axis=-1, keepdims=True)
    y = (x - mu) * jax.lax.rsqrt(var + eps)
    o_ref[...] = (y * g_ref[...] + b_ref[...]).astype(o_ref.dtype)


@functools.partial(jax.jit, static_argnames=("eps",))
def norm_last_axis(x, gamma, beta, eps=1e-5):
    R, D = x.shape
    return pl.pallas_call(
        functools.partial(_norm_kernel, eps=eps),
        out_shape=jax.ShapeDtypeStruct((R, D), jnp.float32),
        grid=(1,),
        in_specs=[pl.BlockSpec((R, D), lambda i: (0, 0)),
                  pl.BlockSpec((1, D), lambda i: (0, 0)),
                  pl.BlockSpec((1, D), lambda i: (0, 0))],
        out_specs=pl.BlockSpec((R, D), lambda i: (0, 0)),
    )(x.astype(jnp.float32), gamma.reshape(1, D), beta.reshape(1, D))


# ----------------------------------------------------------------------------
# Pallas kernel 3: mean over axis 1 (I3D global average pool).
# ----------------------------------------------------------------------------
def _mean_kernel(x_ref, o_ref):
    o_ref[...] = jnp.mean(x_ref[...].astype(jnp.float32), axis=1)


@jax.jit
def mean_over_axis1(x):
    """x: (N, P, C) -> (N, C) f32."""
    N, P, C = x.shape
    return pl.pallas_call(
        _mean_kernel,
        out_shape=jax.ShapeDtypeStruct((N, C), jnp.float32),
        grid=(1,),
        in_specs=[pl.BlockSpec((N, P, C), lambda i: (0, 0, 0))],
        out_specs=pl.BlockSpec((N, C), lambda i: (0, 0)),
    )(x)


# ----------------------------------------------------------------------------
# Pallas kernel 4: multi-head attention, all heads in one grid step.
# ----------------------------------------------------------------------------
def _attn_kernel(q_ref, k_ref, v_ref, o_ref, *, scale, seq_len):
    q = q_ref[...].astype(jnp.float32)
    k = k_ref[...].astype(jnp.float32)
    v = v_ref[...].astype(jnp.float32)
    s = jnp.einsum("hqd,hkd->hqk", q, k,
                   preferred_element_type=jnp.float32) * scale
    col = jax.lax.broadcasted_iota(jnp.int32, s.shape, 2)
    s = jnp.where(col < seq_len, s, -1e30)          # mask padded keys
    s = s - jnp.max(s, axis=-1, keepdims=True)
    p = jnp.exp(s)
    p = p / jnp.sum(p, axis=-1, keepdims=True)
    o_ref[...] = jnp.einsum("hqk,hkd->hqd", p, v,
                            preferred_element_type=jnp.float32).astype(o_ref.dtype)


@functools.partial(jax.jit, static_argnames=("num_heads",))
def multi_head_attention(q, k, v, num_heads):
    """q, k, v: (T, D) single-sequence (batch==1) multi-head attention."""
    T, D = q.shape
    dk = D // num_heads
    Tp = _round_up(T, 8)
    dkp = _round_up(dk, 128)

    def split(x):
        x = x.reshape(T, num_heads, dk).transpose(1, 0, 2)      # (h, T, dk)
        return jnp.pad(x, ((0, 0), (0, Tp - T), (0, dkp - dk)))

    qh, kh, vh = split(q), split(k), split(v)
    out = pl.pallas_call(
        functools.partial(_attn_kernel, scale=1.0 / math.sqrt(dk), seq_len=T),
        out_shape=jax.ShapeDtypeStruct((num_heads, Tp, dkp), jnp.float32),
        grid=(1,),
        in_specs=[pl.BlockSpec((num_heads, Tp, dkp), lambda i: (0, 0, 0))] * 3,
        out_specs=pl.BlockSpec((num_heads, Tp, dkp), lambda i: (0, 0, 0)),
    )(qh, kh, vh)
    return out[:, :T, :dk].transpose(1, 0, 2).reshape(T, D)


# ----------------------------------------------------------------------------
# Conv / pool building blocks (im2col + pooling glue under jit, matmul in Pallas).
# ----------------------------------------------------------------------------
def _same_pad(size, k, s):
    # TF-style SAME padding, as computed by pytorch-i3d Unit3D / MaxPool3dSamePadding.
    p = max(k - s, 0) if size % s == 0 else max(k - (size % s), 0)
    return (p // 2, p - p // 2)


@functools.partial(jax.jit, static_argnames=("stride",))
def unit3d_apply(x, w, scale, bias, stride=(1, 1, 1)):
    """Unit3D: Conv3d (no bias, SAME pad) + folded BatchNorm3d + ReLU.
    x: (N, D, H, W, C) channels-last; w: (kd, kh, kw, Cin, Cout).  Output bf16."""
    kd, kh, kw, cin, cout = w.shape
    N, D, H, W, C = x.shape
    sd, sh, sw = stride
    pd, ph, pw = _same_pad(D, kd, sd), _same_pad(H, kh, sh), _same_pad(W, kw, sw)
    Do = (D + sum(pd) - kd) // sd + 1
    Ho = (H + sum(ph) - kh) // sh + 1
    Wo = (W + sum(pw) - kw) // sw + 1

    xb = x.astype(jnp.bfloat16)
    if (kd, kh, kw) == (1, 1, 1) and stride == (1, 1, 1):
        patches = xb.reshape(N * D * H * W, cin)
    else:
        xp = jnp.pad(xb, ((0, 0), pd, ph, pw, (0, 0)))
        taps = []
        for a in range(kd):
            for b in range(kh):
                for c in range(kw):
                    taps.append(xp[:, a:a + sd * (Do - 1) + 1:sd,
                                   b:b + sh * (Ho - 1) + 1:sh,
                                   c:c + sw * (Wo - 1) + 1:sw, :])
        # tap-major / channel-minor ordering matches w.reshape(K*Cin, Cout).
        patches = jnp.concatenate(taps, axis=-1).reshape(
            N * Do * Ho * Wo, kd * kh * kw * cin)

    wm = w.reshape(kd * kh * kw * cin, cout)
    y = matmul_scale_bias(patches, wm, scale=scale, bias=bias,
                          act="relu", out_dtype=jnp.bfloat16)
    return y.reshape(N, Do, Ho, Wo, cout)


def _u(x, prm, stride=(1, 1, 1)):
    return unit3d_apply(x, prm["w"], prm["scale"], prm["bias"], stride=stride)


@functools.partial(jax.jit, static_argnames=("kernel", "stride"))
def maxpool3d_same(x, kernel, stride):
    """MaxPool3dSamePadding.  Zero padding matches F.pad in the reference
    (the reference also zero-pads, so results are identical)."""
    N, D, H, W, C = x.shape
    kd, kh, kw = kernel
    sd, sh, sw = stride
    pd, ph, pw = _same_pad(D, kd, sd), _same_pad(H, kh, sh), _same_pad(W, kw, sw)
    xp = jnp.pad(x, ((0, 0), pd, ph, pw, (0, 0)))
    Do = (D + sum(pd) - kd) // sd + 1
    Ho = (H + sum(ph) - kh) // sh + 1
    Wo = (W + sum(pw) - kw) // sw + 1
    out = None
    for a in range(kd):
        for b in range(kh):
            for c in range(kw):
                sl = xp[:, a:a + sd * (Do - 1) + 1:sd,
                        b:b + sh * (Ho - 1) + 1:sh,
                        c:c + sw * (Wo - 1) + 1:sw, :]
                out = sl if out is None else jnp.maximum(out, sl)
    return out


def inception_module(x, p):
    # Fuse the three 1x1x1 branches that read x (b0, b1a, b2a) into one matmul.
    o0 = p["b0"]["w"].shape[-1]
    o1 = p["b1a"]["w"].shape[-1]
    w_cat = jnp.concatenate([p["b0"]["w"], p["b1a"]["w"], p["b2a"]["w"]], axis=-1)
    s_cat = jnp.concatenate([p["b0"]["scale"], p["b1a"]["scale"], p["b2a"]["scale"]])
    b_cat = jnp.concatenate([p["b0"]["bias"], p["b1a"]["bias"], p["b2a"]["bias"]])
    y = unit3d_apply(x, w_cat, s_cat, b_cat)
    b0 = y[..., :o0]
    b1 = _u(y[..., o0:o0 + o1], p["b1b"])
    b2 = _u(y[..., o0 + o1:], p["b2b"])
    b3 = _u(maxpool3d_same(x, kernel=(3, 3, 3), stride=(1, 1, 1)), p["b3b"])
    return jnp.concatenate([b0, b1, b2, b3], axis=-1)


@functools.partial(jax.jit, static_argnames=("act",))
def conv1d_valid(x, w, b, act=None):
    """x: (N, C, T), w: (Cout, Cin, k), valid padding, stride 1."""
    N, C, T = x.shape
    cout, cin, k = w.shape
    To = T - k + 1
    cols = jnp.stack([x[:, :, i:i + To] for i in range(k)], axis=-1)   # (N,C,To,k)
    cols = jnp.transpose(cols, (0, 2, 1, 3)).reshape(N * To, C * k)
    y = matmul_scale_bias(cols, w.reshape(cout, cin * k).T, bias=b, act=act)
    return jnp.transpose(y.reshape(N, To, cout), (0, 2, 1))


@functools.partial(jax.jit, static_argnames=("k",))
def maxpool1d(x, k):
    N, C, T = x.shape
    To = T // k
    out = x[:, :, 0:k * To:k]
    for i in range(1, k):
        out = jnp.maximum(out, x[:, :, i:k * To:k])
    return out


@jax.jit
def instance_norm1d(x, eps=1e-5):
    """InstanceNorm1d (affine=False): per-(n, channel) stats over time.
    Tiny tensor -> plain JAX (avoids a lane-sparse Pallas call)."""
    mu = jnp.mean(x, axis=-1, keepdims=True)
    var = jnp.mean(jnp.square(x - mu), axis=-1, keepdims=True)
    return (x - mu) * jax.lax.rsqrt(var + eps)


def transformer_encoder_layer(x, p, num_heads):
    """nn.TransformerEncoderLayer (post-norm, relu, eval).  x: (T, 1, D)."""
    T, B, D = x.shape
    assert B == 1
    x2 = x.reshape(T, D)
    qkv = matmul_scale_bias(x2, p["in_proj_w"].T, bias=p["in_proj_b"])
    q, k, v = qkv[:, :D], qkv[:, D:2 * D], qkv[:, 2 * D:]
    attn = multi_head_attention(q, k, v, num_heads=num_heads)
    attn = matmul_scale_bias(attn, p["out_proj_w"].T, bias=p["out_proj_b"])
    x2 = x2 + attn                                   # dropout = identity (eval)
    x2 = norm_last_axis(x2, p["norm1_g"], p["norm1_b"])
    h = matmul_scale_bias(x2, p["lin1_w"].T, bias=p["lin1_b"], act="relu")
    h = matmul_scale_bias(h, p["lin2_w"].T, bias=p["lin2_b"])
    x2 = x2 + h
    x2 = norm_last_axis(x2, p["norm2_g"], p["norm2_b"])
    return x2.reshape(T, B, D)


def positional_encoding(d_model, max_tokens=300):
    pos = jnp.arange(max_tokens, dtype=jnp.float32)[:, None]
    div = jnp.exp(jnp.arange(0, d_model, 2, dtype=jnp.float32) *
                  (-math.log(10000.0) / d_model))
    pe = jnp.zeros((max_tokens, d_model), jnp.float32)
    pe = pe.at[:, 0::2].set(jnp.sin(pos * div))
    pe = pe.at[:, 1::2].set(jnp.cos(pos * div))
    return pe


# ----------------------------------------------------------------------------
# Parameter init (deterministic, synthetic; BN at PyTorch defaults and folded).
# ----------------------------------------------------------------------------
class KeyGen:
    def __init__(self, key):
        self.key = key

    def __call__(self):
        self.key, sub = jax.random.split(self.key)
        return sub


def init_unit3d(kg, cin, cout, k):
    kd, kh, kw = k
    w = jax.random.normal(kg(), (kd, kh, kw, cin, cout), jnp.float32)
    w = w * (1.0 / math.sqrt(kd * kh * kw * cin))
    # BatchNorm3d(eps=1e-3) eval with default gamma=1, beta=0, mean=0, var=1:
    scale = jnp.full((cout,), 1.0 / math.sqrt(1.0 + 1e-3), jnp.float32)
    bias = jnp.zeros((cout,), jnp.float32)
    return {"w": w, "scale": scale, "bias": bias}


def init_linear(kg, din, dout):
    return (jax.random.normal(kg(), (dout, din), jnp.float32) / math.sqrt(din),
            jnp.zeros((dout,), jnp.float32))


def init_tel(kg, d, ff):
    s = 1.0 / math.sqrt(d)
    in_w = jax.random.normal(kg(), (3 * d, d), jnp.float32) * s
    out_w = jax.random.normal(kg(), (d, d), jnp.float32) * s
    l1_w, l1_b = init_linear(kg, d, ff)
    l2_w, l2_b = init_linear(kg, ff, d)
    return {"in_proj_w": in_w, "in_proj_b": jnp.zeros((3 * d,), jnp.float32),
            "out_proj_w": out_w, "out_proj_b": jnp.zeros((d,), jnp.float32),
            "lin1_w": l1_w, "lin1_b": l1_b, "lin2_w": l2_w, "lin2_b": l2_b,
            "norm1_g": jnp.ones((d,), jnp.float32), "norm1_b": jnp.zeros((d,), jnp.float32),
            "norm2_g": jnp.ones((d,), jnp.float32), "norm2_b": jnp.zeros((d,), jnp.float32)}


def init_i3d(kg):
    P = {"Conv3d_1a_7x7": init_unit3d(kg, 3, 64, (7, 7, 7)),
         "Conv3d_2b_1x1": init_unit3d(kg, 64, 64, (1, 1, 1)),
         "Conv3d_2c_3x3": init_unit3d(kg, 64, 192, (3, 3, 3))}

    def inc(cin, o):
        return {"b0": init_unit3d(kg, cin, o[0], (1, 1, 1)),
                "b1a": init_unit3d(kg, cin, o[1], (1, 1, 1)),
                "b1b": init_unit3d(kg, o[1], o[2], (3, 3, 3)),
                "b2a": init_unit3d(kg, cin, o[3], (1, 1, 1)),
                "b2b": init_unit3d(kg, o[3], o[4], (3, 3, 3)),
                "b3b": init_unit3d(kg, cin, o[5], (1, 1, 1))}

    P["Mixed_3b"] = inc(192, [64, 96, 128, 16, 32, 32])
    P["Mixed_3c"] = inc(256, [128, 128, 192, 32, 96, 64])
    P["Mixed_4b"] = inc(480, [192, 96, 208, 16, 48, 64])
    P["Mixed_4c"] = inc(512, [160, 112, 224, 24, 64, 64])
    P["Mixed_4d"] = inc(512, [128, 128, 256, 24, 64, 64])
    P["Mixed_4e"] = inc(512, [112, 144, 288, 32, 64, 64])
    P["Mixed_4f"] = inc(528, [256, 160, 320, 32, 128, 128])
    P["Mixed_5b"] = inc(832, [256, 160, 320, 32, 128, 128])
    P["Mixed_5c"] = inc(832, [384, 192, 384, 48, 128, 128])
    P["pe"] = positional_encoding(1024)
    P["tel"] = [init_tel(kg, 1024, 2048)]
    return P


def init_sk(kg):
    e_w, e_b = init_linear(kg, 33 * 3, 256)
    t1 = jax.random.normal(kg(), (256, 256, 5), jnp.float32) / math.sqrt(256 * 5)
    t2 = jax.random.normal(kg(), (256, 256, 5), jnp.float32) / math.sqrt(256 * 5)
    return {"embed_w": e_w, "embed_b": e_b,
            "tcl1_w": t1, "tcl1_b": jnp.zeros((256,), jnp.float32),
            "tcl2_w": t2, "tcl2_b": jnp.zeros((256,), jnp.float32),
            "pe": positional_encoding(256),
            "tel": [init_tel(kg, 256, 512), init_tel(kg, 256, 512)]}


def init_rgbsk(kg, n_classes):
    cls_w, cls_b = init_linear(kg, 1280, n_classes)
    return {"i3d": init_i3d(kg), "sk": init_sk(kg),
            "pe": positional_encoding(1280),
            "tel": [init_tel(kg, 1280, 2560), init_tel(kg, 1280, 2560)],
            "cls_ln_g": jnp.ones((1280,), jnp.float32),
            "cls_ln_b": jnp.zeros((1280,), jnp.float32),
            "cls_w": cls_w, "cls_b": cls_b}


# ----------------------------------------------------------------------------
# Forward passes
# ----------------------------------------------------------------------------
def i3d_forward(vid, P):
    """vid: (1, 3, T, H, W) PyTorch layout -> (n_windows, 1, 1024)."""
    window, stride = 16, 8
    _, C, T, H, W = vid.shape
    n = (T - window) // stride + 1
    clips = jnp.stack([vid[0, :, i * stride:i * stride + window] for i in range(n)], 0)
    x = jnp.transpose(clips, (0, 2, 3, 4, 1)).astype(jnp.bfloat16)  # (n,16,H,W,3)

    x = _u(x, P["Conv3d_1a_7x7"], stride=(2, 2, 2))
    x = maxpool3d_same(x, kernel=(1, 3, 3), stride=(1, 2, 2))
    x = _u(x, P["Conv3d_2b_1x1"])
    x = _u(x, P["Conv3d_2c_3x3"])
    x = maxpool3d_same(x, kernel=(1, 3, 3), stride=(1, 2, 2))
    x = inception_module(x, P["Mixed_3b"])
    x = inception_module(x, P["Mixed_3c"])
    x = maxpool3d_same(x, kernel=(3, 3, 3), stride=(2, 2, 2))
    for m in ("Mixed_4b", "Mixed_4c", "Mixed_4d", "Mixed_4e", "Mixed_4f"):
        x = inception_module(x, P[m])
    x = maxpool3d_same(x, kernel=(2, 2, 2), stride=(2, 2, 2))
    x = inception_module(x, P["Mixed_5b"])
    x = inception_module(x, P["Mixed_5c"])

    # TODO(synk): the reference AvgPool3d(kernel=[2,7,7], stride=1) assumes a
    # (2,7,7) feature map (224x224 input); for smaller test inputs we take the
    # equivalent global (d,h,w) mean so (d h w) collapses to 1 as in the spec.
    N, D, H2, W2, Cc = x.shape
    feats = mean_over_axis1(x.reshape(N, D * H2 * W2, Cc))     # (n, 1024) f32

    seq = feats[None, :, :] + P["pe"][None, :n, :]             # (1, n, 1024) + PE
    seq = jnp.transpose(seq, (1, 0, 2))                        # (n, 1, 1024)
    for tel in P["tel"]:
        seq = transformer_encoder_layer(seq, tel, num_heads=8)
    # TODO(synk): InceptionI3d.fc / CTC loss are skipped (discarded when y is None).
    return seq


def sk_forward(skel, P):
    """skel: (1, T, 33, 3) -> (n_windows, 1, 256)."""
    window, stride = 16, 8
    T = skel.shape[1]
    n = (T - window) // stride + 1
    wins = jnp.stack([skel[0, i * stride:i * stride + window] for i in range(n)], 0)
    x = wins.reshape(n, window, 33 * 3)                        # 'w t (k a)'
    x = matmul_scale_bias(x.reshape(n * window, 99), P["embed_w"].T,
                          bias=P["embed_b"]).reshape(n, window, 256)
    x = jnp.transpose(x, (0, 2, 1))                            # (n, 256, 16)

    x = conv1d_valid(x, P["tcl1_w"], P["tcl1_b"], act="relu")  # (n, 256, 12)
    x = maxpool1d(x, k=2)                                      # (n, 256, 6)
    x = conv1d_valid(x, P["tcl2_w"], P["tcl2_b"], act="relu")  # (n, 256, 2)
    x = instance_norm1d(x)                                     # (n, 256, 2)
    x = maxpool1d(x, k=2)                                      # (n, 256, 1)

    seq = jnp.transpose(x, (2, 0, 1))                          # (1, n, 256)
    seq = seq + P["pe"][None, :n, :]
    seq = jnp.transpose(seq, (1, 0, 2))                        # (n, 1, 256)
    for tel in P["tel"]:
        seq = transformer_encoder_layer(seq, tel, num_heads=8)
    # TODO(synk): SK_TCL's fc / CTC loss are skipped (discarded when y is None).
    return seq


def rgbsk_forward(vid, skeleton, params):
    rgb_feats = i3d_forward(vid, params["i3d"])                # (n, 1, 1024)
    sk_feats = sk_forward(skeleton, params["sk"])              # (n, 1, 256)
    x = jnp.concatenate([rgb_feats, sk_feats], axis=-1)        # (n, 1, 1280)
    n = x.shape[0]
    seq = jnp.transpose(x, (1, 0, 2))                          # (1, n, 1280)
    seq = seq + params["pe"][None, :n, :]                      # PositionalEncoding1D
    seq = jnp.transpose(seq, (1, 0, 2))                        # (n, 1, 1280)
    for tel in params["tel"]:
        seq = transformer_encoder_layer(seq, tel, num_heads=8)
    T, B, D = seq.shape
    h = norm_last_axis(seq.reshape(T * B, D), params["cls_ln_g"], params["cls_ln_b"])
    y = matmul_scale_bias(h, params["cls_w"].T, bias=params["cls_b"])
    return y.reshape(T, B, -1)                                 # (n, 1, N_classes)


if __name__ == "__main__":
    N_CLASSES = 100
    kg = KeyGen(jax.random.PRNGKey(0))
    params = init_rgbsk(kg, N_CLASSES)

    key_v, key_s = jax.random.split(jax.random.PRNGKey(0))
    # Small deterministic inputs: 24 frames -> 2 sliding windows of 16 (stride 8);
    # 32x32 spatial keeps the whole I3D trunk + both transformer branches cheap.
    vid = jax.random.normal(key_v, (1, 3, 24, 32, 32), jnp.float32)
    skeleton = jax.random.normal(key_s, (1, 24, 33, 3), jnp.float32)

    y_hat = rgbsk_forward(vid, skeleton, params)
    jax.block_until_ready(y_hat)
    assert y_hat.shape == (2, 1, N_CLASSES)
    print("KERNEL_OK")
</pallas_src>

<mosaic_0001>
module attributes {stable_mosaic.version = 11 : i64} {
  func.func @_mm_kernel(%arg0: i32, %arg1: i32, %arg2: memref<512x1029xbf16, #tpu.memory_space<vmem>>, %arg3: memref<1029x128xbf16, #tpu.memory_space<vmem>>, %arg4: memref<1x128xf32, #tpu.memory_space<vmem>>, %arg5: memref<1x128xf32, #tpu.memory_space<vmem>>, %arg6: memref<512x128xbf16, #tpu.memory_space<vmem>>) attributes {dimension_semantics = [#tpu.dimension_semantics<parallel>, #tpu.dimension_semantics<parallel>], iteration_bounds = array<i64: 8, 1>, scalar_prefetch = 0 : i64, scratch_operands = 0 : i64, tpu.core_type = #tpu.core_type<tc>, window_params = [{transform_indices = @transform_0, window_bounds = array<i64: 512, 1029>}, {transform_indices = @transform_1, window_bounds = array<i64: 1029, 128>}, {transform_indices = @transform_2, window_bounds = array<i64: 1, 128>}, {transform_indices = @transform_3, window_bounds = array<i64: 1, 128>}, {transform_indices = @transform_4, window_bounds = array<i64: 512, 128>}]} {
    %c0 = arith.constant 0 : index
    %c0_0 = arith.constant 0 : index
    %0 = vector.load %arg2[%c0, %c0_0] : memref<512x1029xbf16, #tpu.memory_space<vmem>>, vector<512x1029xbf16>
    %c0_1 = arith.constant 0 : index
    %c0_2 = arith.constant 0 : index
    %1 = vector.load %arg3[%c0_1, %c0_2] : memref<1029x128xbf16, #tpu.memory_space<vmem>>, vector<1029x128xbf16>
    %cst = arith.constant dense<0.000000e+00> : vector<512x128xf32>
    %2 = tpu.matmul %0, %1, %cst {dimension_numbers = #tpu.dot_dimension_numbers<[1], [0], [0], [1], [0, 0, 1, 1], [], []>} : vector<512x1029xbf16>, vector<1029x128xbf16>, vector<512x128xf32> -> vector<512x128xf32>
    %c0_3 = arith.constant 0 : index
    %c0_4 = arith.constant 0 : index
    %3 = vector.load %arg4[%c0_3, %c0_4] : memref<1x128xf32, #tpu.memory_space<vmem>>, vector<1x128xf32>
    %4 = vector.broadcast %3 : vector<1x128xf32> to vector<512x128xf32>
    %5 = arith.mulf %2, %4 : vector<512x128xf32>
    %c0_5 = arith.constant 0 : index
    %c0_6 = arith.constant 0 : index
    %6 = vector.load %arg5[%c0_5, %c0_6] : memref<1x128xf32, #tpu.memory_space<vmem>>, vector<1x128xf32>
    %7 = vector.broadcast %6 : vector<1x128xf32> to vector<512x128xf32>
    %8 = arith.addf %5, %7 : vector<512x128xf32>
    %cst_7 = arith.constant 0.000000e+00 : f32
    %9 = vector.broadcast %cst_7 : f32 to vector<512x128xf32>
    %10 = arith.maximumf %8, %9 : vector<512x128xf32>
    %11 = arith.truncf %10 : vector<512x128xf32> to vector<512x128xbf16>
    %c0_8 = arith.constant 0 : index
    %c0_9 = arith.constant 0 : index
    %12 = vector.load %arg6[%c0_8, %c0_9] : memref<512x128xbf16, #tpu.memory_space<vmem>>, vector<512x128xbf16>
    tpu.vector_store %arg6[%c0_8, %c0_9], %11 {strides = array<i32>} : memref<512x128xbf16, #tpu.memory_space<vmem>>, vector<512x128xbf16>,
    return
  }
  func.func @transform_0(%arg0: i32, %arg1: i32) -> (i32, i32) {
    %c0_i32 = arith.constant 0 : i32
    %c0_i32_0 = arith.constant 0 : i32
    return %arg0, %c0_i32 : i32, i32
  }
  func.func @transform_1(%arg0: i32, %arg1: i32) -> (i32, i32) {
    %c0_i32 = arith.constant 0 : i32
    %c0_i32_0 = arith.constant 0 : i32
    return %c0_i32, %arg1 : i32, i32
  }
  func.func @transform_2(%arg0: i32, %arg1: i32) -> (i32, i32) {
    %c0_i32 = arith.constant 0 : i32
    %c0_i32_0 = arith.constant 0 : i32
    return %c0_i32, %arg1 : i32, i32
  }
  func.func @transform_3(%arg0: i32, %arg1: i32) -> (i32, i32) {
    %c0_i32 = arith.constant 0 : i32
    %c0_i32_0 = arith.constant 0 : i32
    return %c0_i32, %arg1 : i32, i32
  }
  func.func @transform_4(%arg0: i32, %arg1: i32) -> (i32, i32) {
    %c0_i32 = arith.constant 0 : i32
    return %arg0, %arg1 : i32, i32
  }
}

</mosaic_0001>

<llo_original>
// kernel: matmul_scale_bias.1
$region0: #{matmul_scale_bias.1}
  #allocation0 [shape = 'u32[]', space=smem, size = 0x4, offset = 0x4, fixed_abs, tag = 'smem constant byte address 0x4 - core index']
  #allocation1 [shape = 'u32[144,128]{1,0:T(1,128)}', space=vmem, size = 0x12000, scoped, tag = 'internal scratch']
  %s0 = inlined_call_operand.vmem [shape: bf16[4096,1029], index: 0, kind: input, shape index: {}]
  %s1 = inlined_call_operand.vmem [shape: bf16[1029,128], index: 1, kind: input, shape index: {}]
  %s2 = inlined_call_operand.vmem [shape: f32[1,128], index: 2, kind: input, shape index: {}]
  %s3 = inlined_call_operand.vmem [shape: f32[1,128], index: 3, kind: input, shape index: {}]
  %s4 = inlined_call_operand.vmem [shape: bf16[4096,128], index: 4, kind: output, shape index: {}]
  %s5 = sld [smem:[#allocation0]]
  $region49: #{matmul_scale_bias.1} parent=0
    _
  %s7 = ssub.s32 1, %s5
  %s8 = scalar_select 0, %s7, %s5
  loop: start=0, step=1, limit=10
  $region2: #{matmul_scale_bias.1} parent=0 // loop_pre_header
    _
  $region3: #{matmul_scale_bias.1} parent=0 // loop_header
    %s10 = sphi 0, %s14
    %p11 = scmp.ge.s32.totalorder %s10, 10
    %s17 = sphi 0, %s29
    %s18 = sphi 0, %s25
    %s19 = sphi 0, %s17
    %s20 = sphi 0, %s18
    %s21 = sphi 0, %s19
    %s22 = sphi 0, %s20
    %s32 = sphi 0, %s34
    %s35 = sphi 0, %s32
    %s36 = sphi 0, %s35
    %s52 = sphi 0, %s36
    %s58 = sphi 0, %s60
    %s61 = sphi 0, %s58
    %s62 = sphi 0, %s61
    %s78 = sphi 0, %s62
    %s84 = sphi 0, %s86
    %s87 = sphi 0, %s84
    %s88 = sphi 0, %s87
    %s104 = sphi 0, %s88
    %s110 = sphi 0, %s112
    %s113 = sphi 0, %s110
    %s114 = sphi 0, %s113
    %s130 = sphi 0, %s114
    %s138 = sphi 0, %s140
    %s141 = sphi 0, %s138
    %s142 = sphi 0, %s141
    %s158 = sphi 0, %s142
  $region4: #{matmul_scale_bias.1} parent=0 // loop_header_branch
    %13 = sbr.rel (%p11) target = $region8
  $region5: #{matmul_scale_bias.1} parent=0 // loop_body
    %s15 = ssub.s32 %s10, 1
    %s16 = ssub.s32 %s10, 2
    %s23 = sadd.s32 1, %s18
    %p24 = scmp.ge.s32.totalorder %s23, 1
    %s25 = scalar_select %p24, 0, %s23
    %s26 = sadd.s32 1, %s17
    %s27 = scalar_select %p24, %s26, %s17
    %p28 = scmp.ge.s32.totalorder %s27, 8
    %s29 = scalar_select %p28, 0, %s27
    %s30 = ssub.s32 %s17, %s29
    %p31 = scmp.eq.s32.totalorder %s30, 0
    %s33 = sadd.s32 %s32, 1
    %s34 = scalar_select %p31, %s32, %s33
    %p37 = pneg %p31
    %p38 = scmp.eq.s32.totalorder %s10, 7
    %p39 = por %p37, %p38
    %p40 = scmp.ne.s32.totalorder %s32, %s35
    %p41 = scmp.eq.s32.totalorder %s10, 0
    %p42 = por %p40, %p41
    %p43 = scmp.ne.s32.totalorder %s32, %s35
    %p44 = scmp.eq.s32.totalorder %s15, 7
    %p45 = por %p43, %p44
    %p46 = scmp.ne.s32.totalorder %s35, %s36
    %p47 = scmp.eq.s32.totalorder %s15, 0
    %p48 = por %p46, %p47
    %p49 = scmp.ne.s32.totalorder %s35, %s36
    %p50 = scmp.eq.s32.totalorder %s16, 7
    %p51 = por %p49, %p50
    %p53 = scmp.ne.s32.totalorder %s36, %s52
    %p54 = scmp.eq.s32.totalorder %s16, 0
    %p55 = por %p53, %p54
    %s56 = ssub.s32 %s18, %s25
    %p57 = scmp.eq.s32.totalorder %s56, 0
    %s59 = sadd.s32 %s58, 1
    %s60 = scalar_select %p57, %s58, %s59
    %p63 = pneg %p57
    %p64 = scmp.eq.s32.totalorder %s10, 7
    %p65 = por %p63, %p64
    %p66 = scmp.ne.s32.totalorder %s58, %s61
    %p67 = scmp.eq.s32.totalorder %s10, 0
    %p68 = por %p66, %p67
    %p69 = scmp.ne.s32.totalorder %s58, %s61
    %p70 = scmp.eq.s32.totalorder %s15, 7
    %p71 = por %p69, %p70
    %p72 = scmp.ne.s32.totalorder %s61, %s62
    %p73 = scmp.eq.s32.totalorder %s15, 0
    %p74 = por %p72, %p73
    %p75 = scmp.ne.s32.totalorder %s61, %s62
    %p76 = scmp.eq.s32.totalorder %s16, 7
    %p77 = por %p75, %p76
    %p79 = scmp.ne.s32.totalorder %s62, %s78
    %p80 = scmp.eq.s32.totalorder %s16, 0
    %p81 = por %p79, %p80
    %s82 = ssub.s32 %s18, %s25
    %p83 = scmp.eq.s32.totalorder %s82, 0
    %s85 = sadd.s32 %s84, 1
    %s86 = scalar_select %p83, %s84, %s85
    %p89 = pneg %p83
    %p90 = scmp.eq.s32.totalorder %s10, 7
    %p91 = por %p89, %p90
    %p92 = scmp.ne.s32.totalorder %s84, %s87
    %p93 = scmp.eq.s32.totalorder %s10, 0
    %p94 = por %p92, %p93
    %p95 = scmp.ne.s32.totalorder %s84, %s87
    %p96 = scmp.eq.s32.totalorder %s15, 7
    %p97 = por %p95, %p96
    %p98 = scmp.ne.s32.totalorder %s87, %s88
    %p99 = scmp.eq.s32.totalorder %s15, 0
    %p100 = por %p98, %p99
    %p101 = scmp.ne.s32.totalorder %s87, %s88
    %p102 = scmp.eq.s32.totalorder %s16, 7
    %p103 = por %p101, %p102
    %p105 = scmp.ne.s32.totalorder %s88, %s104
    %p106 = scmp.eq.s32.totalorder %s16, 0
    %p107 = por %p105, %p106
    %s108 = ssub.s32 %s18, %s25
    %p109 = scmp.eq.s32.totalorder %s108, 0
    %s111 = sadd.s32 %s110, 1
    %s112 = scalar_select %p109, %s110, %s111
    %p115 = pneg %p109
    %p116 = scmp.eq.s32.totalorder %s10, 7
    %p117 = por %p115, %p116
    %p118 = scmp.ne.s32.totalorder %s110, %s113
    %p119 = scmp.eq.s32.totalorder %s10, 0
    %p120 = por %p118, %p119
    %p121 = scmp.ne.s32.totalorder %s110, %s113
    %p122 = scmp.eq.s32.totalorder %s15, 7
    %p123 = por %p121, %p122
    %p124 = scmp.ne.s32.totalorder %s113, %s114
    %p125 = scmp.eq.s32.totalorder %s15, 0
    %p126 = por %p124, %p125
    %p127 = scmp.ne.s32.totalorder %s113, %s114
    %p128 = scmp.eq.s32.totalorder %s16, 7
    %p129 = por %p127, %p128
    %p131 = scmp.ne.s32.totalorder %s114, %s130
    %p132 = scmp.eq.s32.totalorder %s16, 0
    %p133 = por %p131, %p132
    %s134 = ssub.s32 %s17, %s29
    %s135 = ssub.s32 %s18, %s25
    %s136 = sor.u32 %s134, %s135
    %p137 = scmp.eq.s32.totalorder %s136, 0
    %s139 = sadd.s32 %s138, 1
    %s140 = scalar_select %p137, %s138, %s139
    %p143 = pneg %p137
    %p144 = scmp.eq.s32.totalorder %s10, 7
    %p145 = por %p143, %p144
    %p146 = scmp.ne.s32.totalorder %s138, %s141
    %p147 = scmp.eq.s32.totalorder %s10, 0
    %p148 = por %p146, %p147
    %p149 = scmp.ne.s32.totalorder %s138, %s141
    %p150 = scmp.eq.s32.totalorder %s15, 7
    %p151 = por %p149, %p150
    %p152 = scmp.ne.s32.totalorder %s141, %s142
    %p153 = scmp.eq.s32.totalorder %s15, 0
    %p154 = por %p152, %p153
    %p155 = scmp.ne.s32.totalorder %s141, %s142
    %p156 = scmp.eq.s32.totalorder %s16, 7
    %p157 = por %p155, %p156
    %p159 = scmp.ne.s32.totalorder %s142, %s158
    %p160 = scmp.eq.s32.totalorder %s16, 0
    %p161 = por %p159, %p160
    %p162 = scmp.le.s32.totalorder 1, %s10
    %p163 = scmp.lt.s32.totalorder %s10, 9
    %p164 = pnand %p162, %p163
    %p165 = pneg %p164
    // Predicated region
    $region9: #{matmul_scale_bias.1} parent=5 // pred_check
      _
    $region10: #{matmul_scale_bias.1} parent=5 // pred_check_branch
      %167 = sbr.rel (%p164) target = $region12
    $region11: #{matmul_scale_bias.1} parent=5 // pred_region
      %s168 = ssub.s32 %s10, 1
      // Predicated region
      $region13: #{matmul_scale_bias.1} parent=11 // pred_check
        %p169 = pneg %p74
      $region14: #{matmul_scale_bias.1} parent=11 // pred_check_branch
        %171 = sbr.rel (%p169) target = $region16
      $region15: #{matmul_scale_bias.1} parent=11 // pred_region
        %p172 = scmp.lt.s32.totalorder %s20, 0
        %s173 = scalar_select %p172, %s20, 0
        %s174 = smul.addr %s173, 4
        %s175 = scalar_lea.vmem %s1, %s174
      $region16: #{matmul_scale_bias.1} parent=11 // pred_fallthru
        _
      // Predicated region
      $region17: #{matmul_scale_bias.1} parent=11 // pred_check
        %p176 = pneg %p100
      $region18: #{matmul_scale_bias.1} parent=11 // pred_check_branch
        %178 = sbr.rel (%p176) target = $region20
      $region19: #{matmul_scale_bias.1} parent=11 // pred_region
        %p179 = scmp.lt.s32.totalorder %s20, 0
        %s180 = scalar_select %p179, %s20, 0
        %s181 = scalar_lea.vmem %s2, %s180
      $region20: #{matmul_scale_bias.1} parent=11 // pred_fallthru
        _
      // Predicated region
      $region21: #{matmul_scale_bias.1} parent=11 // pred_check
        %p182 = pneg %p126
      $region22: #{matmul_scale_bias.1} parent=11 // pred_check_branch
        %184 = sbr.rel (%p182) target = $region24
      $region23: #{matmul_scale_bias.1} parent=11 // pred_region
        %p185 = scmp.lt.s32.totalorder %s20, 0
        %s186 = scalar_select %p185, %s20, 0
        %s187 = scalar_lea.vmem %s3, %s186
      $region24: #{matmul_scale_bias.1} parent=11 // pred_fallthru
        _
    $region12: #{matmul_scale_bias.1} parent=5 // pred_fallthru
      _
    %p188 = scmp.lt.s32.totalorder %s10, 8
    // Predicated region
    $region25: #{matmul_scale_bias.1} parent=5 // pred_check
      %p189 = pneg %p188
    $region26: #{matmul_scale_bias.1} parent=5 // pred_check_branch
      %191 = sbr.rel (%p189) target = $region28
    $region27: #{matmul_scale_bias.1} parent=5 // pred_region
      // Predicated region
      $region29: #{matmul_scale_bias.1} parent=27 // pred_check
        %p192 = pneg %p42
      $region30: #{matmul_scale_bias.1} parent=27 // pred_check_branch
        %194 = sbr.rel (%p192) target = $region32
      $region31: #{matmul_scale_bias.1} parent=27 // pred_region
        %s195 = smul.u32 64, %s17
        %p196 = scmp.lt.s32.totalorder %s195, 511
        %s197 = scalar_select %p196, %s195, 511
        %s198 = smul.addr %s197, 9
        %s199 = smul.addr %s198, 4
        %s200 = scalar_lea.vmem %s0, %s199
        %s201 = smul.u32 64, %s17
      $region32: #{matmul_scale_bias.1} parent=27 // pred_fallthru
        _
    $region28: #{matmul_scale_bias.1} parent=5 // pred_fallthru
      _
    %p202 = scmp.le.s32.totalorder 1, %s10
    %p203 = scmp.lt.s32.totalorder %s10, 9
    %p204 = pnand %p202, %p203
    %p205 = pneg %p204
    // Predicated region
    $region33: #{matmul_scale_bias.1} parent=5 // pred_check
      _
    $region34: #{matmul_scale_bias.1} parent=5 // pred_check_branch
      %207 = sbr.rel (%p204) target = $region36
    $region35: #{matmul_scale_bias.1} parent=5 // pred_region
      %s208 = ssub.s32 %s10, 1
      %s209 = smul.u32 64, %s19
      %p210 = scmp.lt.s32.totalorder %s209, 511
      %s211 = scalar_select %p210, %s209, 511
      %s212 = smul.addr %s211, 9
      %s213 = smul.addr %s212, 4
      %s214 = scalar_lea.vmem %s0, %s213
      %p215 = pneg %p48
      %p216 = pneg %p45
      %p217 = scmp.lt.s32.totalorder %s20, 0
      %s218 = scalar_select %p217, %s20, 0
      %s219 = smul.addr %s218, 4
      %s220 = scalar_lea.vmem %s1, %s219
      %p221 = pneg %p74
      %p222 = pneg %p71
      %p223 = scmp.lt.s32.totalorder %s20, 0
      %s224 = scalar_select %p223, %s20, 0
      %s225 = scalar_lea.vmem %s2, %s224
      %p226 = pneg %p100
      %p227 = pneg %p97
      %p228 = scmp.lt.s32.totalorder %s20, 0
      %s229 = scalar_select %p228, %s20, 0
      %s230 = scalar_lea.vmem %s3, %s229
      %p231 = pneg %p126
      %p232 = pneg %p123
      %p233 = pneg %p154
      %p234 = pneg %p151
      %s235 = smul.u32 64, %s19
      %p236 = scmp.lt.s32.totalorder %s235, 511
      %s237 = scalar_select %p236, %s235, 511
      %p238 = scmp.lt.s32.totalorder %s20, 0
      %s239 = scalar_select %p238, %s20, 0
      %s240 = sadd.s32 %s239, %s237
      %s241 = smul.addr %s240, 4
      %s242 = scalar_lea.vmem %s4, %s241
      %s243 = smul.u32 64, %s19
      %p244 = scmp.lt.s32.totalorder %s243, 511
      %s245 = scalar_select %p244, %s243, 511
      %s246 = smul.addr %s245, 9
      %s247 = smul.addr %s246, 4
      %s248 = scalar_lea.vmem %s0, %s247
      %s249 = smul.u32 64, %s19
      %p250 = scmp.lt.s32.totalorder %s20, 0
      %s251 = scalar_select %p250, %s20, 0
      %s252 = smul.addr %s251, 4
      %s253 = scalar_lea.vmem %s1, %s252
      %p254 = scmp.lt.s32.totalorder %s20, 0
      %s255 = scalar_select %p254, %s20, 0
      %s256 = scalar_lea.vmem %s2, %s255
      %p257 = scmp.lt.s32.totalorder %s20, 0
      %s258 = scalar_select %p257, %s20, 0
      %s259 = scalar_lea.vmem %s3, %s258
      %s260 = smul.u32 64, %s19
      %p261 = scmp.lt.s32.totalorder %s260, 511
      %s262 = scalar_select %p261, %s260, 511
      %p263 = scmp.lt.s32.totalorder %s20, 0
      %s264 = scalar_select %p263, %s20, 0
      %s265 = sadd.s32 %s264, %s262
      %s266 = smul.addr %s265, 4
      %s267 = scalar_lea.vmem %s4, %s266
      %s268 = smul.u32 64, %s19
      %v270 = vld [vmem:[%s248] sm:$0xff]
      %v271 = vld [vmem:[%s248 + $0x8] sm:$0xff]
      %v272 = vld [vmem:[%s248 + $0x10] sm:$0xff]
      %v273 = vld [vmem:[%s248 + $0x18] sm:$0xff]
      %v274 = vld [vmem:[%s248 + $0x20] sm:$0xf]
      %v275 = vld [vmem:[%s248 + $0x24] sm:$0xff]
      %v276 = vld [vmem:[%s248 + $0x2c] sm:$0xff]
      %v277 = vld [vmem:[%s248 + $0x34] sm:$0xff]
      %v278 = vld [vmem:[%s248 + $0x3c] sm:$0xff]
      %v279 = vld [vmem:[%s248 + $0x44] sm:$0xf]
      %v280 = vld [vmem:[%s248 + $0x48] sm:$0xff]
      %v281 = vld [vmem:[%s248 + $0x50] sm:$0xff]
      %v282 = vld [vmem:[%s248 + $0x58] sm:$0xff]
      %v283 = vld [vmem:[%s248 + $0x60] sm:$0xff]
      %v284 = vld [vmem:[%s248 + $0x68] sm:$0xf]
      %v285 = vld [vmem:[%s248 + $0x6c] sm:$0xff]
      %v286 = vld [vmem:[%s248 + $0x74] sm:$0xff]
      %v287 = vld [vmem:[%s248 + $0x7c] sm:$0xff]
      %v288 = vld [vmem:[%s248 + $0x84] sm:$0xff]
      %v289 = vld [vmem:[%s248 + $0x8c] sm:$0xf]
      %v290 = vld [vmem:[%s248 + $0x90] sm:$0xff]
      %v291 = vld [vmem:[%s248 + $0x98] sm:$0xff]
      %v292 = vld [vmem:[%s248 + $0xa0] sm:$0xff]
      %v293 = vld [vmem:[%s248 + $0xa8] sm:$0xff]
      %v294 = vld [vmem:[%s248 + $0xb0] sm:$0xf]
      %v295 = vld [vmem:[%s248 + $0xb4] sm:$0xff]
      %v296 = vld [vmem:[%s248 + $0xbc] sm:$0xff]
      %v297 = vld [vmem:[%s248 + $0xc4] sm:$0xff]
      %v298 = vld [vmem:[%s248 + $0xcc] sm:$0xff]
      %v299 = vld [vmem:[%s248 + $0xd4] sm:$0xf]
      %v300 = vld [vmem:[%s248 + $0xd8] sm:$0xff]
      %v301 = vld [vmem:[%s248 + $0xe0] sm:$0xff]
      %v302 = vld [vmem:[%s248 + $0xe8] sm:$0xff]
      %v303 = vld [vmem:[%s248 + $0xf0] sm:$0xff]
      %v304 = vld [vmem:[%s248 + $0xf8] sm:$0xf]
      %v305 = vld [vmem:[%s248 + $0xfc] sm:$0xff]
      %v306 = vld [vmem:[%s248 + $0x104] sm:$0xff]
      %v307 = vld [vmem:[%s248 + $0x10c] sm:$0xff]
      %v308 = vld [vmem:[%s248 + $0x114] sm:$0xff]
      %v309 = vld [vmem:[%s248 + $0x11c] sm:$0xf]
      %v310 = vld [vmem:[%s248 + $0x120] sm:$0xff]
      %v311 = vld [vmem:[%s248 + $0x128] sm:$0xff]
      %v312 = vld [vmem:[%s248 + $0x130] sm:$0xff]
      %v313 = vld [vmem:[%s248 + $0x138] sm:$0xff]
      %v314 = vld [vmem:[%s248 + $0x140] sm:$0xf]
      %v315 = vld [vmem:[%s248 + $0x144] sm:$0xff]
      %v316 = vld [vmem:[%s248 + $0x14c] sm:$0xff]
      %v317 = vld [vmem:[%s248 + $0x154] sm:$0xff]
      %v318 = vld [vmem:[%s248 + $0x15c] sm:$0xff]
      %v319 = vld [vmem:[%s248 + $0x164] sm:$0xf]
      %v320 = vld [vmem:[%s248 + $0x168] sm:$0xff]
      %v321 = vld [vmem:[%s248 + $0x170] sm:$0xff]
      %v322 = vld [vmem:[%s248 + $0x178] sm:$0xff]
      %v323 = vld [vmem:[%s248 + $0x180] sm:$0xff]
      %v324 = vld [vmem:[%s248 + $0x188] sm:$0xf]
      %v325 = vld [vmem:[%s248 + $0x18c] sm:$0xff]
      %v326 = vld [vmem:[%s248 + $0x194] sm:$0xff]
      %v327 = vld [vmem:[%s248 + $0x19c] sm:$0xff]
      %v328 = vld [vmem:[%s248 + $0x1a4] sm:$0xff]
      %v329 = vld [vmem:[%s248 + $0x1ac] sm:$0xf]
      %v330 = vld [vmem:[%s248 + $0x1b0] sm:$0xff]
      %v331 = vld [vmem:[%s248 + $0x1b8] sm:$0xff]
      %v332 = vld [vmem:[%s248 + $0x1c0] sm:$0xff]
      %v333 = vld [vmem:[%s248 + $0x1c8] sm:$0xff]
      %v334 = vld [vmem:[%s248 + $0x1d0] sm:$0xf]
      %v335 = vld [vmem:[%s248 + $0x1d4] sm:$0xff]
      %v336 = vld [vmem:[%s248 + $0x1dc] sm:$0xff]
      %v337 = vld [vmem:[%s248 + $0x1e4] sm:$0xff]
      %v338 = vld [vmem:[%s248 + $0x1ec] sm:$0xff]
      %v339 = vld [vmem:[%s248 + $0x1f4] sm:$0xf]
      %v340 = vld [vmem:[%s248 + $0x1f8] sm:$0xff]
      %v341 = vld [vmem:[%s248 + $0x200] sm:$0xff]
      %v342 = vld [vmem:[%s248 + $0x208] sm:$0xff]
      %v343 = vld [vmem:[%s248 + $0x210] sm:$0xff]
      %v344 = vld [vmem:[%s248 + $0x218] sm:$0xf]
      %v345 = vld [vmem:[%s248 + $0x21c] sm:$0xff]
      %v346 = vld [vmem:[%s248 + $0x224] sm:$0xff]
      %v347 = vld [vmem:[%s248 + $0x22c] sm:$0xff]
      %v348 = vld [vmem:[%s248 + $0x234] sm:$0xff]
      %v349 = vld [vmem:[%s248 + $0x23c] sm:$0xf]
      %v350 = vld [vmem:[%s248 + $0x240] sm:$0xff]
      %v351 = vld [vmem:[%s248 + $0x248] sm:$0xff]
      %v352 = vld [vmem:[%s248 + $0x250] sm:$0xff]
      %v353 = vld [vmem:[%s248 + $0x258] sm:$0xff]
      %v354 = vld [vmem:[%s248 + $0x260] sm:$0xf]
      %v355 = vld [vmem:[%s248 + $0x264] sm:$0xff]
      %v356 = vld [vmem:[%s248 + $0x26c] sm:$0xff]
      %v357 = vld [vmem:[%s248 + $0x274] sm:$0xff]
      %v358 = vld [vmem:[%s248 + $0x27c] sm:$0xff]
      %v359 = vld [vmem:[%s248 + $0x284] sm:$0xf]
      %v360 = vld [vmem:[%s248 + $0x288] sm:$0xff]
      %v361 = vld [vmem:[%s248 + $0x290] sm:$0xff]
      %v362 = vld [vmem:[%s248 + $0x298] sm:$0xff]
      %v363 = vld [vmem:[%s248 + $0x2a0] sm:$0xff]
      %v364 = vld [vmem:[%s248 + $0x2a8] sm:$0xf]
      %v365 = vld [vmem:[%s248 + $0x2ac] sm:$0xff]
      %v366 = vld [vmem:[%s248 + $0x2b4] sm:$0xff]
      %v367 = vld [vmem:[%s248 + $0x2bc] sm:$0xff]
      %v368 = vld [vmem:[%s248 + $0x2c4] sm:$0xff]
      %v369 = vld [vmem:[%s248 + $0x2cc] sm:$0xf]
      %v370 = vld [vmem:[%s248 + $0x2d0] sm:$0xff]
      %v371 = vld [vmem:[%s248 + $0x2d8] sm:$0xff]
      %v372 = vld [vmem:[%s248 + $0x2e0] sm:$0xff]
      %v373 = vld [vmem:[%s248 + $0x2e8] sm:$0xff]
      %v374 = vld [vmem:[%s248 + $0x2f0] sm:$0xf]
      %v375 = vld [vmem:[%s248 + $0x2f4] sm:$0xff]
      %v376 = vld [vmem:[%s248 + $0x2fc] sm:$0xff]
      %v377 = vld [vmem:[%s248 + $0x304] sm:$0xff]
      %v378 = vld [vmem:[%s248 + $0x30c] sm:$0xff]
      %v379 = vld [vmem:[%s248 + $0x314] sm:$0xf]
      %v380 = vld [vmem:[%s248 + $0x318] sm:$0xff]
      %v381 = vld [vmem:[%s248 + $0x320] sm:$0xff]
      %v382 = vld [vmem:[%s248 + $0x328] sm:$0xff]
      %v383 = vld [vmem:[%s248 + $0x330] sm:$0xff]
      %v384 = vld [vmem:[%s248 + $0x338] sm:$0xf]
      %v385 = vld [vmem:[%s248 + $0x33c] sm:$0xff]
      %v386 = vld [vmem:[%s248 + $0x344] sm:$0xff]
      %v387 = vld [vmem:[%s248 + $0x34c] sm:$0xff]
      %v388 = vld [vmem:[%s248 + $0x354] sm:$0xff]
      %v389 = vld [vmem:[%s248 + $0x35c] sm:$0xf]
      %v390 = vld [vmem:[%s248 + $0x360] sm:$0xff]
      %v391 = vld [vmem:[%s248 + $0x368] sm:$0xff]
      %v392 = vld [vmem:[%s248 + $0x370] sm:$0xff]
      %v393 = vld [vmem:[%s248 + $0x378] sm:$0xff]
      %v394 = vld [vmem:[%s248 + $0x380] sm:$0xf]
      %v395 = vld [vmem:[%s248 + $0x384] sm:$0xff]
      %v396 = vld [vmem:[%s248 + $0x38c] sm:$0xff]
      %v397 = vld [vmem:[%s248 + $0x394] sm:$0xff]
      %v398 = vld [vmem:[%s248 + $0x39c] sm:$0xff]
      %v399 = vld [vmem:[%s248 + $0x3a4] sm:$0xf]
      %v400 = vld [vmem:[%s248 + $0x3a8] sm:$0xff]
      %v401 = vld [vmem:[%s248 + $0x3b0] sm:$0xff]
      %v402 = vld [vmem:[%s248 + $0x3b8] sm:$0xff]
      %v403 = vld [vmem:[%s248 + $0x3c0] sm:$0xff]
      %v404 = vld [vmem:[%s248 + $0x3c8] sm:$0xf]
      %v405 = vld [vmem:[%s248 + $0x3cc] sm:$0xff]
      %v406 = vld [vmem:[%s248 + $0x3d4] sm:$0xff]
      %v407 = vld [vmem:[%s248 + $0x3dc] sm:$0xff]
      %v408 = vld [vmem:[%s248 + $0x3e4] sm:$0xff]
      %v409 = vld [vmem:[%s248 + $0x3ec] sm:$0xf]
      %v410 = vld [vmem:[%s248 + $0x3f0] sm:$0xff]
      %v411 = vld [vmem:[%s248 + $0x3f8] sm:$0xff]
      %v412 = vld [vmem:[%s248 + $0x400] sm:$0xff]
      %v413 = vld [vmem:[%s248 + $0x408] sm:$0xff]
      %v414 = vld [vmem:[%s248 + $0x410] sm:$0xf]
      %v415 = vld [vmem:[%s248 + $0x414] sm:$0xff]
      %v416 = vld [vmem:[%s248 + $0x41c] sm:$0xff]
      %v417 = vld [vmem:[%s248 + $0x424] sm:$0xff]
      %v418 = vld [vmem:[%s248 + $0x42c] sm:$0xff]
      %v419 = vld [vmem:[%s248 + $0x434] sm:$0xf]
      %v420 = vld [vmem:[%s248 + $0x438] sm:$0xff]
      %v421 = vld [vmem:[%s248 + $0x440] sm:$0xff]
      %v422 = vld [vmem:[%s248 + $0x448] sm:$0xff]
      %v423 = vld [vmem:[%s248 + $0x450] sm:$0xff]
      %v424 = vld [vmem:[%s248 + $0x458] sm:$0xf]
      %v425 = vld [vmem:[%s248 + $0x45c] sm:$0xff]
      %v426 = vld [vmem:[%s248 + $0x464] sm:$0xff]
      %v427 = vld [vmem:[%s248 + $0x46c] sm:$0xff]
      %v428 = vld [vmem:[%s248 + $0x474] sm:$0xff]
      %v429 = vld [vmem:[%s248 + $0x47c] sm:$0xf]
      %v430 = vld [vmem:[%s248 + $0x480] sm:$0xff]
      %v431 = vld [vmem:[%s248 + $0x488] sm:$0xff]
      %v432 = vld [vmem:[%s248 + $0x490] sm:$0xff]
      %v433 = vld [vmem:[%s248 + $0x498] sm:$0xff]
      %v434 = vld [vmem:[%s248 + $0x4a0] sm:$0xf]
      %v435 = vld [vmem:[%s248 + $0x4a4] sm:$0xff]
      %v436 = vld [vmem:[%s248 + $0x4ac] sm:$0xff]
      %v437 = vld [vmem:[%s248 + $0x4b4] sm:$0xff]
      %v438 = vld [vmem:[%s248 + $0x4bc] sm:$0xff]
      %v439 = vld [vmem:[%s248 + $0x4c4] sm:$0xf]
      %v440 = vld [vmem:[%s248 + $0x4c8] sm:$0xff]
      %v441 = vld [vmem:[%s248 + $0x4d0] sm:$0xff]
      %v442 = vld [vmem:[%s248 + $0x4d8] sm:$0xff]
      %v443 = vld [vmem:[%s248 + $0x4e0] sm:$0xff]
      %v444 = vld [vmem:[%s248 + $0x4e8] sm:$0xf]
      %v445 = vld [vmem:[%s248 + $0x4ec] sm:$0xff]
      %v446 = vld [vmem:[%s248 + $0x4f4] sm:$0xff]
      %v447 = vld [vmem:[%s248 + $0x4fc] sm:$0xff]
      %v448 = vld [vmem:[%s248 + $0x504] sm:$0xff]
      %v449 = vld [vmem:[%s248 + $0x50c] sm:$0xf]
      %v450 = vld [vmem:[%s248 + $0x510] sm:$0xff]
      %v451 = vld [vmem:[%s248 + $0x518] sm:$0xff]
      %v452 = vld [vmem:[%s248 + $0x520] sm:$0xff]
      %v453 = vld [vmem:[%s248 + $0x528] sm:$0xff]
      %v454 = vld [vmem:[%s248 + $0x530] sm:$0xf]
      %v455 = vld [vmem:[%s248 + $0x534] sm:$0xff]
      %v456 = vld [vmem:[%s248 + $0x53c] sm:$0xff]
      %v457 = vld [vmem:[%s248 + $0x544] sm:$0xff]
      %v458 = vld [vmem:[%s248 + $0x54c] sm:$0xff]
      %v459 = vld [vmem:[%s248 + $0x554] sm:$0xf]
      %v460 = vld [vmem:[%s248 + $0x558] sm:$0xff]
      %v461 = vld [vmem:[%s248 + $0x560] sm:$0xff]
      %v462 = vld [vmem:[%s248 + $0x568] sm:$0xff]
      %v463 = vld [vmem:[%s248 + $0x570] sm:$0xff]
      %v464 = vld [vmem:[%s248 + $0x578] sm:$0xf]
      %v465 = vld [vmem:[%s248 + $0x57c] sm:$0xff]
      %v466 = vld [vmem:[%s248 + $0x584] sm:$0xff]
      %v467 = vld [vmem:[%s248 + $0x58c] sm:$0xff]
      %v468 = vld [vmem:[%s248 + $0x594] sm:$0xff]
      %v469 = vld [vmem:[%s248 + $0x59c] sm:$0xf]
      %v470 = vld [vmem:[%s248 + $0x5a0] sm:$0xff]
      %v471 = vld [vmem:[%s248 + $0x5a8] sm:$0xff]
      %v472 = vld [vmem:[%s248 + $0x5b0] sm:$0xff]
      %v473 = vld [vmem:[%s248 + $0x5b8] sm:$0xff]
      %v474 = vld [vmem:[%s248 + $0x5c0] sm:$0xf]
      %v475 = vld [vmem:[%s248 + $0x5c4] sm:$0xff]
      %v476 = vld [vmem:[%s248 + $0x5cc] sm:$0xff]
      %v477 = vld [vmem:[%s248 + $0x5d4] sm:$0xff]
      %v478 = vld [vmem:[%s248 + $0x5dc] sm:$0xff]
      %v479 = vld [vmem:[%s248 + $0x5e4] sm:$0xf]
      %v480 = vld [vmem:[%s248 + $0x5e8] sm:$0xff]
      %v481 = vld [vmem:[%s248 + $0x5f0] sm:$0xff]
      %v482 = vld [vmem:[%s248 + $0x5f8] sm:$0xff]
      %v483 = vld [vmem:[%s248 + $0x600] sm:$0xff]
      %v484 = vld [vmem:[%s248 + $0x608] sm:$0xf]
      %v485 = vld [vmem:[%s248 + $0x60c] sm:$0xff]
      %v486 = vld [vmem:[%s248 + $0x614] sm:$0xff]
      %v487 = vld [vmem:[%s248 + $0x61c] sm:$0xff]
      %v488 = vld [vmem:[%s248 + $0x624] sm:$0xff]
      %v489 = vld [vmem:[%s248 + $0x62c] sm:$0xf]
      %v490 = vld [vmem:[%s248 + $0x630] sm:$0xff]
      %v491 = vld [vmem:[%s248 + $0x638] sm:$0xff]
      %v492 = vld [vmem:[%s248 + $0x640] sm:$0xff]
      %v493 = vld [vmem:[%s248 + $0x648] sm:$0xff]
      %v494 = vld [vmem:[%s248 + $0x650] sm:$0xf]
      %v495 = vld [vmem:[%s248 + $0x654] sm:$0xff]
      %v496 = vld [vmem:[%s248 + $0x65c] sm:$0xff]
      %v497 = vld [vmem:[%s248 + $0x664] sm:$0xff]
      %v498 = vld [vmem:[%s248 + $0x66c] sm:$0xff]
      %v499 = vld [vmem:[%s248 + $0x674] sm:$0xf]
      %v500 = vld [vmem:[%s248 + $0x678] sm:$0xff]
      %v501 = vld [vmem:[%s248 + $0x680] sm:$0xff]
      %v502 = vld [vmem:[%s248 + $0x688] sm:$0xff]
      %v503 = vld [vmem:[%s248 + $0x690] sm:$0xff]
      %v504 = vld [vmem:[%s248 + $0x698] sm:$0xf]
      %v505 = vld [vmem:[%s248 + $0x69c] sm:$0xff]
      %v506 = vld [vmem:[%s248 + $0x6a4] sm:$0xff]
      %v507 = vld [vmem:[%s248 + $0x6ac] sm:$0xff]
      %v508 = vld [vmem:[%s248 + $0x6b4] sm:$0xff]
      %v509 = vld [vmem:[%s248 + $0x6bc] sm:$0xf]
      %v510 = vld [vmem:[%s248 + $0x6c0] sm:$0xff]
      %v511 = vld [vmem:[%s248 + $0x6c8] sm:$0xff]
      %v512 = vld [vmem:[%s248 + $0x6d0] sm:$0xff]
      %v513 = vld [vmem:[%s248 + $0x6d8] sm:$0xff]
      %v514 = vld [vmem:[%s248 + $0x6e0] sm:$0xf]
      %v515 = vld [vmem:[%s248 + $0x6e4] sm:$0xff]
      %v516 = vld [vmem:[%s248 + $0x6ec] sm:$0xff]
      %v517 = vld [vmem:[%s248 + $0x6f4] sm:$0xff]
      %v518 = vld [vmem:[%s248 + $0x6fc] sm:$0xff]
      %v519 = vld [vmem:[%s248 + $0x704] sm:$0xf]
      %v520 = vld [vmem:[%s248 + $0x708] sm:$0xff]
      %v521 = vld [vmem:[%s248 + $0x710] sm:$0xff]
      %v522 = vld [vmem:[%s248 + $0x718] sm:$0xff]
      %v523 = vld [vmem:[%s248 + $0x720] sm:$0xff]
      %v524 = vld [vmem:[%s248 + $0x728] sm:$0xf]
      %v525 = vld [vmem:[%s248 + $0x72c] sm:$0xff]
      %v526 = vld [vmem:[%s248 + $0x734] sm:$0xff]
      %v527 = vld [vmem:[%s248 + $0x73c] sm:$0xff]
      %v528 = vld [vmem:[%s248 + $0x744] sm:$0xff]
      %v529 = vld [vmem:[%s248 + $0x74c] sm:$0xf]
      %v530 = vld [vmem:[%s248 + $0x750] sm:$0xff]
      %v531 = vld [vmem:[%s248 + $0x758] sm:$0xff]
      %v532 = vld [vmem:[%s248 + $0x760] sm:$0xff]
      %v533 = vld [vmem:[%s248 + $0x768] sm:$0xff]
      %v534 = vld [vmem:[%s248 + $0x770] sm:$0xf]
      %v535 = vld [vmem:[%s248 + $0x774] sm:$0xff]
      %v536 = vld [vmem:[%s248 + $0x77c] sm:$0xff]
      %v537 = vld [vmem:[%s248 + $0x784] sm:$0xff]
      %v538 = vld [vmem:[%s248 + $0x78c] sm:$0xff]
      %v539 = vld [vmem:[%s248 + $0x794] sm:$0xf]
      %v540 = vld [vmem:[%s248 + $0x798] sm:$0xff]
      %v541 = vld [vmem:[%s248 + $0x7a0] sm:$0xff]
      %v542 = vld [vmem:[%s248 + $0x7a8] sm:$0xff]
      %v543 = vld [vmem:[%s248 + $0x7b0] sm:$0xff]
      %v544 = vld [vmem:[%s248 + $0x7b8] sm:$0xf]
      %v545 = vld [vmem:[%s248 + $0x7bc] sm:$0xff]
      %v546 = vld [vmem:[%s248 + $0x7c4] sm:$0xff]
      %v547 = vld [vmem:[%s248 + $0x7cc] sm:$0xff]
      %v548 = vld [vmem:[%s248 + $0x7d4] sm:$0xff]
      %v549 = vld [vmem:[%s248 + $0x7dc] sm:$0xf]
      %v550 = vld [vmem:[%s248 + $0x7e0] sm:$0xff]
      %v551 = vld [vmem:[%s248 + $0x7e8] sm:$0xff]
      %v552 = vld [vmem:[%s248 + $0x7f0] sm:$0xff]
      %v553 = vld [vmem:[%s248 + $0x7f8] sm:$0xff]
      %v554 = vld [vmem:[%s248 + $0x800] sm:$0xf]
      %v555 = vld [vmem:[%s248 + $0x804] sm:$0xff]
      %v556 = vld [vmem:[%s248 + $0x80c] sm:$0xff]
      %v557 = vld [vmem:[%s248 + $0x814] sm:$0xff]
      %v558 = vld [vmem:[%s248 + $0x81c] sm:$0xff]
      %v559 = vld [vmem:[%s248 + $0x824] sm:$0xf]
      %v560 = vld [vmem:[%s248 + $0x828] sm:$0xff]
      %v561 = vld [vmem:[%s248 + $0x830] sm:$0xff]
      %v562 = vld [vmem:[%s248 + $0x838] sm:$0xff]
      %v563 = vld [vmem:[%s248 + $0x840] sm:$0xff]
      %v564 = vld [vmem:[%s248 + $0x848] sm:$0xf]
      %v565 = vld [vmem:[%s248 + $0x84c] sm:$0xff]
      %v566 = vld [vmem:[%s248 + $0x854] sm:$0xff]
      %v567 = vld [vmem:[%s248 + $0x85c] sm:$0xff]
      %v568 = vld [vmem:[%s248 + $0x864] sm:$0xff]
      %v569 = vld [vmem:[%s248 + $0x86c] sm:$0xf]
      %v570 = vld [vmem:[%s248 + $0x870] sm:$0xff]
      %v571 = vld [vmem:[%s248 + $0x878] sm:$0xff]
      %v572 = vld [vmem:[%s248 + $0x880] sm:$0xff]
      %v573 = vld [vmem:[%s248 + $0x888] sm:$0xff]
      %v574 = vld [vmem:[%s248 + $0x890] sm:$0xf]
      %v575 = vld [vmem:[%s248 + $0x894] sm:$0xff]
      %v576 = vld [vmem:[%s248 + $0x89c] sm:$0xff]
      %v577 = vld [vmem:[%s248 + $0x8a4] sm:$0xff]
      %v578 = vld [vmem:[%s248 + $0x8ac] sm:$0xff]
      %v579 = vld [vmem:[%s248 + $0x8b4] sm:$0xf]
      %v580 = vld [vmem:[%s248 + $0x8b8] sm:$0xff]
      %v581 = vld [vmem:[%s248 + $0x8c0] sm:$0xff]
      %v582 = vld [vmem:[%s248 + $0x8c8] sm:$0xff]
      %v583 = vld [vmem:[%s248 + $0x8d0] sm:$0xff]
      %v584 = vld [vmem:[%s248 + $0x8d8] sm:$0xf]
      %v585 = vld [vmem:[%s248 + $0x8dc] sm:$0xff]
      %v586 = vld [vmem:[%s248 + $0x8e4] sm:$0xff]
      %v587 = vld [vmem:[%s248 + $0x8ec] sm:$0xff]
      %v588 = vld [vmem:[%s248 + $0x8f4] sm:$0xff]
      %v589 = vld [vmem:[%s248 + $0x8fc] sm:$0xf]
      %v590 = vld [vmem:[%s253] sm:$0xf]
      %v591 = vld [vmem:[%s253 + $0x4] sm:$0xf]
      %v592 = vld [vmem:[%s253 + $0x8] sm:$0xf]
      %v593 = vld [vmem:[%s253 + $0xc] sm:$0xf]
      %v594 = vld [vmem:[%s253 + $0x10] sm:$0xf]
      %v595 = vld [vmem:[%s253 + $0x14] sm:$0xf]
      %v596 = vld [vmem:[%s253 + $0x18] sm:$0xf]
      %v597 = vld [vmem:[%s253 + $0x1c] sm:$0xf]
      %v598 = vld [vmem:[%s253 + $0x20] sm:$0xf]
      %v599 = vld [vmem:[%s253 + $0x24] sm:$0xf]
      %v600 = vld [vmem:[%s253 + $0x28] sm:$0xf]
      %v601 = vld [vmem:[%s253 + $0x2c] sm:$0xf]
      %v602 = vld [vmem:[%s253 + $0x30] sm:$0xf]
      %v603 = vld [vmem:[%s253 + $0x34] sm:$0xf]
      %v604 = vld [vmem:[%s253 + $0x38] sm:$0xf]
      %v605 = vld [vmem:[%s253 + $0x3c] sm:$0xf]
      %v606 = vld [vmem:[%s253 + $0x40] sm:$0xf]
      %v607 = vld [vmem:[%s253 + $0x44] sm:$0xf]
      %v608 = vld [vmem:[%s253 + $0x48] sm:$0xf]
      %v609 = vld [vmem:[%s253 + $0x4c] sm:$0xf]
      %v610 = vld [vmem:[%s253 + $0x50] sm:$0xf]
      %v611 = vld [vmem:[%s253 + $0x54] sm:$0xf]
      %v612 = vld [vmem:[%s253 + $0x58] sm:$0xf]
      %v613 = vld [vmem:[%s253 + $0x5c] sm:$0xf]
      %v614 = vld [vmem:[%s253 + $0x60] sm:$0xf]
      %v615 = vld [vmem:[%s253 + $0x64] sm:$0xf]
      %v616 = vld [vmem:[%s253 + $0x68] sm:$0xf]
      %v617 = vld [vmem:[%s253 + $0x6c] sm:$0xf]
      %v618 = vld [vmem:[%s253 + $0x70] sm:$0xf]
      %v619 = vld [vmem:[%s253 + $0x74] sm:$0xf]
      %v620 = vld [vmem:[%s253 + $0x78] sm:$0xf]
      %v621 = vld [vmem:[%s253 + $0x7c] sm:$0xf]
      %v622 = vld [vmem:[%s253 + $0x80] sm:$0xf]
      %v623 = vld [vmem:[%s253 + $0x84] sm:$0xf]
      %v624 = vld [vmem:[%s253 + $0x88] sm:$0xf]
      %v625 = vld [vmem:[%s253 + $0x8c] sm:$0xf]
      %v626 = vld [vmem:[%s253 + $0x90] sm:$0xf]
      %v627 = vld [vmem:[%s253 + $0x94] sm:$0xf]
      %v628 = vld [vmem:[%s253 + $0x98] sm:$0xf]
      %v629 = vld [vmem:[%s253 + $0x9c] sm:$0xf]
      %v630 = vld [vmem:[%s253 + $0xa0] sm:$0xf]
      %v631 = vld [vmem:[%s253 + $0xa4] sm:$0xf]
      %v632 = vld [vmem:[%s253 + $0xa8] sm:$0xf]
      %v633 = vld [vmem:[%s253 + $0xac] sm:$0xf]
      %v634 = vld [vmem:[%s253 + $0xb0] sm:$0xf]
      %v635 = vld [vmem:[%s253 + $0xb4] sm:$0xf]
      %v636 = vld [vmem:[%s253 + $0xb8] sm:$0xf]
      %v637 = vld [vmem:[%s253 + $0xbc] sm:$0xf]
      %v638 = vld [vmem:[%s253 + $0xc0] sm:$0xf]
      %v639 = vld [vmem:[%s253 + $0xc4] sm:$0xf]
      %v640 = vld [vmem:[%s253 + $0xc8] sm:$0xf]
      %v641 = vld [vmem:[%s253 + $0xcc] sm:$0xf]
      %v642 = vld [vmem:[%s253 + $0xd0] sm:$0xf]
      %v643 = vld [vmem:[%s253 + $0xd4] sm:$0xf]
      %v644 = vld [vmem:[%s253 + $0xd8] sm:$0xf]
      %v645 = vld [vmem:[%s253 + $0xdc] sm:$0xf]
      %v646 = vld [vmem:[%s253 + $0xe0] sm:$0xf]
      %v647 = vld [vmem:[%s253 + $0xe4] sm:$0xf]
      %v648 = vld [vmem:[%s253 + $0xe8] sm:$0xf]
      %v649 = vld [vmem:[%s253 + $0xec] sm:$0xf]
      %v650 = vld [vmem:[%s253 + $0xf0] sm:$0xf]
      %v651 = vld [vmem:[%s253 + $0xf4] sm:$0xf]
      %v652 = vld [vmem:[%s253 + $0xf8] sm:$0xf]
      %v653 = vld [vmem:[%s253 + $0xfc] sm:$0xf]
      %v654 = vld [vmem:[%s253 + $0x100] sm:$0xf]
      %v655 = vld [vmem:[%s253 + $0x104] sm:$0xf]
      %v656 = vld [vmem:[%s253 + $0x108] sm:$0xf]
      %v657 = vld [vmem:[%s253 + $0x10c] sm:$0xf]
      %v658 = vld [vmem:[%s253 + $0x110] sm:$0xf]
      %v659 = vld [vmem:[%s253 + $0x114] sm:$0xf]
      %v660 = vld [vmem:[%s253 + $0x118] sm:$0xf]
      %v661 = vld [vmem:[%s253 + $0x11c] sm:$0xf]
      %v662 = vld [vmem:[%s253 + $0x120] sm:$0xf]
      %v663 = vld [vmem:[%s253 + $0x124] sm:$0xf]
      %v664 = vld [vmem:[%s253 + $0x128] sm:$0xf]
      %v665 = vld [vmem:[%s253 + $0x12c] sm:$0xf]
      %v666 = vld [vmem:[%s253 + $0x130] sm:$0xf]
      %v667 = vld [vmem:[%s253 + $0x134] sm:$0xf]
      %v668 = vld [vmem:[%s253 + $0x138] sm:$0xf]
      %v669 = vld [vmem:[%s253 + $0x13c] sm:$0xf]
      %v670 = vld [vmem:[%s253 + $0x140] sm:$0xf]
      %v671 = vld [vmem:[%s253 + $0x144] sm:$0xf]
      %v672 = vld [vmem:[%s253 + $0x148] sm:$0xf]
      %v673 = vld [vmem:[%s253 + $0x14c] sm:$0xf]
      %v674 = vld [vmem:[%s253 + $0x150] sm:$0xf]
      %v675 = vld [vmem:[%s253 + $0x154] sm:$0xf]
      %v676 = vld [vmem:[%s253 + $0x158] sm:$0xf]
      %v677 = vld [vmem:[%s253 + $0x15c] sm:$0xf]
      %v678 = vld [vmem:[%s253 + $0x160] sm:$0xf]
      %v679 = vld [vmem:[%s253 + $0x164] sm:$0xf]
      %v680 = vld [vmem:[%s253 + $0x168] sm:$0xf]
      %v681 = vld [vmem:[%s253 + $0x16c] sm:$0xf]
      %v682 = vld [vmem:[%s253 + $0x170] sm:$0xf]
      %v683 = vld [vmem:[%s253 + $0x174] sm:$0xf]
      %v684 = vld [vmem:[%s253 + $0x178] sm:$0xf]
      %v685 = vld [vmem:[%s253 + $0x17c] sm:$0xf]
      %v686 = vld [vmem:[%s253 + $0x180] sm:$0xf]
      %v687 = vld [vmem:[%s253 + $0x184] sm:$0xf]
      %v688 = vld [vmem:[%s253 + $0x188] sm:$0xf]
      %v689 = vld [vmem:[%s253 + $0x18c] sm:$0xf]
      %v690 = vld [vmem:[%s253 + $0x190] sm:$0xf]
      %v691 = vld [vmem:[%s253 + $0x194] sm:$0xf]
      %v692 = vld [vmem:[%s253 + $0x198] sm:$0xf]
      %v693 = vld [vmem:[%s253 + $0x19c] sm:$0xf]
      %v694 = vld [vmem:[%s253 + $0x1a0] sm:$0xf]
      %v695 = vld [vmem:[%s253 + $0x1a4] sm:$0xf]
      %v696 = vld [vmem:[%s253 + $0x1a8] sm:$0xf]
      %v697 = vld [vmem:[%s253 + $0x1ac] sm:$0xf]
      %v698 = vld [vmem:[%s253 + $0x1b0] sm:$0xf]
      %v699 = vld [vmem:[%s253 + $0x1b4] sm:$0xf]
      %v700 = vld [vmem:[%s253 + $0x1b8] sm:$0xf]
      %v701 = vld [vmem:[%s253 + $0x1bc] sm:$0xf]
      %v702 = vld [vmem:[%s253 + $0x1c0] sm:$0xf]
      %v703 = vld [vmem:[%s253 + $0x1c4] sm:$0xf]
      %v704 = vld [vmem:[%s253 + $0x1c8] sm:$0xf]
      %v705 = vld [vmem:[%s253 + $0x1cc] sm:$0xf]
      %v706 = vld [vmem:[%s253 + $0x1d0] sm:$0xf]
      %v707 = vld [vmem:[%s253 + $0x1d4] sm:$0xf]
      %v708 = vld [vmem:[%s253 + $0x1d8] sm:$0xf]
      %v709 = vld [vmem:[%s253 + $0x1dc] sm:$0xf]
      %v710 = vld [vmem:[%s253 + $0x1e0] sm:$0xf]
      %v711 = vld [vmem:[%s253 + $0x1e4] sm:$0xf]
      %v712 = vld [vmem:[%s253 + $0x1e8] sm:$0xf]
      %v713 = vld [vmem:[%s253 + $0x1ec] sm:$0xf]
      %v714 = vld [vmem:[%s253 + $0x1f0] sm:$0xf]
      %v715 = vld [vmem:[%s253 + $0x1f4] sm:$0xf]
      %v716 = vld [vmem:[%s253 + $0x1f8] sm:$0xf]
      %v717 = vld [vmem:[%s253 + $0x1fc] sm:$0xf]
      %v718 = vld [vmem:[%s253 + $0x200] sm:$0x7]
      %v1039 = vunpack.c.l.b16 %v270
      %v1040 = vunpack.c.h.b16 %v270
      %v1041 = vunpack.c.l.b16 %v271
      %v1042 = vunpack.c.h.b16 %v271
      %v1043 = vunpack.c.l.b16 %v272
      %v1044 = vunpack.c.h.b16 %v272
      %v1045 = vunpack.c.l.b16 %v273
      %v1046 = vunpack.c.h.b16 %v273
      %v1047 = vunpack.c.l.b16 %v274
      %v1048 = vunpack.c.l.b16 %v275
      %v1049 = vunpack.c.h.b16 %v275
      %v1050 = vunpack.c.l.b16 %v276
      %v1051 = vunpack.c.h.b16 %v276
      %v1052 = vunpack.c.l.b16 %v277
      %v1053 = vunpack.c.h.b16 %v277
      %v1054 = vunpack.c.l.b16 %v278
      %v1055 = vunpack.c.h.b16 %v278
      %v1056 = vunpack.c.l.b16 %v279
      %v1057 = vunpack.c.l.b16 %v280
      %v1058 = vunpack.c.h.b16 %v280
      %v1059 = vunpack.c.l.b16 %v281
      %v1060 = vunpack.c.h.b16 %v281
      %v1061 = vunpack.c.l.b16 %v282
      %v1062 = vunpack.c.h.b16 %v282
      %v1063 = vunpack.c.l.b16 %v283
      %v1064 = vunpack.c.h.b16 %v283
      %v1065 = vunpack.c.l.b16 %v284
      %v1066 = vunpack.c.l.b16 %v285
      %v1067 = vunpack.c.h.b16 %v285
      %v1068 = vunpack.c.l.b16 %v286
      %v1069 = vunpack.c.h.b16 %v286
      %v1070 = vunpack.c.l.b16 %v287
      %v1071 = vunpack.c.h.b16 %v287
      %v1072 = vunpack.c.l.b16 %v288
      %v1073 = vunpack.c.h.b16 %v288
      %v1074 = vunpack.c.l.b16 %v289
      %v1075 = vunpack.c.l.b16 %v290
      %v1076 = vunpack.c.h.b16 %v290
      %v1077 = vunpack.c.l.b16 %v291
      %v1078 = vunpack.c.h.b16 %v291
      %v1079 = vunpack.c.l.b16 %v292
      %v1080 = vunpack.c.h.b16 %v292
      %v1081 = vunpack.c.l.b16 %v293
      %v1082 = vunpack.c.h.b16 %v293
      %v1083 = vunpack.c.l.b16 %v294
      %v1084 = vunpack.c.l.b16 %v295
      %v1085 = vunpack.c.h.b16 %v295
      %v1086 = vunpack.c.l.b16 %v296
      %v1087 = vunpack.c.h.b16 %v296
      %v1088 = vunpack.c.l.b16 %v297
      %v1089 = vunpack.c.h.b16 %v297
      %v1090 = vunpack.c.l.b16 %v298
      %v1091 = vunpack.c.h.b16 %v298
      %v1092 = vunpack.c.l.b16 %v299
      %v1093 = vunpack.c.l.b16 %v300
      %v1094 = vunpack.c.h.b16 %v300
      %v1095 = vunpack.c.l.b16 %v301
      %v1096 = vunpack.c.h.b16 %v301
      %v1097 = vunpack.c.l.b16 %v302
      %v1098 = vunpack.c.h.b16 %v302
      %v1099 = vunpack.c.l.b16 %v303
      %v1100 = vunpack.c.h.b16 %v303
      %v1101 = vunpack.c.l.b16 %v304
      %v1102 = vunpack.c.l.b16 %v305
      %v1103 = vunpack.c.h.b16 %v305
      %v1104 = vunpack.c.l.b16 %v306
      %v1105 = vunpack.c.h.b16 %v306
      %v1106 = vunpack.c.l.b16 %v307
      %v1107 = vunpack.c.h.b16 %v307
      %v1108 = vunpack.c.l.b16 %v308
      %v1109 = vunpack.c.h.b16 %v308
      %v1110 = vunpack.c.l.b16 %v309
      %v1111 = vunpack.c.l.b16 %v310
      %v1112 = vunpack.c.h.b16 %v310
      %v1113 = vunpack.c.l.b16 %v311
      %v1114 = vunpack.c.h.b16 %v311
      %v1115 = vunpack.c.l.b16 %v312
      %v1116 = vunpack.c.h.b16 %v312
      %v1117 = vunpack.c.l.b16 %v313
      %v1118 = vunpack.c.h.b16 %v313
      %v1119 = vunpack.c.l.b16 %v314
      %v1120 = vunpack.c.l.b16 %v315
      %v1121 = vunpack.c.h.b16 %v315
      %v1122 = vunpack.c.l.b16 %v316
      %v1123 = vunpack.c.h.b16 %v316
      %v1124 = vunpack.c.l.b16 %v317
      %v1125 = vunpack.c.h.b16 %v317
      %v1126 = vunpack.c.l.b16 %v318
      %v1127 = vunpack.c.h.b16 %v318
      %v1128 = vunpack.c.l.b16 %v319
      %v1129 = vunpack.c.l.b16 %v320
      %v1130 = vunpack.c.h.b16 %v320
      %v1131 = vunpack.c.l.b16 %v321
      %v1132 = vunpack.c.h.b16 %v321
      %v1133 = vunpack.c.l.b16 %v322
      %v1134 = vunpack.c.h.b16 %v322
      %v1135 = vunpack.c.l.b16 %v323
      %v1136 = vunpack.c.h.b16 %v323
      %v1137 = vunpack.c.l.b16 %v324
      %v1138 = vunpack.c.l.b16 %v325
      %v1139 = vunpack.c.h.b16 %v325
      %v1140 = vunpack.c.l.b16 %v326
      %v1141 = vunpack.c.h.b16 %v326
      %v1142 = vunpack.c.l.b16 %v327
      %v1143 = vunpack.c.h.b16 %v327
      %v1144 = vunpack.c.l.b16 %v328
      %v1145 = vunpack.c.h.b16 %v328
      %v1146 = vunpack.c.l.b16 %v329
      %v1147 = vunpack.c.l.b16 %v330
      %v1148 = vunpack.c.h.b16 %v330
      %v1149 = vunpack.c.l.b16 %v331
      %v1150 = vunpack.c.h.b16 %v331
      %v1151 = vunpack.c.l.b16 %v332
      %v1152 = vunpack.c.h.b16 %v332
      %v1153 = vunpack.c.l.b16 %v333
      %v1154 = vunpack.c.h.b16 %v333
      %v1155 = vunpack.c.l.b16 %v334
      %v1156 = vunpack.c.l.b16 %v335
      %v1157 = vunpack.c.h.b16 %v335
      %v1158 = vunpack.c.l.b16 %v336
      %v1159 = vunpack.c.h.b16 %v336
      %v1160 = vunpack.c.l.b16 %v337
      %v1161 = vunpack.c.h.b16 %v337
      %v1162 = vunpack.c.l.b16 %v338
      %v1163 = vunpack.c.h.b16 %v338
      %v1164 = vunpack.c.l.b16 %v339
      %v1165 = vunpack.c.l.b16 %v340
      %v1166 = vunpack.c.h.b16 %v340
      %v1167 = vunpack.c.l.b16 %v341
      %v1168 = vunpack.c.h.b16 %v341
      %v1169 = vunpack.c.l.b16 %v342
      %v1170 = vunpack.c.h.b16 %v342
      %v1171 = vunpack.c.l.b16 %v343
      %v1172 = vunpack.c.h.b16 %v343
      %v1173 = vunpack.c.l.b16 %v344
      %v1174 = vunpack.c.l.b16 %v345
      %v1175 = vunpack.c.h.b16 %v345
      %v1176 = vunpack.c.l.b16 %v346
      %v1177 = vunpack.c.h.b16 %v346
      %v1178 = vunpack.c.l.b16 %v347
      %v1179 = vunpack.c.h.b16 %v347
      %v1180 = vunpack.c.l.b16 %v348
      %v1181 = vunpack.c.h.b16 %v348
      %v1182 = vunpack.c.l.b16 %v349
      %v1183 = vunpack.c.l.b16 %v350
      %v1184 = vunpack.c.h.b16 %v350
      %v1185 = vunpack.c.l.b16 %v351
      %v1186 = vunpack.c.h.b16 %v351
      %v1187 = vunpack.c.l.b16 %v352
      %v1188 = vunpack.c.h.b16 %v352
      %v1189 = vunpack.c.l.b16 %v353
      %v1190 = vunpack.c.h.b16 %v353
      %v1191 = vunpack.c.l.b16 %v354
      %v1192 = vunpack.c.l.b16 %v355
      %v1193 = vunpack.c.h.b16 %v355
      %v1194 = vunpack.c.l.b16 %v356
      %v1195 = vunpack.c.h.b16 %v356
      %v1196 = vunpack.c.l.b16 %v357
      %v1197 = vunpack.c.h.b16 %v357
      %v1198 = vunpack.c.l.b16 %v358
      %v1199 = vunpack.c.h.b16 %v358
      %v1200 = vunpack.c.l.b16 %v359
      %v1201 = vunpack.c.l.b16 %v360
      %v1202 = vunpack.c.h.b16 %v360
      %v1203 = vunpack.c.l.b16 %v361
      %v1204 = vunpack.c.h.b16 %v361
      %v1205 = vunpack.c.l.b16 %v362
      %v1206 = vunpack.c.h.b16 %v362
      %v1207 = vunpack.c.l.b16 %v363
      %v1208 = vunpack.c.h.b16 %v363
      %v1209 = vunpack.c.l.b16 %v364
      %v1210 = vunpack.c.l.b16 %v365
      %v1211 = vunpack.c.h.b16 %v365
      %v1212 = vunpack.c.l.b16 %v366
      %v1213 = vunpack.c.h.b16 %v366
      %v1214 = vunpack.c.l.b16 %v367
      %v1215 = vunpack.c.h.b16 %v367
      %v1216 = vunpack.c.l.b16 %v368
      %v1217 = vunpack.c.h.b16 %v368
      %v1218 = vunpack.c.l.b16 %v369
      %v1219 = vunpack.c.l.b16 %v370
      %v1220 = vunpack.c.h.b16 %v370
      %v1221 = vunpack.c.l.b16 %v371
      %v1222 = vunpack.c.h.b16 %v371
      %v1223 = vunpack.c.l.b16 %v372
      %v1224 = vunpack.c.h.b16 %v372
      %v1225 = vunpack.c.l.b16 %v373
      %v1226 = vunpack.c.h.b16 %v373
      %v1227 = vunpack.c.l.b16 %v374
      %v1228 = vunpack.c.l.b16 %v375
      %v1229 = vunpack.c.h.b16 %v375
      %v1230 = vunpack.c.l.b16 %v376
      %v1231 = vunpack.c.h.b16 %v376
      %v1232 = vunpack.c.l.b16 %v377
      %v1233 = vunpack.c.h.b16 %v377
      %v1234 = vunpack.c.l.b16 %v378
      %v1235 = vunpack.c.h.b16 %v378
      %v1236 = vunpack.c.l.b16 %v379
      %v1237 = vunpack.c.l.b16 %v380
      %v1238 = vunpack.c.h.b16 %v380
      %v1239 = vunpack.c.l.b16 %v381
      %v1240 = vunpack.c.h.b16 %v381
      %v1241 = vunpack.c.l.b16 %v382
      %v1242 = vunpack.c.h.b16 %v382
      %v1243 = vunpack.c.l.b16 %v383
      %v1244 = vunpack.c.h.b16 %v383
      %v1245 = vunpack.c.l.b16 %v384
      %v1246 = vunpack.c.l.b16 %v385
      %v1247 = vunpack.c.h.b16 %v385
      %v1248 = vunpack.c.l.b16 %v386
      %v1249 = vunpack.c.h.b16 %v386
      %v1250 = vunpack.c.l.b16 %v387
      %v1251 = vunpack.c.h.b16 %v387
      %v1252 = vunpack.c.l.b16 %v388
      %v1253 = vunpack.c.h.b16 %v388
      %v1254 = vunpack.c.l.b16 %v389
      %v1255 = vunpack.c.l.b16 %v390
      %v1256 = vunpack.c.h.b16 %v390
      %v1257 = vunpack.c.l.b16 %v391
      %v1258 = vunpack.c.h.b16 %v391
      %v1259 = vunpack.c.l.b16 %v392
      %v1260 = vunpack.c.h.b16 %v392
      %v1261 = vunpack.c.l.b16 %v393
      %v1262 = vunpack.c.h.b16 %v393
      %v1263 = vunpack.c.l.b16 %v394
      %v1264 = vunpack.c.l.b16 %v395
      %v1265 = vunpack.c.h.b16 %v395
      %v1266 = vunpack.c.l.b16 %v396
      %v1267 = vunpack.c.h.b16 %v396
      %v1268 = vunpack.c.l.b16 %v397
      %v1269 = vunpack.c.h.b16 %v397
      %v1270 = vunpack.c.l.b16 %v398
      %v1271 = vunpack.c.h.b16 %v398
      %v1272 = vunpack.c.l.b16 %v399
      %v1273 = vunpack.c.l.b16 %v400
      %v1274 = vunpack.c.h.b16 %v400
      %v1275 = vunpack.c.l.b16 %v401
      %v1276 = vunpack.c.h.b16 %v401
      %v1277 = vunpack.c.l.b16 %v402
      %v1278 = vunpack.c.h.b16 %v402
      %v1279 = vunpack.c.l.b16 %v403
      %v1280 = vunpack.c.h.b16 %v403
      %v1281 = vunpack.c.l.b16 %v404
      %v1282 = vunpack.c.l.b16 %v405
      %v1283 = vunpack.c.h.b16 %v405
      %v1284 = vunpack.c.l.b16 %v406
      %v1285 = vunpack.c.h.b16 %v406
      %v1286 = vunpack.c.l.b16 %v407
      %v1287 = vunpack.c.h.b16 %v407
      %v1288 = vunpack.c.l.b16 %v408
      %v1289 = vunpack.c.h.b16 %v408
      %v1290 = vunpack.c.l.b16 %v409
      %v1291 = vunpack.c.l.b16 %v410
      %v1292 = vunpack.c.h.b16 %v410
      %v1293 = vunpack.c.l.b16 %v411
      %v1294 = vunpack.c.h.b16 %v411
      %v1295 = vunpack.c.l.b16 %v412
      %v1296 = vunpack.c.h.b16 %v412
      %v1297 = vunpack.c.l.b16 %v413
      %v1298 = vunpack.c.h.b16 %v413
      %v1299 = vunpack.c.l.b16 %v414
      %v1300 = vunpack.c.l.b16 %v415
      %v1301 = vunpack.c.h.b16 %v415
      %v1302 = vunpack.c.l.b16 %v416
      %v1303 = vunpack.c.h.b16 %v416
      %v1304 = vunpack.c.l.b16 %v417
      %v1305 = vunpack.c.h.b16 %v417
      %v1306 = vunpack.c.l.b16 %v418
      %v1307 = vunpack.c.h.b16 %v418
      %v1308 = vunpack.c.l.b16 %v419
      %v1309 = vunpack.c.l.b16 %v420
      %v1310 = vunpack.c.h.b16 %v420
      %v1311 = vunpack.c.l.b16 %v421
      %v1312 = vunpack.c.h.b16 %v421
      %v1313 = vunpack.c.l.b16 %v422
      %v1314 = vunpack.c.h.b16 %v422
      %v1315 = vunpack.c.l.b16 %v423
      %v1316 = vunpack.c.h.b16 %v423
      %v1317 = vunpack.c.l.b16 %v424
      %v1318 = vunpack.c.l.b16 %v425
      %v1319 = vunpack.c.h.b16 %v425
      %v1320 = vunpack.c.l.b16 %v426
      %v1321 = vunpack.c.h.b16 %v426
      %v1322 = vunpack.c.l.b16 %v427
      %v1323 = vunpack.c.h.b16 %v427
      %v1324 = vunpack.c.l.b16 %v428
      %v1325 = vunpack.c.h.b16 %v428
      %v1326 = vunpack.c.l.b16 %v429
      %v1327 = vunpack.c.l.b16 %v430
      %v1328 = vunpack.c.h.b16 %v430
      %v1329 = vunpack.c.l.b16 %v431
      %v1330 = vunpack.c.h.b16 %v431
      %v1331 = vunpack.c.l.b16 %v432
      %v1332 = vunpack.c.h.b16 %v432
      %v1333 = vunpack.c.l.b16 %v433
      %v1334 = vunpack.c.h.b16 %v433
      %v1335 = vunpack.c.l.b16 %v434
      %v1336 = vunpack.c.l.b16 %v435
      %v1337 = vunpack.c.h.b16 %v435
      %v1338 = vunpack.c.l.b16 %v436
      %v1339 = vunpack.c.h.b16 %v436
      %v1340 = vunpack.c.l.b16 %v437
      %v1341 = vunpack.c.h.b16 %v437
      %v1342 = vunpack.c.l.b16 %v438
      %v1343 = vunpack.c.h.b16 %v438
      %v1344 = vunpack.c.l.b16 %v439
      %v1345 = vunpack.c.l.b16 %v440
      %v1346 = vunpack.c.h.b16 %v440
      %v1347 = vunpack.c.l.b16 %v441
      %v1348 = vunpack.c.h.b16 %v441
      %v1349 = vunpack.c.l.b16 %v442
      %v1350 = vunpack.c.h.b16 %v442
      %v1351 = vunpack.c.l.b16 %v443
      %v1352 = vunpack.c.h.b16 %v443
      %v1353 = vunpack.c.l.b16 %v444
      %v1354 = vunpack.c.l.b16 %v445
      %v1355 = vunpack.c.h.b16 %v445
      %v1356 = vunpack.c.l.b16 %v446
      %v1357 = vunpack.c.h.b16 %v446
      %v1358 = vunpack.c.l.b16 %v447
      %v1359 = vunpack.c.h.b16 %v447
      %v1360 = vunpack.c.l.b16 %v448
      %v1361 = vunpack.c.h.b16 %v448
      %v1362 = vunpack.c.l.b16 %v449
      %v1363 = vunpack.c.l.b16 %v450
      %v1364 = vunpack.c.h.b16 %v450
      %v1365 = vunpack.c.l.b16 %v451
      %v1366 = vunpack.c.h.b16 %v451
      %v1367 = vunpack.c.l.b16 %v452
      %v1368 = vunpack.c.h.b16 %v452
      %v1369 = vunpack.c.l.b16 %v453
      %v1370 = vunpack.c.h.b16 %v453
      %v1371 = vunpack.c.l.b16 %v454
      %v1372 = vunpack.c.l.b16 %v455
      %v1373 = vunpack.c.h.b16 %v455
      %v1374 = vunpack.c.l.b16 %v456
      %v1375 = vunpack.c.h.b16 %v456
      %v1376 = vunpack.c.l.b16 %v457
      %v1377 = vunpack.c.h.b16 %v457
      %v1378 = vunpack.c.l.b16 %v458
      %v1379 = vunpack.c.h.b16 %v458
      %v1380 = vunpack.c.l.b16 %v459
      %v1381 = vunpack.c.l.b16 %v460
      %v1382 = vunpack.c.h.b16 %v460
      %v1383 = vunpack.c.l.b16 %v461
      %v1384 = vunpack.c.h.b16 %v461
      %v1385 = vunpack.c.l.b16 %v462
      %v1386 = vunpack.c.h.b16 %v462
      %v1387 = vunpack.c.l.b16 %v463
      %v1388 = vunpack.c.h.b16 %v463
      %v1389 = vunpack.c.l.b16 %v464
      %v1390 = vunpack.c.l.b16 %v465
      %v1391 = vunpack.c.h.b16 %v465
      %v1392 = vunpack.c.l.b16 %v466
      %v1393 = vunpack.c.h.b16 %v466
      %v1394 = vunpack.c.l.b16 %v467
      %v1395 = vunpack.c.h.b16 %v467
      %v1396 = vunpack.c.l.b16 %v468
      %v1397 = vunpack.c.h.b16 %v468
      %v1398 = vunpack.c.l.b16 %v469
      %v1399 = vunpack.c.l.b16 %v470
      %v1400 = vunpack.c.h.b16 %v470
      %v1401 = vunpack.c.l.b16 %v471
      %v1402 = vunpack.c.h.b16 %v471
      %v1403 = vunpack.c.l.b16 %v472
      %v1404 = vunpack.c.h.b16 %v472
      %v1405 = vunpack.c.l.b16 %v473
      %v1406 = vunpack.c.h.b16 %v473
      %v1407 = vunpack.c.l.b16 %v474
      %v1408 = vunpack.c.l.b16 %v475
      %v1409 = vunpack.c.h.b16 %v475
      %v1410 = vunpack.c.l.b16 %v476
      %v1411 = vunpack.c.h.b16 %v476
      %v1412 = vunpack.c.l.b16 %v477
      %v1413 = vunpack.c.h.b16 %v477
      %v1414 = vunpack.c.l.b16 %v478
      %v1415 = vunpack.c.h.b16 %v478
      %v1416 = vunpack.c.l.b16 %v479
      %v1417 = vunpack.c.l.b16 %v480
      %v1418 = vunpack.c.h.b16 %v480
      %v1419 = vunpack.c.l.b16 %v481
      %v1420 = vunpack.c.h.b16 %v481
      %v1421 = vunpack.c.l.b16 %v482
      %v1422 = vunpack.c.h.b16 %v482
      %v1423 = vunpack.c.l.b16 %v483
      %v1424 = vunpack.c.h.b16 %v483
      %v1425 = vunpack.c.l.b16 %v484
      %v1426 = vunpack.c.l.b16 %v485
      %v1427 = vunpack.c.h.b16 %v485
      %v1428 = vunpack.c.l.b16 %v486
      %v1429 = vunpack.c.h.b16 %v486
      %v1430 = vunpack.c.l.b16 %v487
      %v1431 = vunpack.c.h.b16 %v487
      %v1432 = vunpack.c.l.b16 %v488
      %v1433 = vunpack.c.h.b16 %v488
      %v1434 = vunpack.c.l.b16 %v489
      %v1435 = vunpack.c.l.b16 %v490
      %v1436 = vunpack.c.h.b16 %v490
      %v1437 = vunpack.c.l.b16 %v491
      %v1438 = vunpack.c.h.b16 %v491
      %v1439 = vunpack.c.l.b16 %v492
      %v1440 = vunpack.c.h.b16 %v492
      %v1441 = vunpack.c.l.b16 %v493
      %v1442 = vunpack.c.h.b16 %v493
      %v1443 = vunpack.c.l.b16 %v494
      %v1444 = vunpack.c.l.b16 %v495
      %v1445 = vunpack.c.h.b16 %v495
      %v1446 = vunpack.c.l.b16 %v496
      %v1447 = vunpack.c.h.b16 %v496
      %v1448 = vunpack.c.l.b16 %v497
      %v1449 = vunpack.c.h.b16 %v497
      %v1450 = vunpack.c.l.b16 %v498
      %v1451 = vunpack.c.h.b16 %v498
      %v1452 = vunpack.c.l.b16 %v499
      %v1453 = vunpack.c.l.b16 %v500
      %v1454 = vunpack.c.h.b16 %v500
      %v1455 = vunpack.c.l.b16 %v501
      %v1456 = vunpack.c.h.b16 %v501
      %v1457 = vunpack.c.l.b16 %v502
      %v1458 = vunpack.c.h.b16 %v502
      %v1459 = vunpack.c.l.b16 %v503
      %v1460 = vunpack.c.h.b16 %v503
      %v1461 = vunpack.c.l.b16 %v504
      %v1462 = vunpack.c.l.b16 %v505
      %v1463 = vunpack.c.h.b16 %v505
      %v1464 = vunpack.c.l.b16 %v506
      %v1465 = vunpack.c.h.b16 %v506
      %v1466 = vunpack.c.l.b16 %v507
      %v1467 = vunpack.c.h.b16 %v507
      %v1468 = vunpack.c.l.b16 %v508
      %v1469 = vunpack.c.h.b16 %v508
      %v1470 = vunpack.c.l.b16 %v509
      %v1471 = vunpack.c.l.b16 %v510
      %v1472 = vunpack.c.h.b16 %v510
      %v1473 = vunpack.c.l.b16 %v511
      %v1474 = vunpack.c.h.b16 %v511
      %v1475 = vunpack.c.l.b16 %v512
      %v1476 = vunpack.c.h.b16 %v512
      %v1477 = vunpack.c.l.b16 %v513
      %v1478 = vunpack.c.h.b16 %v513
      %v1479 = vunpack.c.l.b16 %v514
      %v1480 = vunpack.c.l.b16 %v515
      %v1481 = vunpack.c.h.b16 %v515
      %v1482 = vunpack.c.l.b16 %v516
      %v1483 = vunpack.c.h.b16 %v516
      %v1484 = vunpack.c.l.b16 %v517
      %v1485 = vunpack.c.h.b16 %v517
      %v1486 = vunpack.c.l.b16 %v518
      %v1487 = vunpack.c.h.b16 %v518
      %v1488 = vunpack.c.l.b16 %v519
      %v1489 = vunpack.c.l.b16 %v520
      %v1490 = vunpack.c.h.b16 %v520
      %v1491 = vunpack.c.l.b16 %v521
      %v1492 = vunpack.c.h.b16 %v521
      %v1493 = vunpack.c.l.b16 %v522
      %v1494 = vunpack.c.h.b16 %v522
      %v1495 = vunpack.c.l.b16 %v523
      %v1496 = vunpack.c.h.b16 %v523
      %v1497 = vunpack.c.l.b16 %v524
      %v1498 = vunpack.c.l.b16 %v525
      %v1499 = vunpack.c.h.b16 %v525
      %v1500 = vunpack.c.l.b16 %v526
      %v1501 = vunpack.c.h.b16 %v526
      %v1502 = vunpack.c.l.b16 %v527
      %v1503 = vunpack.c.h.b16 %v527
      %v1504 = vunpack.c.l.b16 %v528
      %v1505 = vunpack.c.h.b16 %v528
      %v1506 = vunpack.c.l.b16 %v529
      %v1507 = vunpack.c.l.b16 %v530
      %v1508 = vunpack.c.h.b16 %v530
      %v1509 = vunpack.c.l.b16 %v531
      %v1510 = vunpack.c.h.b16 %v531
      %v1511 = vunpack.c.l.b16 %v532
      %v1512 = vunpack.c.h.b16 %v532
      %v1513 = vunpack.c.l.b16 %v533
      %v1514 = vunpack.c.h.b16 %v533
      %v1515 = vunpack.c.l.b16 %v534
      %v1516 = vunpack.c.l.b16 %v535
      %v1517 = vunpack.c.h.b16 %v535
      %v1518 = vunpack.c.l.b16 %v536
      %v1519 = vunpack.c.h.b16 %v536
      %v1520 = vunpack.c.l.b16 %v537
      %v1521 = vunpack.c.h.b16 %v537
      %v1522 = vunpack.c.l.b16 %v538
      %v1523 = vunpack.c.h.b16 %v538
      %v1524 = vunpack.c.l.b16 %v539
      %v1525 = vunpack.c.l.b16 %v540
      %v1526 = vunpack.c.h.b16 %v540
      %v1527 = vunpack.c.l.b16 %v541
      %v1528 = vunpack.c.h.b16 %v541
      %v1529 = vunpack.c.l.b16 %v542
      %v1530 = vunpack.c.h.b16 %v542
      %v1531 = vunpack.c.l.b16 %v543
      %v1532 = vunpack.c.h.b16 %v543
      %v1533 = vunpack.c.l.b16 %v544
      %v1534 = vunpack.c.l.b16 %v545
      %v1535 = vunpack.c.h.b16 %v545
      %v1536 = vunpack.c.l.b16 %v546
      %v1537 = vunpack.c.h.b16 %v546
      %v1538 = vunpack.c.l.b16 %v547
      %v1539 = vunpack.c.h.b16 %v547
      %v1540 = vunpack.c.l.b16 %v548
      %v1541 = vunpack.c.h.b16 %v548
      %v1542 = vunpack.c.l.b16 %v549
      %v1543 = vunpack.c.l.b16 %v550
      %v1544 = vunpack.c.h.b16 %v550
      %v1545 = vunpack.c.l.b16 %v551
      %v1546 = vunpack.c.h.b16 %v551
      %v1547 = vunpack.c.l.b16 %v552
      %v1548 = vunpack.c.h.b16 %v552
      %v1549 = vunpack.c.l.b16 %v553
      %v1550 = vunpack.c.h.b16 %v553
      %v1551 = vunpack.c.l.b16 %v554
      %v1552 = vunpack.c.l.b16 %v555
      %v1553 = vunpack.c.h.b16 %v555
      %v1554 = vunpack.c.l.b16 %v556
      %v1555 = vunpack.c.h.b16 %v556
      %v1556 = vunpack.c.l.b16 %v557
      %v1557 = vunpack.c.h.b16 %v557
      %v1558 = vunpack.c.l.b16 %v558
      %v1559 = vunpack.c.h.b16 %v558
      %v1560 = vunpack.c.l.b16 %v559
      %v1561 = vunpack.c.l.b16 %v560
      %v1562 = vunpack.c.h.b16 %v560
      %v1563 = vunpack.c.l.b16 %v561
      %v1564 = vunpack.c.h.b16 %v561
      %v1565 = vunpack.c.l.b16 %v562
      %v1566 = vunpack.c.h.b16 %v562
      %v1567 = vunpack.c.l.b16 %v563
      %v1568 = vunpack.c.h.b16 %v563
      %v1569 = vunpack.c.l.b16 %v564
      %v1570 = vunpack.c.l.b16 %v565
      %v1571 = vunpack.c.h.b16 %v565
      %v1572 = vunpack.c.l.b16 %v566
      %v1573 = vunpack.c.h.b16 %v566
      %v1574 = vunpack.c.l.b16 %v567
      %v1575 = vunpack.c.h.b16 %v567
      %v1576 = vunpack.c.l.b16 %v568
      %v1577 = vunpack.c.h.b16 %v568
      %v1578 = vunpack.c.l.b16 %v569
      %v1579 = vunpack.c.l.b16 %v570
      %v1580 = vunpack.c.h.b16 %v570
      %v1581 = vunpack.c.l.b16 %v571
      %v1582 = vunpack.c.h.b16 %v571
      %v1583 = vunpack.c.l.b16 %v572
      %v1584 = vunpack.c.h.b16 %v572
      %v1585 = vunpack.c.l.b16 %v573
      %v1586 = vunpack.c.h.b16 %v573
      %v1587 = vunpack.c.l.b16 %v574
      %v1588 = vunpack.c.l.b16 %v575
      %v1589 = vunpack.c.h.b16 %v575
      %v1590 = vunpack.c.l.b16 %v576
      %v1591 = vunpack.c.h.b16 %v576
      %v1592 = vunpack.c.l.b16 %v577
      %v1593 = vunpack.c.h.b16 %v577
      %v1594 = vunpack.c.l.b16 %v578
      %v1595 = vunpack.c.h.b16 %v578
      %v1596 = vunpack.c.l.b16 %v579
      %v1597 = vunpack.c.l.b16 %v580
      %v1598 = vunpack.c.h.b16 %v580
      %v1599 = vunpack.c.l.b16 %v581
      %v1600 = vunpack.c.h.b16 %v581
      %v1601 = vunpack.c.l.b16 %v582
      %v1602 = vunpack.c.h.b16 %v582
      %v1603 = vunpack.c.l.b16 %v583
      %v1604 = vunpack.c.h.b16 %v583
      %v1605 = vunpack.c.l.b16 %v584
      %v1606 = vunpack.c.l.b16 %v585
      %v1607 = vunpack.c.h.b16 %v585
      %v1608 = vunpack.c.l.b16 %v586
      %v1609 = vunpack.c.h.b16 %v586
      %v1610 = vunpack.c.l.b16 %v587
      %v1611 = vunpack.c.h.b16 %v587
      %v1612 = vunpack.c.l.b16 %v588
      %v1613 = vunpack.c.h.b16 %v588
      %v1614 = vunpack.c.l.b16 %v589
      %v1615 = vpack.c.b16 %v1048, %v1039
      %v1616 = vpack.c.b16 %v1049, %v1040
      %v1617 = vpack.c.b16 %v1050, %v1041
      %v1618 = vpack.c.b16 %v1051, %v1042
      %v1619 = vpack.c.b16 %v1052, %v1043
      %v1620 = vpack.c.b16 %v1053, %v1044
      %v1621 = vpack.c.b16 %v1054, %v1045
      %v1622 = vpack.c.b16 %v1055, %v1046
      %v1623 = vpack.c.b16 %v1056, %v1047
      %v1624 = vpack.c.b16 %v1066, %v1057
      %v1625 = vpack.c.b16 %v1067, %v1058
      %v1626 = vpack.c.b16 %v1068, %v1059
      %v1627 = vpack.c.b16 %v1069, %v1060
      %v1628 = vpack.c.b16 %v1070, %v1061
      %v1629 = vpack.c.b16 %v1071, %v1062
      %v1630 = vpack.c.b16 %v1072, %v1063
      %v1631 = vpack.c.b16 %v1073, %v1064
      %v1632 = vpack.c.b16 %v1074, %v1065
      %v1633 = vpack.c.b16 %v1084, %v1075
      %v1634 = vpack.c.b16 %v1085, %v1076
      %v1635 = vpack.c.b16 %v1086, %v1077
      %v1636 = vpack.c.b16 %v1087, %v1078
      %v1637 = vpack.c.b16 %v1088, %v1079
      %v1638 = vpack.c.b16 %v1089, %v1080
      %v1639 = vpack.c.b16 %v1090, %v1081
      %v1640 = vpack.c.b16 %v1091, %v1082
      %v1641 = vpack.c.b16 %v1092, %v1083
      %v1642 = vpack.c.b16 %v1102, %v1093
      %v1643 = vpack.c.b16 %v1103, %v1094
      %v1644 = vpack.c.b16 %v1104, %v1095
      %v1645 = vpack.c.b16 %v1105, %v1096
      %v1646 = vpack.c.b16 %v1106, %v1097
      %v1647 = vpack.c.b16 %v1107, %v1098
      %v1648 = vpack.c.b16 %v1108, %v1099
      %v1649 = vpack.c.b16 %v1109, %v1100
      %v1650 = vpack.c.b16 %v1110, %v1101
      %v1651 = vpack.c.b16 %v1120, %v1111
      %v1652 = vpack.c.b16 %v1121, %v1112
      %v1653 = vpack.c.b16 %v1122, %v1113
      %v1654 = vpack.c.b16 %v1123, %v1114
      %v1655 = vpack.c.b16 %v1124, %v1115
      %v1656 = vpack.c.b16 %v1125, %v1116
      %v1657 = vpack.c.b16 %v1126, %v1117
      %v1658 = vpack.c.b16 %v1127, %v1118
      %v1659 = vpack.c.b16 %v1128, %v1119
      %v1660 = vpack.c.b16 %v1138, %v1129
      %v1661 = vpack.c.b16 %v1139, %v1130
      %v1662 = vpack.c.b16 %v1140, %v1131
      %v1663 = vpack.c.b16 %v1141, %v1132
      %v1664 = vpack.c.b16 %v1142, %v1133
      %v1665 = vpack.c.b16 %v1143, %v1134
      %v1666 = vpack.c.b16 %v1144, %v1135
      %v1667 = vpack.c.b16 %v1145, %v1136
      %v1668 = vpack.c.b16 %v1146, %v1137
      %v1669 = vpack.c.b16 %v1156, %v1147
      %v1670 = vpack.c.b16 %v1157, %v1148
      %v1671 = vpack.c.b16 %v1158, %v1149
      %v1672 = vpack.c.b16 %v1159, %v1150
      %v1673 = vpack.c.b16 %v1160, %v1151
      %v1674 = vpack.c.b16 %v1161, %v1152
      %v1675 = vpack.c.b16 %v1162, %v1153
      %v1676 = vpack.c.b16 %v1163, %v1154
      %v1677 = vpack.c.b16 %v1164, %v1155
      %v1678 = vpack.c.b16 %v1174, %v1165
      %v1679 = vpack.c.b16 %v1175, %v1166
      %v1680 = vpack.c.b16 %v1176, %v1167
      %v1681 = vpack.c.b16 %v1177, %v1168
      %v1682 = vpack.c.b16 %v1178, %v1169
      %v1683 = vpack.c.b16 %v1179, %v1170
      %v1684 = vpack.c.b16 %v1180, %v1171
      %v1685 = vpack.c.b16 %v1181, %v1172
      %v1686 = vpack.c.b16 %v1182, %v1173
      %v1687 = vpack.c.b16 %v1192, %v1183
      %v1688 = vpack.c.b16 %v1193, %v1184
      %v1689 = vpack.c.b16 %v1194, %v1185
      %v1690 = vpack.c.b16 %v1195, %v1186
      %v1691 = vpack.c.b16 %v1196, %v1187
      %v1692 = vpack.c.b16 %v1197, %v1188
      %v1693 = vpack.c.b16 %v1198, %v1189
      %v1694 = vpack.c.b16 %v1199, %v1190
      %v1695 = vpack.c.b16 %v1200, %v1191
      %v1696 = vpack.c.b16 %v1210, %v1201
      %v1697 = vpack.c.b16 %v1211, %v1202
      %v1698 = vpack.c.b16 %v1212, %v1203
      %v1699 = vpack.c.b16 %v1213, %v1204
      %v1700 = vpack.c.b16 %v1214, %v1205
      %v1701 = vpack.c.b16 %v1215, %v1206
      %v1702 = vpack.c.b16 %v1216, %v1207
      %v1703 = vpack.c.b16 %v1217, %v1208
      %v1704 = vpack.c.b16 %v1218, %v1209
      %v1705 = vpack.c.b16 %v1228, %v1219
      %v1706 = vpack.c.b16 %v1229, %v1220
      %v1707 = vpack.c.b16 %v1230, %v1221
      %v1708 = vpack.c.b16 %v1231, %v1222
      %v1709 = vpack.c.b16 %v1232, %v1223
      %v1710 = vpack.c.b16 %v1233, %v1224
      %v1711 = vpack.c.b16 %v1234, %v1225
      %v1712 = vpack.c.b16 %v1235, %v1226
      %v1713 = vpack.c.b16 %v1236, %v1227
      %v1714 = vpack.c.b16 %v1246, %v1237
      %v1715 = vpack.c.b16 %v1247, %v1238
      %v1716 = vpack.c.b16 %v1248, %v1239
      %v1717 = vpack.c.b16 %v1249, %v1240
      %v1718 = vpack.c.b16 %v1250, %v1241
      %v1719 = vpack.c.b16 %v1251, %v1242
      %v1720 = vpack.c.b16 %v1252, %v1243
      %v1721 = vpack.c.b16 %v1253, %v1244
      %v1722 = vpack.c.b16 %v1254, %v1245
      %v1723 = vpack.c.b16 %v1264, %v1255
      %v1724 = vpack.c.b16 %v1265, %v1256
      %v1725 = vpack.c.b16 %v1266, %v1257
      %v1726 = vpack.c.b16 %v1267, %v1258
      %v1727 = vpack.c.b16 %v1268, %v1259
      %v1728 = vpack.c.b16 %v1269, %v1260
      %v1729 = vpack.c.b16 %v1270, %v1261
      %v1730 = vpack.c.b16 %v1271, %v1262
      %v1731 = vpack.c.b16 %v1272, %v1263
      %v1732 = vpack.c.b16 %v1282, %v1273
      %v1733 = vpack.c.b16 %v1283, %v1274
      %v1734 = vpack.c.b16 %v1284, %v1275
      %v1735 = vpack.c.b16 %v1285, %v1276
      %v1736 = vpack.c.b16 %v1286, %v1277
      %v1737 = vpack.c.b16 %v1287, %v1278
      %v1738 = vpack.c.b16 %v1288, %v1279
      %v1739 = vpack.c.b16 %v1289, %v1280
      %v1740 = vpack.c.b16 %v1290, %v1281
      %v1741 = vpack.c.b16 %v1300, %v1291
      %v1742 = vpack.c.b16 %v1301, %v1292
      %v1743 = vpack.c.b16 %v1302, %v1293
      %v1744 = vpack.c.b16 %v1303, %v1294
      %v1745 = vpack.c.b16 %v1304, %v1295
      %v1746 = vpack.c.b16 %v1305, %v1296
      %v1747 = vpack.c.b16 %v1306, %v1297
      %v1748 = vpack.c.b16 %v1307, %v1298
      %v1749 = vpack.c.b16 %v1308, %v1299
      %v1750 = vpack.c.b16 %v1318, %v1309
      %v1751 = vpack.c.b16 %v1319, %v1310
      %v1752 = vpack.c.b16 %v1320, %v1311
      %v1753 = vpack.c.b16 %v1321, %v1312
      %v1754 = vpack.c.b16 %v1322, %v1313
      %v1755 = vpack.c.b16 %v1323, %v1314
      %v1756 = vpack.c.b16 %v1324, %v1315
      %v1757 = vpack.c.b16 %v1325, %v1316
      %v1758 = vpack.c.b16 %v1326, %v1317
      %v1759 = vpack.c.b16 %v1336, %v1327
      %v1760 = vpack.c.b16 %v1337, %v1328
      %v1761 = vpack.c.b16 %v1338, %v1329
      %v1762 = vpack.c.b16 %v1339, %v1330
      %v1763 = vpack.c.b16 %v1340, %v1331
      %v1764 = vpack.c.b16 %v1341, %v1332
      %v1765 = vpack.c.b16 %v1342, %v1333
      %v1766 = vpack.c.b16 %v1343, %v1334
      %v1767 = vpack.c.b16 %v1344, %v1335
      %v1768 = vpack.c.b16 %v1354, %v1345
      %v1769 = vpack.c.b16 %v1355, %v1346
      %v1770 = vpack.c.b16 %v1356, %v1347
      %v1771 = vpack.c.b16 %v1357, %v1348
      %v1772 = vpack.c.b16 %v1358, %v1349
      %v1773 = vpack.c.b16 %v1359, %v1350
      %v1774 = vpack.c.b16 %v1360, %v1351
      %v1775 = vpack.c.b16 %v1361, %v1352
      %v1776 = vpack.c.b16 %v1362, %v1353
      %v1777 = vpack.c.b16 %v1372, %v1363
      %v1778 = vpack.c.b16 %v1373, %v1364
      %v1779 = vpack.c.b16 %v1374, %v1365
      %v1780 = vpack.c.b16 %v1375, %v1366
      %v1781 = vpack.c.b16 %v1376, %v1367
      %v1782 = vpack.c.b16 %v1377, %v1368
      %v1783 = vpack.c.b16 %v1378, %v1369
      %v1784 = vpack.c.b16 %v1379, %v1370
      %v1785 = vpack.c.b16 %v1380, %v1371
      %v1786 = vpack.c.b16 %v1390, %v1381
      %v1787 = vpack.c.b16 %v1391, %v1382
      %v1788 = vpack.c.b16 %v1392, %v1383
      %v1789 = vpack.c.b16 %v1393, %v1384
      %v1790 = vpack.c.b16 %v1394, %v1385
      %v1791 = vpack.c.b16 %v1395, %v1386
      %v1792 = vpack.c.b16 %v1396, %v1387
      %v1793 = vpack.c.b16 %v1397, %v1388
      %v1794 = vpack.c.b16 %v1398, %v1389
      %v1795 = vpack.c.b16 %v1408, %v1399
      %v1796 = vpack.c.b16 %v1409, %v1400
      %v1797 = vpack.c.b16 %v1410, %v1401
      %v1798 = vpack.c.b16 %v1411, %v1402
      %v1799 = vpack.c.b16 %v1412, %v1403
      %v1800 = vpack.c.b16 %v1413, %v1404
      %v1801 = vpack.c.b16 %v1414, %v1405
      %v1802 = vpack.c.b16 %v1415, %v1406
      %v1803 = vpack.c.b16 %v1416, %v1407
      %v1804 = vpack.c.b16 %v1426, %v1417
      %v1805 = vpack.c.b16 %v1427, %v1418
      %v1806 = vpack.c.b16 %v1428, %v1419
      %v1807 = vpack.c.b16 %v1429, %v1420
      %v1808 = vpack.c.b16 %v1430, %v1421
      %v1809 = vpack.c.b16 %v1431, %v1422
      %v1810 = vpack.c.b16 %v1432, %v1423
      %v1811 = vpack.c.b16 %v1433, %v1424
      %v1812 = vpack.c.b16 %v1434, %v1425
      %v1813 = vpack.c.b16 %v1444, %v1435
      %v1814 = vpack.c.b16 %v1445, %v1436
      %v1815 = vpack.c.b16 %v1446, %v1437
      %v1816 = vpack.c.b16 %v1447, %v1438
      %v1817 = vpack.c.b16 %v1448, %v1439
      %v1818 = vpack.c.b16 %v1449, %v1440
      %v1819 = vpack.c.b16 %v1450, %v1441
      %v1820 = vpack.c.b16 %v1451, %v1442
      %v1821 = vpack.c.b16 %v1452, %v1443
      %v1822 = vpack.c.b16 %v1462, %v1453
      %v1823 = vpack.c.b16 %v1463, %v1454
      %v1824 = vpack.c.b16 %v1464, %v1455
      %v1825 = vpack.c.b16 %v1465, %v1456
      %v1826 = vpack.c.b16 %v1466, %v1457
      %v1827 = vpack.c.b16 %v1467, %v1458
      %v1828 = vpack.c.b16 %v1468, %v1459
      %v1829 = vpack.c.b16 %v1469, %v1460
      %v1830 = vpack.c.b16 %v1470, %v1461
      %v1831 = vpack.c.b16 %v1480, %v1471
      %v1832 = vpack.c.b16 %v1481, %v1472
      %v1833 = vpack.c.b16 %v1482, %v1473
      %v1834 = vpack.c.b16 %v1483, %v1474
      %v1835 = vpack.c.b16 %v1484, %v1475
      %v1836 = vpack.c.b16 %v1485, %v1476
      %v1837 = vpack.c.b16 %v1486, %v1477
      %v1838 = vpack.c.b16 %v1487, %v1478
      %v1839 = vpack.c.b16 %v1488, %v1479
      %v1840 = vpack.c.b16 %v1498, %v1489
      %v1841 = vpack.c.b16 %v1499, %v1490
      %v1842 = vpack.c.b16 %v1500, %v1491
      %v1843 = vpack.c.b16 %v1501, %v1492
      %v1844 = vpack.c.b16 %v1502, %v1493
      %v1845 = vpack.c.b16 %v1503, %v1494
      %v1846 = vpack.c.b16 %v1504, %v1495
      %v1847 = vpack.c.b16 %v1505, %v1496
      %v1848 = vpack.c.b16 %v1506, %v1497
      %v1849 = vpack.c.b16 %v1516, %v1507
      %v1850 = vpack.c.b16 %v1517, %v1508
      %v1851 = vpack.c.b16 %v1518, %v1509
      %v1852 = vpack.c.b16 %v1519, %v1510
      %v1853 = vpack.c.b16 %v1520, %v1511
      %v1854 = vpack.c.b16 %v1521, %v1512
      %v1855 = vpack.c.b16 %v1522, %v1513
      %v1856 = vpack.c.b16 %v1523, %v1514
      %v1857 = vpack.c.b16 %v1524, %v1515
      %v1858 = vpack.c.b16 %v1534, %v1525
      %v1859 = vpack.c.b16 %v1535, %v1526
      %v1860 = vpack.c.b16 %v1536, %v1527
      %v1861 = vpack.c.b16 %v1537, %v1528
      %v1862 = vpack.c.b16 %v1538, %v1529
      %v1863 = vpack.c.b16 %v1539, %v1530
      %v1864 = vpack.c.b16 %v1540, %v1531
      %v1865 = vpack.c.b16 %v1541, %v1532
      %v1866 = vpack.c.b16 %v1542, %v1533
      %v1867 = vpack.c.b16 %v1552, %v1543
      %v1868 = vpack.c.b16 %v1553, %v1544
      %v1869 = vpack.c.b16 %v1554, %v1545
      %v1870 = vpack.c.b16 %v1555, %v1546
      %v1871 = vpack.c.b16 %v1556, %v1547
      %v1872 = vpack.c.b16 %v1557, %v1548
      %v1873 = vpack.c.b16 %v1558, %v1549
      %v1874 = vpack.c.b16 %v1559, %v1550
      %v1875 = vpack.c.b16 %v1560, %v1551
      %v1876 = vpack.c.b16 %v1570, %v1561
      %v1877 = vpack.c.b16 %v1571, %v1562
      %v1878 = vpack.c.b16 %v1572, %v1563
      %v1879 = vpack.c.b16 %v1573, %v1564
      %v1880 = vpack.c.b16 %v1574, %v1565
      %v1881 = vpack.c.b16 %v1575, %v1566
      %v1882 = vpack.c.b16 %v1576, %v1567
      %v1883 = vpack.c.b16 %v1577, %v1568
      %v1884 = vpack.c.b16 %v1578, %v1569
      %v1885 = vpack.c.b16 %v1588, %v1579
      %v1886 = vpack.c.b16 %v1589, %v1580
      %v1887 = vpack.c.b16 %v1590, %v1581
      %v1888 = vpack.c.b16 %v1591, %v1582
      %v1889 = vpack.c.b16 %v1592, %v1583
      %v1890 = vpack.c.b16 %v1593, %v1584
      %v1891 = vpack.c.b16 %v1594, %v1585
      %v1892 = vpack.c.b16 %v1595, %v1586
      %v1893 = vpack.c.b16 %v1596, %v1587
      %v1894 = vpack.c.b16 %v1606, %v1597
      %v1895 = vpack.c.b16 %v1607, %v1598
      %v1896 = vpack.c.b16 %v1608, %v1599
      %v1897 = vpack.c.b16 %v1609, %v1600
      %v1898 = vpack.c.b16 %v1610, %v1601
      %v1899 = vpack.c.b16 %v1611, %v1602
      %v1900 = vpack.c.b16 %v1612, %v1603
      %v1901 = vpack.c.b16 %v1613, %v1604
      %v1902 = vpack.c.b16 %v1614, %v1605
      %v2288 = vunpack.c.l.b16 %v590
      %v2289 = vunpack.c.l.b16 %v591
      %v2290 = vunpack.c.l.b16 %v592
      %v2291 = vunpack.c.l.b16 %v593
      %v2292 = vunpack.c.l.b16 %v594
      %v2293 = vunpack.c.l.b16 %v595
      %v2294 = vunpack.c.l.b16 %v596
      %v2295 = vunpack.c.l.b16 %v597
      %v2296 = vunpack.c.l.b16 %v598
      %v2297 = vunpack.c.l.b16 %v599
      %v2298 = vunpack.c.l.b16 %v600
      %v2299 = vunpack.c.l.b16 %v601
      %v2300 = vunpack.c.l.b16 %v602
      %v2301 = vunpack.c.l.b16 %v603
      %v2302 = vunpack.c.l.b16 %v604
      %v2303 = vunpack.c.l.b16 %v605
      %v2304 = vunpack.c.l.b16 %v606
      %v2305 = vunpack.c.l.b16 %v607
      %v2306 = vunpack.c.l.b16 %v608
      %v2307 = vunpack.c.l.b16 %v609
      %v2308 = vunpack.c.l.b16 %v610
      %v2309 = vunpack.c.l.b16 %v611
      %v2310 = vunpack.c.l.b16 %v612
      %v2311 = vunpack.c.l.b16 %v613
      %v2312 = vunpack.c.l.b16 %v614
      %v2313 = vunpack.c.l.b16 %v615
      %v2314 = vunpack.c.l.b16 %v616
      %v2315 = vunpack.c.l.b16 %v617
      %v2316 = vunpack.c.l.b16 %v618
      %v2317 = vunpack.c.l.b16 %v619
      %v2318 = vunpack.c.l.b16 %v620
      %v2319 = vunpack.c.l.b16 %v621
      %v2320 = vunpack.c.l.b16 %v622
      %v2321 = vunpack.c.l.b16 %v623
      %v2322 = vunpack.c.l.b16 %v624
      %v2323 = vunpack.c.l.b16 %v625
      %v2324 = vunpack.c.l.b16 %v626
      %v2325 = vunpack.c.l.b16 %v627
      %v2326 = vunpack.c.l.b16 %v628
      %v2327 = vunpack.c.l.b16 %v629
      %v2328 = vunpack.c.l.b16 %v630
      %v2329 = vunpack.c.l.b16 %v631
      %v2330 = vunpack.c.l.b16 %v632
      %v2331 = vunpack.c.l.b16 %v633
      %v2332 = vunpack.c.l.b16 %v634
      %v2333 = vunpack.c.l.b16 %v635
      %v2334 = vunpack.c.l.b16 %v636
      %v2335 = vunpack.c.l.b16 %v637
      %v2336 = vunpack.c.l.b16 %v638
      %v2337 = vunpack.c.l.b16 %v639
      %v2338 = vunpack.c.l.b16 %v640
      %v2339 = vunpack.c.l.b16 %v641
      %v2340 = vunpack.c.l.b16 %v642
      %v2341 = vunpack.c.l.b16 %v643
      %v2342 = vunpack.c.l.b16 %v644
      %v2343 = vunpack.c.l.b16 %v645
      %v2344 = vunpack.c.l.b16 %v646
      %v2345 = vunpack.c.l.b16 %v647
      %v2346 = vunpack.c.l.b16 %v648
      %v2347 = vunpack.c.l.b16 %v649
      %v2348 = vunpack.c.l.b16 %v650
      %v2349 = vunpack.c.l.b16 %v651
      %v2350 = vunpack.c.l.b16 %v652
      %v2351 = vunpack.c.l.b16 %v653
      %v2352 = vunpack.c.l.b16 %v654
      %v2353 = vunpack.c.l.b16 %v655
      %v2354 = vunpack.c.l.b16 %v656
      %v2355 = vunpack.c.l.b16 %v657
      %v2356 = vunpack.c.l.b16 %v658
      %v2357 = vunpack.c.l.b16 %v659
      %v2358 = vunpack.c.l.b16 %v660
      %v2359 = vunpack.c.l.b16 %v661
      %v2360 = vunpack.c.l.b16 %v662
      %v2361 = vunpack.c.l.b16 %v663
      %v2362 = vunpack.c.l.b16 %v664
      %v2363 = vunpack.c.l.b16 %v665
      %v2364 = vunpack.c.l.b16 %v666
      %v2365 = vunpack.c.l.b16 %v667
      %v2366 = vunpack.c.l.b16 %v668
      %v2367 = vunpack.c.l.b16 %v669
      %v2368 = vunpack.c.l.b16 %v670
      %v2369 = vunpack.c.l.b16 %v671
      %v2370 = vunpack.c.l.b16 %v672
      %v2371 = vunpack.c.l.b16 %v673
      %v2372 = vunpack.c.l.b16 %v674
      %v2373 = vunpack.c.l.b16 %v675
      %v2374 = vunpack.c.l.b16 %v676
      %v2375 = vunpack.c.l.b16 %v677
      %v2376 = vunpack.c.l.b16 %v678
      %v2377 = vunpack.c.l.b16 %v679
      %v2378 = vunpack.c.l.b16 %v680
      %v2379 = vunpack.c.l.b16 %v681
      %v2380 = vunpack.c.l.b16 %v682
      %v2381 = vunpack.c.l.b16 %v683
      %v2382 = vunpack.c.l.b16 %v684
      %v2383 = vunpack.c.l.b16 %v685
      %v2384 = vunpack.c.l.b16 %v686
      %v2385 = vunpack.c.l.b16 %v687
      %v2386 = vunpack.c.l.b16 %v688
      %v2387 = vunpack.c.l.b16 %v689
      %v2388 = vunpack.c.l.b16 %v690
      %v2389 = vunpack.c.l.b16 %v691
      %v2390 = vunpack.c.l.b16 %v692
      %v2391 = vunpack.c.l.b16 %v693
      %v2392 = vunpack.c.l.b16 %v694
      %v2393 = vunpack.c.l.b16 %v695
      %v2394 = vunpack.c.l.b16 %v696
      %v2395 = vunpack.c.l.b16 %v697
      %v2396 = vunpack.c.l.b16 %v698
      %v2397 = vunpack.c.l.b16 %v699
      %v2398 = vunpack.c.l.b16 %v700
      %v2399 = vunpack.c.l.b16 %v701
      %v2400 = vunpack.c.l.b16 %v702
      %v2401 = vunpack.c.l.b16 %v703
      %v2402 = vunpack.c.l.b16 %v704
      %v2403 = vunpack.c.l.b16 %v705
      %v2404 = vunpack.c.l.b16 %v706
      %v2405 = vunpack.c.l.b16 %v707
      %v2406 = vunpack.c.l.b16 %v708
      %v2407 = vunpack.c.l.b16 %v709
      %v2408 = vunpack.c.l.b16 %v710
      %v2409 = vunpack.c.l.b16 %v711
      %v2410 = vunpack.c.l.b16 %v712
      %v2411 = vunpack.c.l.b16 %v713
      %v2412 = vunpack.c.l.b16 %v714
      %v2413 = vunpack.c.l.b16 %v715
      %v2414 = vunpack.c.l.b16 %v716
      %v2415 = vunpack.c.l.b16 %v717
      %v2416 = vunpack.c.l.b16 %v718
      %v2417 = vpack.c.b16 %v2289, %v2288
      %v2418 = vpack.c.b16 %v2291, %v2290
      %v2419 = vpack.c.b16 %v2293, %v2292
      %v2420 = vpack.c.b16 %v2295, %v2294
      %v2421 = vpack.c.b16 %v2297, %v2296
      %v2422 = vpack.c.b16 %v2299, %v2298
      %v2423 = vpack.c.b16 %v2301, %v2300
      %v2424 = vpack.c.b16 %v2303, %v2302
      %v2425 = vpack.c.b16 %v2305, %v2304
      %v2426 = vpack.c.b16 %v2307, %v2306
      %v2427 = vpack.c.b16 %v2309, %v2308
      %v2428 = vpack.c.b16 %v2311, %v2310
      %v2429 = vpack.c.b16 %v2313, %v2312
      %v2430 = vpack.c.b16 %v2315, %v2314
      %v2431 = vpack.c.b16 %v2317, %v2316
      %v2432 = vpack.c.b16 %v2319, %v2318
      %v2433 = vpack.c.b16 %v2321, %v2320
      %v2434 = vpack.c.b16 %v2323, %v2322
      %v2435 = vpack.c.b16 %v2325, %v2324
      %v2436 = vpack.c.b16 %v2327, %v2326
      %v2437 = vpack.c.b16 %v2329, %v2328
      %v2438 = vpack.c.b16 %v2331, %v2330
      %v2439 = vpack.c.b16 %v2333, %v2332
      %v2440 = vpack.c.b16 %v2335, %v2334
      %v2441 = vpack.c.b16 %v2337, %v2336
      %v2442 = vpack.c.b16 %v2339, %v2338
      %v2443 = vpack.c.b16 %v2341, %v2340
      %v2444 = vpack.c.b16 %v2343, %v2342
      %v2445 = vpack.c.b16 %v2345, %v2344
      %v2446 = vpack.c.b16 %v2347, %v2346
      %v2447 = vpack.c.b16 %v2349, %v2348
      %v2448 = vpack.c.b16 %v2351, %v2350
      %v2449 = vpack.c.b16 %v2353, %v2352
      %v2450 = vpack.c.b16 %v2355, %v2354
      %v2451 = vpack.c.b16 %v2357, %v2356
      %v2452 = vpack.c.b16 %v2359, %v2358
      %v2453 = vpack.c.b16 %v2361, %v2360
      %v2454 = vpack.c.b16 %v2363, %v2362
      %v2455 = vpack.c.b16 %v2365, %v2364
      %v2456 = vpack.c.b16 %v2367, %v2366
      %v2457 = vpack.c.b16 %v2369, %v2368
      %v2458 = vpack.c.b16 %v2371, %v2370
      %v2459 = vpack.c.b16 %v2373, %v2372
      %v2460 = vpack.c.b16 %v2375, %v2374
      %v2461 = vpack.c.b16 %v2377, %v2376
      %v2462 = vpack.c.b16 %v2379, %v2378
      %v2463 = vpack.c.b16 %v2381, %v2380
      %v2464 = vpack.c.b16 %v2383, %v2382
      %v2465 = vpack.c.b16 %v2385, %v2384
      %v2466 = vpack.c.b16 %v2387, %v2386
      %v2467 = vpack.c.b16 %v2389, %v2388
      %v2468 = vpack.c.b16 %v2391, %v2390
      %v2469 = vpack.c.b16 %v2393, %v2392
      %v2470 = vpack.c.b16 %v2395, %v2394
      %v2471 = vpack.c.b16 %v2397, %v2396
      %v2472 = vpack.c.b16 %v2399, %v2398
      %v2473 = vpack.c.b16 %v2401, %v2400
      %v2474 = vpack.c.b16 %v2403, %v2402
      %v2475 = vpack.c.b16 %v2405, %v2404
      %v2476 = vpack.c.b16 %v2407, %v2406
      %v2477 = vpack.c.b16 %v2409, %v2408
      %v2478 = vpack.c.b16 %v2411, %v2410
      %v2479 = vpack.c.b16 %v2413, %v2412
      %v2480 = vpack.c.b16 %v2415, %v2414
      %v2481 = vpack.c.b16 %v2416, %v2416
      %vm2546 = vcmask 39936
      %v2548 = vsel %vm2546, %v1623, 0
      %v2551 = vsel %vm2546, %v1632, 0
      %v2554 = vsel %vm2546, %v1641, 0
      %v2557 = vsel %vm2546, %v1650, 0
      %v2560 = vsel %vm2546, %v1659, 0
      %v2563 = vsel %vm2546, %v1668, 0
      %v2566 = vsel %vm2546, %v1677, 0
      %v2569 = vsel %vm2546, %v1686, 0
      %v2572 = vsel %vm2546, %v1695, 0
      %v2575 = vsel %vm2546, %v1704, 0
      %v2578 = vsel %vm2546, %v1713, 0
      %v2581 = vsel %vm2546, %v1722, 0
      %v2584 = vsel %vm2546, %v1731, 0
      %v2587 = vsel %vm2546, %v1740, 0
      %v2590 = vsel %vm2546, %v1749, 0
      %v2593 = vsel %vm2546, %v1758, 0
      %v2596 = vsel %vm2546, %v1767, 0
      %v2599 = vsel %vm2546, %v1776, 0
      %v2602 = vsel %vm2546, %v1785, 0
      %v2605 = vsel %vm2546, %v1794, 0
      %v2608 = vsel %vm2546, %v1803, 0
      %v2611 = vsel %vm2546, %v1812, 0
      %v2614 = vsel %vm2546, %v1821, 0
      %v2617 = vsel %vm2546, %v1830, 0
      %v2620 = vsel %vm2546, %v1839, 0
      %v2623 = vsel %vm2546, %v1848, 0
      %v2626 = vsel %vm2546, %v1857, 0
      %v2629 = vsel %vm2546, %v1866, 0
      %v2632 = vsel %vm2546, %v1875, 0
      %v2635 = vsel %vm2546, %v1884, 0
      %v2638 = vsel %vm2546, %v1893, 0
      %v2641 = vsel %vm2546, %v1902, 0
      %vm2643 = vcmask 1041408
      %vm2644 = vcmask 1042432
      %v2645 = vsel %vm2643, 4294967295, 65535
      %v2646 = vsel %vm2644, %v2645, 0
      %v2648 = vand.u32 %v2481, %v2646
      %2650 = vmatprep.subr.bf16.mxu0 0
      %2651 = vmatpush1.bf16.msra.mxu0 %v2417
      %2652 = vmatprep.subr.bf16.mxu0 0
      %2653 = vmatpush1.bf16.msra.mxu0 %v2418
      %2654 = vmatprep.subr.bf16.mxu0 0
      %2655 = vmatpush1.bf16.msra.mxu0 %v2419
      %2656 = vmatprep.subr.bf16.mxu0 0
      %2657 = vmatpush1.bf16.msra.mxu0 %v2420
      %2658 = vmatprep.subr.bf16.mxu0 0
      %2659 = vmatpush1.bf16.msra.mxu0 %v2421
      %2660 = vmatprep.subr.bf16.mxu0 0
      %2661 = vmatpush1.bf16.msra.mxu0 %v2422
      %2662 = vmatprep.subr.bf16.mxu0 0
      %2663 = vmatpush1.bf16.msra.mxu0 %v2423
      %2664 = vmatprep.subr.bf16.mxu0 0
      %2665 = vmatpush1.bf16.msra.mxu0 %v2424
      %2666 = vmatprep.subr.bf16.mxu0 0
      %2667 = vmatpush1.bf16.msra.mxu0 %v2425
      %2668 = vmatprep.subr.bf16.mxu0 0
      %2669 = vmatpush1.bf16.msra.mxu0 %v2426
      %2670 = vmatprep.subr.bf16.mxu0 0
      %2671 = vmatpush1.bf16.msra.mxu0 %v2427
      %2672 = vmatprep.subr.bf16.mxu0 0
      %2673 = vmatpush1.bf16.msra.mxu0 %v2428
      %2674 = vmatprep.subr.bf16.mxu0 0
      %2675 = vmatpush1.bf16.msra.mxu0 %v2429
      %2676 = vmatprep.subr.bf16.mxu0 0
      %2677 = vmatpush1.bf16.msra.mxu0 %v2430
      %2678 = vmatprep.subr.bf16.mxu0 0
      %2679 = vmatpush1.bf16.msra.mxu0 %v2431
      %2680 = vmatprep.subr.bf16.mxu0 0
      %2681 = vmatpush1.bf16.msra.mxu0 %v2432
      %2682 = vmatprep.mubr.bf16.mxu0 %v1616
      %2683 = vmatmul.mubr.bf16.gmra.mrb[0].mxu0 %v1615
      %v2684 = vpop.f32.mrb[0].mxu0
      %v2685 = vadd.f32 0.0, %v2684
      %v2686 = vpop.f32.mrb[0].mxu0
      %v2687 = vpop.f32.mrb[0].mxu0
      %v2688 = vadd.f32 0.0, %v2687
      %v2689 = vpop.f32.mrb[0].mxu0
      %2690 = vmatprep.mubr.bf16.mxu0 %v1625
      %2691 = vmatmul.mubr.bf16.gmra.mrb[0].mxu0 %v1624
      %v2692 = vpop.f32.mrb[0].mxu0
      %v2693 = vadd.f32 0.0, %v2692
      %v2694 = vpop.f32.mrb[0].mxu0
      %v2695 = vpop.f32.mrb[0].mxu0
      %v2696 = vadd.f32 0.0, %v2695
      %v2697 = vpop.f32.mrb[0].mxu0
      %2698 = vmatprep.mubr.bf16.mxu0 %v1634
      %2699 = vmatmul.mubr.bf16.gmra.mrb[0].mxu0 %v1633
      %v2700 = vpop.f32.mrb[0].mxu0
      %v2701 = vadd.f32 0.0, %v2700
      %v2702 = vpop.f32.mrb[0].mxu0
      %v2703 = vpop.f32.mrb[0].mxu0
      %v2704 = vadd.f32 0.0, %v2703
      %v2705 = vpop.f32.mrb[0].mxu0
      %2706 = vmatprep.mubr.bf16.mxu0 %v1643
      %2707 = vmatmul.mubr.bf16.gmra.mrb[0].mxu0 %v1642
      %v2708 = vpop.f32.mrb[0].mxu0
      %v2709 = vadd.f32 0.0, %v2708
      %v2710 = vpop.f32.mrb[0].mxu0
      %v2711 = vpop.f32.mrb[0].mxu0
      %v2712 = vadd.f32 0.0, %v2711
      %v2713 = vpop.f32.mrb[0].mxu0
      %2714 = vmatprep.mubr.bf16.mxu0 %v1652
      %2715 = vmatmul.mubr.bf16.gmra.mrb[0].mxu0 %v1651
      %v2716 = vpop.f32.mrb[0].mxu0
      %v2717 = vadd.f32 0.0, %v2716
      %v2718 = vpop.f32.mrb[0].mxu0
      %v2719 = vpop.f32.mrb[0].mxu0
      %v2720 = vadd.f32 0.0, %v2719
      %v2721 = vpop.f32.mrb[0].mxu0
      %2722 = vmatprep.mubr.bf16.mxu0 %v1661
      %2723 = vmatmul.mubr.bf16.gmra.mrb[0].mxu0 %v1660
      %v2724 = vpop.f32.mrb[0].mxu0
      %v2725 = vadd.f32 0.0, %v2724
      %v2726 = vpop.f32.mrb[0].mxu0
      %v2727 = vpop.f32.mrb[0].mxu0
      %v2728 = vadd.f32 0.0, %v2727
      %v2729 = vpop.f32.mrb[0].mxu0
      %2730 = vmatprep.mubr.bf16.mxu0 %v1670
      %2731 = vmatmul.mubr.bf16.gmra.mrb[0].mxu0 %v1669
      %v2732 = vpop.f32.mrb[0].mxu0
      %v2733 = vadd.f32 0.0, %v2732
      %v2734 = vpop.f32.mrb[0].mxu0
      %v2735 = vpop.f32.mrb[0].mxu0
      %v2736 = vadd.f32 0.0, %v2735
      %v2737 = vpop.f32.mrb[0].mxu0
      %2738 = vmatprep.mubr.bf16.mxu0 %v1679
      %2739 = vmatmul.mubr.bf16.gmra.mrb[0].mxu0 %v1678
      %v2740 = vpop.f32.mrb[0].mxu0
      %v2741 = vadd.f32 0.0, %v2740
      %v2742 = vpop.f32.mrb[0].mxu0
      %v2743 = vpop.f32.mrb[0].mxu0
      %v2744 = vadd.f32 0.0, %v2743
      %v2745 = vpop.f32.mrb[0].mxu0
      %2746 = vmatprep.mubr.bf16.mxu0 %v1688
      %2747 = vmatmul.mubr.bf16.gmra.mrb[0].mxu0 %v1687
      %v2748 = vpop.f32.mrb[0].mxu0
      %v2749 = vadd.f32 0.0, %v2748
      %v2750 = vpop.f32.mrb[0].mxu0
      %v2751 = vpop.f32.mrb[0].mxu0
      %v2752 = vadd.f32 0.0, %v2751
      %v2753 = vpop.f32.mrb[0].mxu0
      %2754 = vmatprep.mubr.bf16.mxu0 %v1697
      %2755 = vmatmul.mubr.bf16.gmra.mrb[0].mxu0 %v1696
      %v2756 = vpop.f32.mrb[0].mxu0
      %v2757 = vadd.f32 0.0, %v2756
      %v2758 = vpop.f32.mrb[0].mxu0
      %v2759 = vpop.f32.mrb[0].mxu0
      %v2760 = vadd.f32 0.0, %v2759
      %v2761 = vpop.f32.mrb[0].mxu0
      %2762 = vmatprep.mubr.bf16.mxu0 %v1706
      %2763 = vmatmul.mubr.bf16.gmra.mrb[0].mxu0 %v1705
      %v2764 = vpop.f32.mrb[0].mxu0
      %v2765 = vadd.f32 0.0, %v2764
      %v2766 = vpop.f32.mrb[0].mxu0
      %v2767 = vpop.f32.mrb[0].mxu0
      %v2768 = vadd.f32 0.0, %v2767
      %v2769 = vpop.f32.mrb[0].mxu0
      %2770 = vmatprep.mubr.bf16.mxu0 %v1715
      %2771 = vmatmul.mubr.bf16.gmra.mrb[0].mxu0 %v1714
      %v2772 = vpop.f32.mrb[0].mxu0
      %v2773 = vadd.f32 0.0, %v2772
      %v2774 = vpop.f32.mrb[0].mxu0
      %v2775 = vpop.f32.mrb[0].mxu0
      %v2776 = vadd.f32 0.0, %v2775
      %v2777 = vpop.f32.mrb[0].mxu0
      %2778 = vmatprep.mubr.bf16.mxu0 %v1724
      %2779 = vmatmul.mubr.bf16.gmra.mrb[0].mxu0 %v1723
      %v2780 = vpop.f32.mrb[0].mxu0
      %v2781 = vadd.f32 0.0, %v2780
      %v2782 = vpop.f32.mrb[0].mxu0
      %v2783 = vpop.f32.mrb[0].mxu0
      %v2784 = vadd.f32 0.0, %v2783
      %v2785 = vpop.f32.mrb[0].mxu0
      %2786 = vmatprep.mubr.bf16.mxu0 %v1733
      %2787 = vmatmul.mubr.bf16.gmra.mrb[0].mxu0 %v1732
      %v2788 = vpop.f32.mrb[0].mxu0
      %v2789 = vadd.f32 0.0, %v2788
      %v2790 = vpop.f32.mrb[0].mxu0
      %v2791 = vpop.f32.mrb[0].mxu0
      %v2792 = vadd.f32 0.0, %v2791
      %v2793 = vpop.f32.mrb[0].mxu0
      %2794 = vmatprep.mubr.bf16.mxu0 %v1742
      %2795 = vmatmul.mubr.bf16.gmra.mrb[0].mxu0 %v1741
      %v2796 = vpop.f32.mrb[0].mxu0
      %v2797 = vadd.f32 0.0, %v2796
      %v2798 = vpop.f32.mrb[0].mxu0
      %v2799 = vpop.f32.mrb[0].mxu0
      %v2800 = vadd.f32 0.0, %v2799
      %v2801 = vpop.f32.mrb[0].mxu0
      %2802 = vmatprep.mubr.bf16.mxu0 %v1751
      %2803 = vmatmul.mubr.bf16.gmra.mrb[0].mxu0 %v1750
      %v2804 = vpop.f32.mrb[0].mxu0
      %v2805 = vadd.f32 0.0, %v2804
      %v2806 = vpop.f32.mrb[0].mxu0
      %v2807 = vpop.f32.mrb[0].mxu0
      %v2808 = vadd.f32 0.0, %v2807
      %v2809 = vpop.f32.mrb[0].mxu0
      %2810 = vmatprep.mubr.bf16.mxu0 %v1760
      %2811 = vmatmul.mubr.bf16.gmra.mrb[0].mxu0 %v1759
      %v2812 = vpop.f32.mrb[0].mxu0
      %v2813 = vadd.f32 0.0, %v2812
      %v2814 = vpop.f32.mrb[0].mxu0
      %v2815 = vpop.f32.mrb[0].mxu0
      %v2816 = vadd.f32 0.0, %v2815
      %v2817 = vpop.f32.mrb[0].mxu0
      %2818 = vmatprep.mubr.bf16.mxu0 %v1769
      %2819 = vmatmul.mubr.bf16.gmra.mrb[0].mxu0 %v1768
      %v2820 = vpop.f32.mrb[0].mxu0
      %v2821 = vadd.f32 0.0, %v2820
      %v2822 = vpop.f32.mrb[0].mxu0
      %v2823 = vpop.f32.mrb[0].mxu0
      %v2824 = vadd.f32 0.0, %v2823
      %v2825 = vpop.f32.mrb[0].mxu0
      %2826 = vmatprep.mubr.bf16.mxu0 %v1778
      %2827 = vmatmul.mubr.bf16.gmra.mrb[0].mxu0 %v1777
      %v2828 = vpop.f32.mrb[0].mxu0
      %v2829 = vadd.f32 0.0, %v2828
      %v2830 = vpop.f32.mrb[0].mxu0
      %v2831 = vpop.f32.mrb[0].mxu0
      %v2832 = vadd.f32 0.0, %v2831
      %v2833 = vpop.f32.mrb[0].mxu0
      %2834 = vmatprep.mubr.bf16.mxu0 %v1787
      %2835 = vmatmul.mubr.bf16.gmra.mrb[0].mxu0 %v1786
      %v2836 = vpop.f32.mrb[0].mxu0
      %v2837 = vadd.f32 0.0, %v2836
      %v2838 = vpop.f32.mrb[0].mxu0
      %v2839 = vpop.f32.mrb[0].mxu0
      %v2840 = vadd.f32 0.0, %v2839
      %v2841 = vpop.f32.mrb[0].mxu0
      %2842 = vmatprep.mubr.bf16.mxu0 %v1796
      %2843 = vmatmul.mubr.bf16.gmra.mrb[0].mxu0 %v1795
      %v2844 = vpop.f32.mrb[0].mxu0
      %v2845 = vadd.f32 0.0, %v2844
      %v2846 = vpop.f32.mrb[0].mxu0
      %v2847 = vpop.f32.mrb[0].mxu0
      %v2848 = vadd.f32 0.0, %v2847
      %v2849 = vpop.f32.mrb[0].mxu0
      %2850 = vmatprep.mubr.bf16.mxu0 %v1805
      %2851 = vmatmul.mubr.bf16.gmra.mrb[0].mxu0 %v1804
      %v2852 = vpop.f32.mrb[0].mxu0
      %v2853 = vadd.f32 0.0, %v2852
      %v2854 = vpop.f32.mrb[0].mxu0
      %v2855 = vpop.f32.mrb[0].mxu0
      %v2856 = vadd.f32 0.0, %v2855
      %v2857 = vpop.f32.mrb[0].mxu0
      %2858 = vmatprep.mubr.bf16.mxu0 %v1814
      %2859 = vmatmul.mubr.bf16.gmra.mrb[0].mxu0 %v1813
      %v2860 = vpop.f32.mrb[0].mxu0
      %v2861 = vadd.f32 0.0, %v2860
      %v2862 = vpop.f32.mrb[0].mxu0
      %v2863 = vpop.f32.mrb[0].mxu0
      %v2864 = vadd.f32 0.0, %v2863
      %v2865 = vpop.f32.mrb[0].mxu0
      %2866 = vmatprep.mubr.bf16.mxu0 %v1823
      %2867 = vmatmul.mubr.bf16.gmra.mrb[0].mxu0 %v1822
      %v2868 = vpop.f32.mrb[0].mxu0
      %v2869 = vadd.f32 0.0, %v2868
      %v2870 = vpop.f32.mrb[0].mxu0
      %v2871 = vpop.f32.mrb[0].mxu0
      %v2872 = vadd.f32 0.0, %v2871
      %v2873 = vpop.f32.mrb[0].mxu0
      %2874 = vmatprep.mubr.bf16.mxu0 %v1832
      %2875 = vmatmul.mubr.bf16.gmra.mrb[0].mxu0 %v1831
      %v2876 = vpop.f32.mrb[0].mxu0
      %v2877 = vadd.f32 0.0, %v2876
      %v2878 = vpop.f32.mrb[0].mxu0
      %v2879 = vpop.f32.mrb[0].mxu0
      %v2880 = vadd.f32 0.0, %v2879
      %v2881 = vpop.f32.mrb[0].mxu0
      %2882 = vmatprep.mubr.bf16.mxu0 %v1841
      %2883 = vmatmul.mubr.bf16.gmra.mrb[0].mxu0 %v1840
      %v2884 = vpop.f32.mrb[0].mxu0
      %v2885 = vadd.f32 0.0, %v2884
      %v2886 = vpop.f32.mrb[0].mxu0
      %v2887 = vpop.f32.mrb[0].mxu0
      %v2888 = vadd.f32 0.0, %v2887
      %v2889 = vpop.f32.mrb[0].mxu0
      %2890 = vmatprep.mubr.bf16.mxu0 %v1850
      %2891 = vmatmul.mubr.bf16.gmra.mrb[0].mxu0 %v1849
      %v2892 = vpop.f32.mrb[0].mxu0
      %v2893 = vadd.f32 0.0, %v2892
      %v2894 = vpop.f32.mrb[0].mxu0
      %v2895 = vpop.f32.mrb[0].mxu0
      %v2896 = vadd.f32 0.0, %v2895
      %v2897 = vpop.f32.mrb[0].mxu0
      %2898 = vmatprep.mubr.bf16.mxu0 %v1859
      %2899 = vmatmul.mubr.bf16.gmra.mrb[0].mxu0 %v1858
      %v2900 = vpop.f32.mrb[0].mxu0
      %v2901 = vadd.f32 0.0, %v2900
      %v2902 = vpop.f32.mrb[0].mxu0
      %v2903 = vpop.f32.mrb[0].mxu0
      %v2904 = vadd.f32 0.0, %v2903
      %v2905 = vpop.f32.mrb[0].mxu0
      %2906 = vmatprep.mubr.bf16.mxu0 %v1868
      %2907 = vmatmul.mubr.bf16.gmra.mrb[0].mxu0 %v1867
      %v2908 = vpop.f32.mrb[0].mxu0
      %v2909 = vadd.f32 0.0, %v2908
      %v2910 = vpop.f32.mrb[0].mxu0
      %v2911 = vpop.f32.mrb[0].mxu0
      %v2912 = vadd.f32 0.0, %v2911
      %v2913 = vpop.f32.mrb[0].mxu0
      %2914 = vmatprep.mubr.bf16.mxu0 %v1877
      %2915 = vmatmul.mubr.bf16.gmra.mrb[0].mxu0 %v1876
      %v2916 = vpop.f32.mrb[0].mxu0
      %v2917 = vadd.f32 0.0, %v2916
      %v2918 = vpop.f32.mrb[0].mxu0
      %v2919 = vpop.f32.mrb[0].mxu0
      %v2920 = vadd.f32 0.0, %v2919
      %v2921 = vpop.f32.mrb[0].mxu0
      %2922 = vmatprep.mubr.bf16.mxu0 %v1886
      %2923 = vmatmul.mubr.bf16.gmra.mrb[0].mxu0 %v1885
      %v2924 = vpop.f32.mrb[0].mxu0
      %v2925 = vadd.f32 0.0, %v2924
      %v2926 = vpop.f32.mrb[0].mxu0
      %v2927 = vpop.f32.mrb[0].mxu0
      %v2928 = vadd.f32 0.0, %v2927
      %v2929 = vpop.f32.mrb[0].mxu0
      %2930 = vmatprep.mubr.bf16.mxu0 %v1895
      %2931 = vmatmul.mubr.bf16.gmra.mrb[0].mxu0 %v1894
      %v2932 = vpop.f32.mrb[0].mxu0
      %v2933 = vadd.f32 0.0, %v2932
      %v2934 = vpop.f32.mrb[0].mxu0
      %v2935 = vpop.f32.mrb[0].mxu0
      %v2936 = vadd.f32 0.0, %v2935
      %v2937 = vpop.f32.mrb[0].mxu0
      %2938 = vdwg.mxu0
      %2939 = vmatprep.subr.bf16.mxu0 0
      %2940 = vmatpush1.bf16.msra.mxu0 %v2433
      %2941 = vmatprep.subr.bf16.mxu0 0
      %2942 = vmatpush1.bf16.msra.mxu0 %v2434
      %2943 = vmatprep.subr.bf16.mxu0 0
      %2944 = vmatpush1.bf16.msra.mxu0 %v2435
      %2945 = vmatprep.subr.bf16.mxu0 0
      %2946 = vmatpush1.bf16.msra.mxu0 %v2436
      %2947 = vmatprep.subr.bf16.mxu0 0
      %2948 = vmatpush1.bf16.msra.mxu0 %v2437
      %2949 = vmatprep.subr.bf16.mxu0 0
      %2950 = vmatpush1.bf16.msra.mxu0 %v2438
      %2951 = vmatprep.subr.bf16.mxu0 0
      %2952 = vmatpush1.bf16.msra.mxu0 %v2439
      %2953 = vmatprep.subr.bf16.mxu0 0
      %2954 = vmatpush1.bf16.msra.mxu0 %v2440
      %2955 = vmatprep.subr.bf16.mxu0 0
      %2956 = vmatpush1.bf16.msra.mxu0 %v2441
      %2957 = vmatprep.subr.bf16.mxu0 0
      %2958 = vmatpush1.bf16.msra.mxu0 %v2442
      %2959 = vmatprep.subr.bf16.mxu0 0
      %2960 = vmatpush1.bf16.msra.mxu0 %v2443
      %2961 = vmatprep.subr.bf16.mxu0 0
      %2962 = vmatpush1.bf16.msra.mxu0 %v2444
      %2963 = vmatprep.subr.bf16.mxu0 0
      %2964 = vmatpush1.bf16.msra.mxu0 %v2445
      %2965 = vmatprep.subr.bf16.mxu0 0
      %2966 = vmatpush1.bf16.msra.mxu0 %v2446
      %2967 = vmatprep.subr.bf16.mxu0 0
      %2968 = vmatpush1.bf16.msra.mxu0 %v2447
      %2969 = vmatprep.subr.bf16.mxu0 0
      %2970 = vmatpush1.bf16.msra.mxu0 %v2448
      %2971 = vmatprep.mubr.bf16.mxu0 %v1618
      %2972 = vmatmul.mubr.bf16.gmra.mrb[0].mxu0 %v1617
      %v2973 = vpop.f32.mrb[0].mxu0
      %v2974 = vadd.f32 %v2685, %v2973
      %v2975 = vpop.f32.mrb[0].mxu0
      %v2976 = vpop.f32.mrb[0].mxu0
      %v2977 = vadd.f32 %v2688, %v2976
      %v2978 = vpop.f32.mrb[0].mxu0
      %2979 = vmatprep.mubr.bf16.mxu0 %v1627
      %2980 = vmatmul.mubr.bf16.gmra.mrb[0].mxu0 %v1626
      %v2981 = vpop.f32.mrb[0].mxu0
      %v2982 = vadd.f32 %v2693, %v2981
      %v2983 = vpop.f32.mrb[0].mxu0
      %v2984 = vpop.f32.mrb[0].mxu0
      %v2985 = vadd.f32 %v2696, %v2984
      %v2986 = vpop.f32.mrb[0].mxu0
      %2987 = vmatprep.mubr.bf16.mxu0 %v1636
      %2988 = vmatmul.mubr.bf16.gmra.mrb[0].mxu0 %v1635
      %v2989 = vpop.f32.mrb[0].mxu0
      %v2990 = vadd.f32 %v2701, %v2989
      %v2991 = vpop.f32.mrb[0].mxu0
      %v2992 = vpop.f32.mrb[0].mxu0
      %v2993 = vadd.f32 %v2704, %v2992
      %v2994 = vpop.f32.mrb[0].mxu0
      %2995 = vmatprep.mubr.bf16.mxu0 %v1645
      %2996 = vmatmul.mubr.bf16.gmra.mrb[0].mxu0 %v1644
      %v2997 = vpop.f32.mrb[0].mxu0
      %v2998 = vadd.f32 %v2709, %v2997
      %v2999 = vpop.f32.mrb[0].mxu0
      %v3000 = vpop.f32.mrb[0].mxu0
      %v3001 = vadd.f32 %v2712, %v3000
      %v3002 = vpop.f32.mrb[0].mxu0
      %3003 = vmatprep.mubr.bf16.mxu0 %v1654
      %3004 = vmatmul.mubr.bf16.gmra.mrb[0].mxu0 %v1653
      %v3005 = vpop.f32.mrb[0].mxu0
      %v3006 = vadd.f32 %v2717, %v3005
      %v3007 = vpop.f32.mrb[0].mxu0
      %v3008 = vpop.f32.mrb[0].mxu0
      %v3009 = vadd.f32 %v2720, %v3008
      %v3010 = vpop.f32.mrb[0].mxu0
      %3011 = vmatprep.mubr.bf16.mxu0 %v1663
      %3012 = vmatmul.mubr.bf16.gmra.mrb[0].mxu0 %v1662
      %v3013 = vpop.f32.mrb[0].mxu0
      %v3014 = vadd.f32 %v2725, %v3013
      %v3015 = vpop.f32.mrb[0].mxu0
      %v3016 = vpop.f32.mrb[0].mxu0
      %v3017 = vadd.f32 %v2728, %v3016
      %v3018 = vpop.f32.mrb[0].mxu0
      %3019 = vmatprep.mubr.bf16.mxu0 %v1672
      %3020 = vmatmul.mubr.bf16.gmra.mrb[0].mxu0 %v1671
      %v3021 = vpop.f32.mrb[0].mxu0
      %v3022 = vadd.f32 %v2733, %v3021
      %v3023 = vpop.f32.mrb[0].mxu0
      %v3024 = vpop.f32.mrb[0].mxu0
      %v3025 = vadd.f32 %v2736, %v3024
      %v3026 = vpop.f32.mrb[0].mxu0
      %3027 = vmatprep.mubr.bf16.mxu0 %v1681
      %3028 = vmatmul.mubr.bf16.gmra.mrb[0].mxu0 %v1680
      %v3029 = vpop.f32.mrb[0].mxu0
      %v3030 = vadd.f32 %v2741, %v3029
      %v3031 = vpop.f32.mrb[0].mxu0
      %v3032 = vpop.f32.mrb[0].mxu0
      %v3033 = vadd.f32 %v2744, %v3032
      %v3034 = vpop.f32.mrb[0].mxu0
      %3035 = vmatprep.mubr.bf16.mxu0 %v1690
      %3036 = vmatmul.mubr.bf16.gmra.mrb[0].mxu0 %v1689
      %v3037 = vpop.f32.mrb[0].mxu0
      %v3038 = vadd.f32 %v2749, %v3037
      %v3039 = vpop.f32.mrb[0].mxu0
      %v3040 = vpop.f32.mrb[0].mxu0
      %v3041 = vadd.f32 %v2752, %v3040
      %v3042 = vpop.f32.mrb[0].mxu0
      %3043 = vmatprep.mubr.bf16.mxu0 %v1699
      %3044 = vmatmul.mubr.bf16.gmra.mrb[0].mxu0 %v1698
      %v3045 = vpop.f32.mrb[0].mxu0
      %v3046 = vadd.f32 %v2757, %v3045
      %v3047 = vpop.f32.mrb[0].mxu0
      %v3048 = vpop.f32.mrb[0].mxu0
      %v3049 = vadd.f32 %v2760, %v3048
      %v3050 = vpop.f32.mrb[0].mxu0
      %3051 = vmatprep.mubr.bf16.mxu0 %v1708
      %3052 = vmatmul.mubr.bf16.gmra.mrb[0].mxu0 %v1707
      %v3053 = vpop.f32.mrb[0].mxu0
      %v3054 = vadd.f32 %v2765, %v3053
      %v3055 = vpop.f32.mrb[0].mxu0
      %v3056 = vpop.f32.mrb[0].mxu0
      %v3057 = vadd.f32 %v2768, %v3056
      %v3058 = vpop.f32.mrb[0].mxu0
      %3059 = vmatprep.mubr.bf16.mxu0 %v1717
      %3060 = vmatmul.mubr.bf16.gmra.mrb[0].mxu0 %v1716
      %v3061 = vpop.f32.mrb[0].mxu0
      %v3062 = vadd.f32 %v2773, %v3061
      %v3063 = vpop.f32.mrb[0].mxu0
      %v3064 = vpop.f32.mrb[0].mxu0
      %v3065 = vadd.f32 %v2776, %v3064
      %v3066 = vpop.f32.mrb[0].mxu0
      %3067 = vmatprep.mubr.bf16.mxu0 %v1726
      %3068 = vmatmul.mubr.bf16.gmra.mrb[0].mxu0 %v1725
      %v3069 = vpop.f32.mrb[0].mxu0
      %v3070 = vadd.f32 %v2781, %v3069
      %v3071 = vpop.f32.mrb[0].mxu0
      %v3072 = vpop.f32.mrb[0].mxu0
      %v3073 = vadd.f32 %v2784, %v3072
      %v3074 = vpop.f32.mrb[0].mxu0
      %3075 = vmatprep.mubr.bf16.mxu0 %v1735
      %3076 = vmatmul.mubr.bf16.gmra.mrb[0].mxu0 %v1734
      %v3077 = vpop.f32.mrb[0].mxu0
      %v3078 = vadd.f32 %v2789, %v3077
      %v3079 = vpop.f32.mrb[0].mxu0
      %v3080 = vpop.f32.mrb[0].mxu0
      %v3081 = vadd.f32 %v2792, %v3080
      %v3082 = vpop.f32.mrb[0].mxu0
      %3083 = vmatprep.mubr.bf16.mxu0 %v1744
      %3084 = vmatmul.mubr.bf16.gmra.mrb[0].mxu0 %v1743
      %v3085 = vpop.f32.mrb[0].mxu0
      %v3086 = vadd.f32 %v2797, %v3085
      %v3087 = vpop.f32.mrb[0].mxu0
      %v3088 = vpop.f32.mrb[0].mxu0
      %v3089 = vadd.f32 %v2800, %v3088
      %v3090 = vpop.f32.mrb[0].mxu0
      %3091 = vmatprep.mubr.bf16.mxu0 %v1753
      %3092 = vmatmul.mubr.bf16.gmra.mrb[0].mxu0 %v1752
      %v3093 = vpop.f32.mrb[0].mxu0
      %v3094 = vadd.f32 %v2805, %v3093
      %v3095 = vpop.f32.mrb[0].mxu0
      %v3096 = vpop.f32.mrb[0].mxu0
      %v3097 = vadd.f32 %v2808, %v3096
      %v3098 = vpop.f32.mrb[0].mxu0
      %3099 = vmatprep.mubr.bf16.mxu0 %v1762
      %3100 = vmatmul.mubr.bf16.gmra.mrb[0].mxu0 %v1761
      %v3101 = vpop.f32.mrb[0].mxu0
      %v3102 = vadd.f32 %v2813, %v3101
      %v3103 = vpop.f32.mrb[0].mxu0
      %v3104 = vpop.f32.mrb[0].mxu0
      %v3105 = vadd.f32 %v2816, %v3104
      %v3106 = vpop.f32.mrb[0].mxu0
      %3107 = vmatprep.mubr.bf16.mxu0 %v1771
      %3108 = vmatmul.mubr.bf16.gmra.mrb[0].mxu0 %v1770
      %v3109 = vpop.f32.mrb[0].mxu0
      %v3110 = vadd.f32 %v2821, %v3109
      %v3111 = vpop.f32.mrb[0].mxu0
      %v3112 = vpop.f32.mrb[0].mxu0
      %v3113 = vadd.f32 %v2824, %v3112
      %v3114 = vpop.f32.mrb[0].mxu0
      %3115 = vmatprep.mubr.bf16.mxu0 %v1780
      %3116 = vmatmul.mubr.bf16.gmra.mrb[0].mxu0 %v1779
      %v3117 = vpop.f32.mrb[0].mxu0
      %v3118 = vadd.f32 %v2829, %v3117
      %v3119 = vpop.f32.mrb[0].mxu0
      %v3120 = vpop.f32.mrb[0].mxu0
      %v3121 = vadd.f32 %v2832, %v3120
      %v3122 = vpop.f32.mrb[0].mxu0
      %3123 = vmatprep.mubr.bf16.mxu0 %v1789
      %3124 = vmatmul.mubr.bf16.gmra.mrb[0].mxu0 %v1788
      %v3125 = vpop.f32.mrb[0].mxu0
      %v3126 = vadd.f32 %v2837, %v3125
      %v3127 = vpop.f32.mrb[0].mxu0
      %v3128 = vpop.f32.mrb[0].mxu0
      %v3129 = vadd.f32 %v2840, %v3128
      %v3130 = vpop.f32.mrb[0].mxu0
      %3131 = vmatprep.mubr.bf16.mxu0 %v1798
      %3132 = vmatmul.mubr.bf16.gmra.mrb[0].mxu0 %v1797
      %v3133 = vpop.f32.mrb[0].mxu0
      %v3134 = vadd.f32 %v2845, %v3133
      %v3135 = vpop.f32.mrb[0].mxu0
      %v3136 = vpop.f32.mrb[0].mxu0
      %v3137 = vadd.f32 %v2848, %v3136
      %v3138 = vpop.f32.mrb[0].mxu0
      %3139 = vmatprep.mubr.bf16.mxu0 %v1807
      %3140 = vmatmul.mubr.bf16.gmra.mrb[0].mxu0 %v1806
      %v3141 = vpop.f32.mrb[0].mxu0
      %v3142 = vadd.f32 %v2853, %v3141
      %v3143 = vpop.f32.mrb[0].mxu0
      %v3144 = vpop.f32.mrb[0].mxu0
      %v3145 = vadd.f32 %v2856, %v3144
      %v3146 = vpop.f32.mrb[0].mxu0
      %3147 = vmatprep.mubr.bf16.mxu0 %v1816
      %3148 = vmatmul.mubr.bf16.gmra.mrb[0].mxu0 %v1815
      %v3149 = vpop.f32.mrb[0].mxu0
      %v3150 = vadd.f32 %v2861, %v3149
      %v3151 = vpop.f32.mrb[0].mxu0
      %v3152 = vpop.f32.mrb[0].mxu0
      %v3153 = vadd.f32 %v2864, %v3152
      %v3154 = vpop.f32.mrb[0].mxu0
      %3155 = vmatprep.mubr.bf16.mxu0 %v1825
      %3156 = vmatmul.mubr.bf16.gmra.mrb[0].mxu0 %v1824
      %v3157 = vpop.f32.mrb[0].mxu0
      %v3158 = vadd.f32 %v2869, %v3157
      %v3159 = vpop.f32.mrb[0].mxu0
      %v3160 = vpop.f32.mrb[0].mxu0
      %v3161 = vadd.f32 %v2872, %v3160
      %v3162 = vpop.f32.mrb[0].mxu0
      %3163 = vmatprep.mubr.bf16.mxu0 %v1834
      %3164 = vmatmul.mubr.bf16.gmra.mrb[0].mxu0 %v1833
      %v3165 = vpop.f32.mrb[0].mxu0
      %v3166 = vadd.f32 %v2877, %v3165
      %v3167 = vpop.f32.mrb[0].mxu0
      %v3168 = vpop.f32.mrb[0].mxu0
      %v3169 = vadd.f32 %v2880, %v3168
      %v3170 = vpop.f32.mrb[0].mxu0
      %3171 = vmatprep.mubr.bf16.mxu0 %v1843
      %3172 = vmatmul.mubr.bf16.gmra.mrb[0].mxu0 %v1842
      %v3173 = vpop.f32.mrb[0].mxu0
      %v3174 = vadd.f32 %v2885, %v3173
      %v3175 = vpop.f32.mrb[0].mxu0
      %v3176 = vpop.f32.mrb[0].mxu0
      %v3177 = vadd.f32 %v2888, %v3176
      %v3178 = vpop.f32.mrb[0].mxu0
      %3179 = vmatprep.mubr.bf16.mxu0 %v1852
      %3180 = vmatmul.mubr.bf16.gmra.mrb[0].mxu0 %v1851
      %v3181 = vpop.f32.mrb[0].mxu0
      %v3182 = vadd.f32 %v2893, %v3181
      %v3183 = vpop.f32.mrb[0].mxu0
      %v3184 = vpop.f32.mrb[0].mxu0
      %v3185 = vadd.f32 %v2896, %v3184
      %v3186 = vpop.f32.mrb[0].mxu0
      %3187 = vmatprep.mubr.bf16.mxu0 %v1861
      %3188 = vmatmul.mubr.bf16.gmra.mrb[0].mxu0 %v1860
      %v3189 = vpop.f32.mrb[0].mxu0
      %v3190 = vadd.f32 %v2901, %v3189
      %v3191 = vpop.f32.mrb[0].mxu0
      %v3192 = vpop.f32.mrb[0].mxu0
      %v3193 = vadd.f32 %v2904, %v3192
      %v3194 = vpop.f32.mrb[0].mxu0
      %3195 = vmatprep.mubr.bf16.mxu0 %v1870
      %3196 = vmatmul.mubr.bf16.gmra.mrb[0].mxu0 %v1869
      %v3197 = vpop.f32.mrb[0].mxu0
      %v3198 = vadd.f32 %v2909, %v3197
      %v3199 = vpop.f32.mrb[0].mxu0
      %v3200 = vpop.f32.mrb[0].mxu0
      %v3201 = vadd.f32 %v2912, %v3200
      %v3202 = vpop.f32.mrb[0].mxu0
      %3203 = vmatprep.mubr.bf16.mxu0 %v1879
      %3204 = vmatmul.mubr.bf16.gmra.mrb[0].mxu0 %v1878
      %v3205 = vpop.f32.mrb[0].mxu0
      %v3206 = vadd.f32 %v2917, %v3205
      %v3207 = vpop.f32.mrb[0].mxu0
      %v3208 = vpop.f32.mrb[0].mxu0
      %v3209 = vadd.f32 %v2920, %v3208
      %v3210 = vpop.f32.mrb[0].mxu0
      %3211 = vmatprep.mubr.bf16.mxu0 %v1888
      %3212 = vmatmul.mubr.bf16.gmra.mrb[0].mxu0 %v1887
      %v3213 = vpop.f32.mrb[0].mxu0
      %v3214 = vadd.f32 %v2925, %v3213
      %v3215 = vpop.f32.mrb[0].mxu0
      %v3216 = vpop.f32.mrb[0].mxu0
      %v3217 = vadd.f32 %v2928, %v3216
      %v3218 = vpop.f32.mrb[0].mxu0
      %3219 = vmatprep.mubr.bf16.mxu0 %v1897
      %3220 = vmatmul.mubr.bf16.gmra.mrb[0].mxu0 %v1896
      %v3221 = vpop.f32.mrb[0].mxu0
      %v3222 = vadd.f32 %v2933, %v3221
      %v3223 = vpop.f32.mrb[0].mxu0
      %v3224 = vpop.f32.mrb[0].mxu0
      %v3225 = vadd.f32 %v2936, %v3224
      %v3226 = vpop.f32.mrb[0].mxu0
      %3227 = vdwg.mxu0
      %3228 = vmatprep.subr.bf16.mxu0 0
      %3229 = vmatpush1.bf16.msra.mxu0 %v2449
      %3230 = vmatprep.subr.bf16.mxu0 0
      %3231 = vmatpush1.bf16.msra.mxu0 %v2450
      %3232 = vmatprep.subr.bf16.mxu0 0
      %3233 = vmatpush1.bf16.msra.mxu0 %v2451
      %3234 = vmatprep.subr.bf16.mxu0 0
      %3235 = vmatpush1.bf16.msra.mxu0 %v2452
      %3236 = vmatprep.subr.bf16.mxu0 0
      %3237 = vmatpush1.bf16.msra.mxu0 %v2453
      %3238 = vmatprep.subr.bf16.mxu0 0
      %3239 = vmatpush1.bf16.msra.mxu0 %v2454
      %3240 = vmatprep.subr.bf16.mxu0 0
      %3241 = vmatpush1.bf16.msra.mxu0 %v2455
      %3242 = vmatprep.subr.bf16.mxu0 0
      %3243 = vmatpush1.bf16.msra.mxu0 %v2456
      %3244 = vmatprep.subr.bf16.mxu0 0
      %3245 = vmatpush1.bf16.msra.mxu0 %v2457
      %3246 = vmatprep.subr.bf16.mxu0 0
      %3247 = vmatpush1.bf16.msra.mxu0 %v2458
      %3248 = vmatprep.subr.bf16.mxu0 0
      %3249 = vmatpush1.bf16.msra.mxu0 %v2459
      %3250 = vmatprep.subr.bf16.mxu0 0
      %3251 = vmatpush1.bf16.msra.mxu0 %v2460
      %3252 = vmatprep.subr.bf16.mxu0 0
      %3253 = vmatpush1.bf16.msra.mxu0 %v2461
      %3254 = vmatprep.subr.bf16.mxu0 0
      %3255 = vmatpush1.bf16.msra.mxu0 %v2462
      %3256 = vmatprep.subr.bf16.mxu0 0
      %3257 = vmatpush1.bf16.msra.mxu0 %v2463
      %3258 = vmatprep.subr.bf16.mxu0 0
      %3259 = vmatpush1.bf16.msra.mxu0 %v2464
      %3260 = vmatprep.mubr.bf16.mxu0 %v1620
      %3261 = vmatmul.mubr.bf16.gmra.mrb[0].mxu0 %v1619
      %v3262 = vpop.f32.mrb[0].mxu0
      %v3263 = vadd.f32 %v2974, %v3262
      %v3264 = vpop.f32.mrb[0].mxu0
      %v3265 = vpop.f32.mrb[0].mxu0
      %v3266 = vadd.f32 %v2977, %v3265
      %v3267 = vpop.f32.mrb[0].mxu0
      %3268 = vmatprep.mubr.bf16.mxu0 %v1629
      %3269 = vmatmul.mubr.bf16.gmra.mrb[0].mxu0 %v1628
      %v3270 = vpop.f32.mrb[0].mxu0
      %v3271 = vadd.f32 %v2982, %v3270
      %v3272 = vpop.f32.mrb[0].mxu0
      %v3273 = vpop.f32.mrb[0].mxu0
      %v3274 = vadd.f32 %v2985, %v3273
      %v3275 = vpop.f32.mrb[0].mxu0
      %3276 = vmatprep.mubr.bf16.mxu0 %v1638
      %3277 = vmatmul.mubr.bf16.gmra.mrb[0].mxu0 %v1637
      %v3278 = vpop.f32.mrb[0].mxu0
      %v3279 = vadd.f32 %v2990, %v3278
      %v3280 = vpop.f32.mrb[0].mxu0
      %v3281 = vpop.f32.mrb[0].mxu0
      %v3282 = vadd.f32 %v2993, %v3281
      %v3283 = vpop.f32.mrb[0].mxu0
      %3284 = vmatprep.mubr.bf16.mxu0 %v1647
      %3285 = vmatmul.mubr.bf16.gmra.mrb[0].mxu0 %v1646
      %v3286 = vpop.f32.mrb[0].mxu0
      %v3287 = vadd.f32 %v2998, %v3286
      %v3288 = vpop.f32.mrb[0].mxu0
      %v3289 = vpop.f32.mrb[0].mxu0
      %v3290 = vadd.f32 %v3001, %v3289
      %v3291 = vpop.f32.mrb[0].mxu0
      %3292 = vmatprep.mubr.bf16.mxu0 %v1656
      %3293 = vmatmul.mubr.bf16.gmra.mrb[0].mxu0 %v1655
      %v3294 = vpop.f32.mrb[0].mxu0
      %v3295 = vadd.f32 %v3006, %v3294
      %v3296 = vpop.f32.mrb[0].mxu0
      %v3297 = vpop.f32.mrb[0].mxu0
      %v3298 = vadd.f32 %v3009, %v3297
      %v3299 = vpop.f32.mrb[0].mxu0
      %3300 = vmatprep.mubr.bf16.mxu0 %v1665
      %3301 = vmatmul.mubr.bf16.gmra.mrb[0].mxu0 %v1664
      %v3302 = vpop.f32.mrb[0].mxu0
      %v3303 = vadd.f32 %v3014, %v3302
      %v3304 = vpop.f32.mrb[0].mxu0
      %v3305 = vpop.f32.mrb[0].mxu0
      %v3306 = vadd.f32 %v3017, %v3305
      %v3307 = vpop.f32.mrb[0].mxu0
      %3308 = vmatprep.mubr.bf16.mxu0 %v1674
      %3309 = vmatmul.mubr.bf16.gmra.mrb[0].mxu0 %v1673
      %v3310 = vpop.f32.mrb[0].mxu0
      %v3311 = vadd.f32 %v3022, %v3310
      %v3312 = vpop.f32.mrb[0].mxu0
      %v3313 = vpop.f32.mrb[0].mxu0
      %v3314 = vadd.f32 %v3025, %v3313
      %v3315 = vpop.f32.mrb[0].mxu0
      %3316 = vmatprep.mubr.bf16.mxu0 %v1683
      %3317 = vmatmul.mubr.bf16.gmra.mrb[0].mxu0 %v1682
      %v3318 = vpop.f32.mrb[0].mxu0
      %v3319 = vadd.f32 %v3030, %v3318
      %v3320 = vpop.f32.mrb[0].mxu0
      %v3321 = vpop.f32.mrb[0].mxu0
      %v3322 = vadd.f32 %v3033, %v3321
      %v3323 = vpop.f32.mrb[0].mxu0
      %3324 = vmatprep.mubr.bf16.mxu0 %v1692
      %3325 = vmatmul.mubr.bf16.gmra.mrb[0].mxu0 %v1691
      %v3326 = vpop.f32.mrb[0].mxu0
      %v3327 = vadd.f32 %v3038, %v3326
      %v3328 = vpop.f32.mrb[0].mxu0
      %v3329 = vpop.f32.mrb[0].mxu0
      %v3330 = vadd.f32 %v3041, %v3329
      %v3331 = vpop.f32.mrb[0].mxu0
      %3332 = vmatprep.mubr.bf16.mxu0 %v1701
      %3333 = vmatmul.mubr.bf16.gmra.mrb[0].mxu0 %v1700
      %v3334 = vpop.f32.mrb[0].mxu0
      %v3335 = vadd.f32 %v3046, %v3334
      %v3336 = vpop.f32.mrb[0].mxu0
      %v3337 = vpop.f32.mrb[0].mxu0
      %v3338 = vadd.f32 %v3049, %v3337
      %v3339 = vpop.f32.mrb[0].mxu0
      %3340 = vmatprep.mubr.bf16.mxu0 %v1710
      %3341 = vmatmul.mubr.bf16.gmra.mrb[0].mxu0 %v1709
      %v3342 = vpop.f32.mrb[0].mxu0
      %v3343 = vadd.f32 %v3054, %v3342
      %v3344 = vpop.f32.mrb[0].mxu0
      %v3345 = vpop.f32.mrb[0].mxu0
      %v3346 = vadd.f32 %v3057, %v3345
      %v3347 = vpop.f32.mrb[0].mxu0
      %3348 = vmatprep.mubr.bf16.mxu0 %v1719
      %3349 = vmatmul.mubr.bf16.gmra.mrb[0].mxu0 %v1718
      %v3350 = vpop.f32.mrb[0].mxu0
      %v3351 = vadd.f32 %v3062, %v3350
      %v3352 = vpop.f32.mrb[0].mxu0
      %v3353 = vpop.f32.mrb[0].mxu0
      %v3354 = vadd.f32 %v3065, %v3353
      %v3355 = vpop.f32.mrb[0].mxu0
      %3356 = vmatprep.mubr.bf16.mxu0 %v1728
      %3357 = vmatmul.mubr.bf16.gmra.mrb[0].mxu0 %v1727
      %v3358 = vpop.f32.mrb[0].mxu0
      %v3359 = vadd.f32 %v3070, %v3358
      %v3360 = vpop.f32.mrb[0].mxu0
      %v3361 = vpop.f32.mrb[0].mxu0
      %v3362 = vadd.f32 %v3073, %v3361
      %v3363 = vpop.f32.mrb[0].mxu0
      %3364 = vmatprep.mubr.bf16.mxu0 %v1737
      %3365 = vmatmul.mubr.bf16.gmra.mrb[0].mxu0 %v1736
      %v3366 = vpop.f32.mrb[0].mxu0
      %v3367 = vadd.f32 %v3078, %v3366
      %v3368 = vpop.f32.mrb[0].mxu0
      %v3369 = vpop.f32.mrb[0].mxu0
      %v3370 = vadd.f32 %v3081, %v3369
      %v3371 = vpop.f32.mrb[0].mxu0
      %3372 = vmatprep.mubr.bf16.mxu0 %v1746
      %3373 = vmatmul.mubr.bf16.gmra.mrb[0].mxu0 %v1745
      %v3374 = vpop.f32.mrb[0].mxu0
      %v3375 = vadd.f32 %v3086, %v3374
      %v3376 = vpop.f32.mrb[0].mxu0
      %v3377 = vpop.f32.mrb[0].mxu0
      %v3378 = vadd.f32 %v3089, %v3377
      %v3379 = vpop.f32.mrb[0].mxu0
      %3380 = vmatprep.mubr.bf16.mxu0 %v1755
      %3381 = vmatmul.mubr.bf16.gmra.mrb[0].mxu0 %v1754
      %v3382 = vpop.f32.mrb[0].mxu0
      %v3383 = vadd.f32 %v3094, %v3382
      %v3384 = vpop.f32.mrb[0].mxu0
      %v3385 = vpop.f32.mrb[0].mxu0
      %v3386 = vadd.f32 %v3097, %v3385
      %v3387 = vpop.f32.mrb[0].mxu0
      %3388 = vmatprep.mubr.bf16.mxu0 %v1764
      %3389 = vmatmul.mubr.bf16.gmra.mrb[0].mxu0 %v1763
      %v3390 = vpop.f32.mrb[0].mxu0
      %v3391 = vadd.f32 %v3102, %v3390
      %v3392 = vpop.f32.mrb[0].mxu0
      %v3393 = vpop.f32.mrb[0].mxu0
      %v3394 = vadd.f32 %v3105, %v3393
      %v3395 = vpop.f32.mrb[0].mxu0
      %3396 = vmatprep.mubr.bf16.mxu0 %v1773
      %3397 = vmatmul.mubr.bf16.gmra.mrb[0].mxu0 %v1772
      %v3398 = vpop.f32.mrb[0].mxu0
      %v3399 = vadd.f32 %v3110, %v3398
      %v3400 = vpop.f32.mrb[0].mxu0
      %v3401 = vpop.f32.mrb[0].mxu0
      %v3402 = vadd.f32 %v3113, %v3401
      %v3403 = vpop.f32.mrb[0].mxu0
      %3404 = vmatprep.mubr.bf16.mxu0 %v1782
      %3405 = vmatmul.mubr.bf16.gmra.mrb[0].mxu0 %v1781
      %v3406 = vpop.f32.mrb[0].mxu0
      %v3407 = vadd.f32 %v3118, %v3406
      %v3408 = vpop.f32.mrb[0].mxu0
      %v3409 = vpop.f32.mrb[0].mxu0
      %v3410 = vadd.f32 %v3121, %v3409
      %v3411 = vpop.f32.mrb[0].mxu0
      %3412 = vmatprep.mubr.bf16.mxu0 %v1791
      %3413 = vmatmul.mubr.bf16.gmra.mrb[0].mxu0 %v1790
      %v3414 = vpop.f32.mrb[0].mxu0
      %v3415 = vadd.f32 %v3126, %v3414
      %v3416 = vpop.f32.mrb[0].mxu0
      %v3417 = vpop.f32.mrb[0].mxu0
      %v3418 = vadd.f32 %v3129, %v3417
      %v3419 = vpop.f32.mrb[0].mxu0
      %3420 = vmatprep.mubr.bf16.mxu0 %v1800
      %3421 = vmatmul.mubr.bf16.gmra.mrb[0].mxu0 %v1799
      %v3422 = vpop.f32.mrb[0].mxu0
      %v3423 = vadd.f32 %v3134, %v3422
      %v3424 = vpop.f32.mrb[0].mxu0
      %v3425 = vpop.f32.mrb[0].mxu0
      %v3426 = vadd.f32 %v3137, %v3425
      %v3427 = vpop.f32.mrb[0].mxu0
      %3428 = vmatprep.mubr.bf16.mxu0 %v1809
      %3429 = vmatmul.mubr.bf16.gmra.mrb[0].mxu0 %v1808
      %v3430 = vpop.f32.mrb[0].mxu0
      %v3431 = vadd.f32 %v3142, %v3430
      %v3432 = vpop.f32.mrb[0].mxu0
      %v3433 = vpop.f32.mrb[0].mxu0
      %v3434 = vadd.f32 %v3145, %v3433
      %v3435 = vpop.f32.mrb[0].mxu0
      %3436 = vmatprep.mubr.bf16.mxu0 %v1818
      %3437 = vmatmul.mubr.bf16.gmra.mrb[0].mxu0 %v1817
      %v3438 = vpop.f32.mrb[0].mxu0
      %v3439 = vadd.f32 %v3150, %v3438
      %v3440 = vpop.f32.mrb[0].mxu0
      %v3441 = vpop.f32.mrb[0].mxu0
      %v3442 = vadd.f32 %v3153, %v3441
      %v3443 = vpop.f32.mrb[0].mxu0
      %3444 = vmatprep.mubr.bf16.mxu0 %v1827
      %3445 = vmatmul.mubr.bf16.gmra.mrb[0].mxu0 %v1826
      %v3446 = vpop.f32.mrb[0].mxu0
      %v3447 = vadd.f32 %v3158, %v3446
      %v3448 = vpop.f32.mrb[0].mxu0
      %v3449 = vpop.f32.mrb[0].mxu0
      %v3450 = vadd.f32 %v3161, %v3449
      %v3451 = vpop.f32.mrb[0].mxu0
      %3452 = vmatprep.mubr.bf16.mxu0 %v1836
      %3453 = vmatmul.mubr.bf16.gmra.mrb[0].mxu0 %v1835
      %v3454 = vpop.f32.mrb[0].mxu0
      %v3455 = vadd.f32 %v3166, %v3454
      %v3456 = vpop.f32.mrb[0].mxu0
      %v3457 = vpop.f32.mrb[0].mxu0
      %v3458 = vadd.f32 %v3169, %v3457
      %v3459 = vpop.f32.mrb[0].mxu0
      %3460 = vmatprep.mubr.bf16.mxu0 %v1845
      %3461 = vmatmul.mubr.bf16.gmra.mrb[0].mxu0 %v1844
      %v3462 = vpop.f32.mrb[0].mxu0
      %v3463 = vadd.f32 %v3174, %v3462
      %v3464 = vpop.f32.mrb[0].mxu0
      %v3465 = vpop.f32.mrb[0].mxu0
      %v3466 = vadd.f32 %v3177, %v3465
      %v3467 = vpop.f32.mrb[0].mxu0
      %3468 = vmatprep.mubr.bf16.mxu0 %v1854
      %3469 = vmatmul.mubr.bf16.gmra.mrb[0].mxu0 %v1853
      %v3470 = vpop.f32.mrb[0].mxu0
      %v3471 = vadd.f32 %v3182, %v3470
      %v3472 = vpop.f32.mrb[0].mxu0
      %v3473 = vpop.f32.mrb[0].mxu0
      %v3474 = vadd.f32 %v3185, %v3473
      %v3475 = vpop.f32.mrb[0].mxu0
      %3476 = vmatprep.mubr.bf16.mxu0 %v1863
      %3477 = vmatmul.mubr.bf16.gmra.mrb[0].mxu0 %v1862
      %v3478 = vpop.f32.mrb[0].mxu0
      %v3479 = vadd.f32 %v3190, %v3478
      %v3480 = vpop.f32.mrb[0].mxu0
      %v3481 = vpop.f32.mrb[0].mxu0
      %v3482 = vadd.f32 %v3193, %v3481
      %v3483 = vpop.f32.mrb[0].mxu0
      %3484 = vmatprep.mubr.bf16.mxu0 %v1872
      %3485 = vmatmul.mubr.bf16.gmra.mrb[0].mxu0 %v1871
      %v3486 = vpop.f32.mrb[0].mxu0
      %v3487 = vadd.f32 %v3198, %v3486
      %v3488 = vpop.f32.mrb[0].mxu0
      %v3489 = vpop.f32.mrb[0].mxu0
      %v3490 = vadd.f32 %v3201, %v3489
      %v3491 = vpop.f32.mrb[0].mxu0
      %3492 = vmatprep.mubr.bf16.mxu0 %v1881
      %3493 = vmatmul.mubr.bf16.gmra.mrb[0].mxu0 %v1880
      %v3494 = vpop.f32.mrb[0].mxu0
      %v3495 = vadd.f32 %v3206, %v3494
      %v3496 = vpop.f32.mrb[0].mxu0
      %v3497 = vpop.f32.mrb[0].mxu0
      %v3498 = vadd.f32 %v3209, %v3497
      %v3499 = vpop.f32.mrb[0].mxu0
      %3500 = vmatprep.mubr.bf16.mxu0 %v1890
      %3501 = vmatmul.mubr.bf16.gmra.mrb[0].mxu0 %v1889
      %v3502 = vpop.f32.mrb[0].mxu0
      %v3503 = vadd.f32 %v3214, %v3502
      %v3504 = vpop.f32.mrb[0].mxu0
      %v3505 = vpop.f32.mrb[0].mxu0
      %v3506 = vadd.f32 %v3217, %v3505
      %v3507 = vpop.f32.mrb[0].mxu0
      %3508 = vmatprep.mubr.bf16.mxu0 %v1899
      %3509 = vmatmul.mubr.bf16.gmra.mrb[0].mxu0 %v1898
      %v3510 = vpop.f32.mrb[0].mxu0
      %v3511 = vadd.f32 %v3222, %v3510
      %v3512 = vpop.f32.mrb[0].mxu0
      %v3513 = vpop.f32.mrb[0].mxu0
      %v3514 = vadd.f32 %v3225, %v3513
      %v3515 = vpop.f32.mrb[0].mxu0
      %3516 = vdwg.mxu0
      %3517 = vmatprep.subr.bf16.mxu0 0
      %3518 = vmatpush1.bf16.msra.mxu0 %v2465
      %3519 = vmatprep.subr.bf16.mxu0 0
      %3520 = vmatpush1.bf16.msra.mxu0 %v2466
      %3521 = vmatprep.subr.bf16.mxu0 0
      %3522 = vmatpush1.bf16.msra.mxu0 %v2467
      %3523 = vmatprep.subr.bf16.mxu0 0
      %3524 = vmatpush1.bf16.msra.mxu0 %v2468
      %3525 = vmatprep.subr.bf16.mxu0 0
      %3526 = vmatpush1.bf16.msra.mxu0 %v2469
      %3527 = vmatprep.subr.bf16.mxu0 0
      %3528 = vmatpush1.bf16.msra.mxu0 %v2470
      %3529 = vmatprep.subr.bf16.mxu0 0
      %3530 = vmatpush1.bf16.msra.mxu0 %v2471
      %3531 = vmatprep.subr.bf16.mxu0 0
      %3532 = vmatpush1.bf16.msra.mxu0 %v2472
      %3533 = vmatprep.subr.bf16.mxu0 0
      %3534 = vmatpush1.bf16.msra.mxu0 %v2473
      %3535 = vmatprep.subr.bf16.mxu0 0
      %3536 = vmatpush1.bf16.msra.mxu0 %v2474
      %3537 = vmatprep.subr.bf16.mxu0 0
      %3538 = vmatpush1.bf16.msra.mxu0 %v2475
      %3539 = vmatprep.subr.bf16.mxu0 0
      %3540 = vmatpush1.bf16.msra.mxu0 %v2476
      %3541 = vmatprep.subr.bf16.mxu0 0
      %3542 = vmatpush1.bf16.msra.mxu0 %v2477
      %3543 = vmatprep.subr.bf16.mxu0 0
      %3544 = vmatpush1.bf16.msra.mxu0 %v2478
      %3545 = vmatprep.subr.bf16.mxu0 0
      %3546 = vmatpush1.bf16.msra.mxu0 %v2479
      %3547 = vmatprep.subr.bf16.mxu0 0
      %3548 = vmatpush1.bf16.msra.mxu0 %v2480
      %3549 = vmatprep.mubr.bf16.mxu0 %v1622
      %3550 = vmatmul.mubr.bf16.gmra.mrb[0].mxu0 %v1621
      %v3551 = vpop.f32.mrb[0].mxu0
      %v3552 = vadd.f32 %v3263, %v3551
      %v3553 = vpop.f32.mrb[0].mxu0
      %v3554 = vpop.f32.mrb[0].mxu0
      %v3555 = vadd.f32 %v3266, %v3554
      %v3556 = vpop.f32.mrb[0].mxu0
      %3557 = vmatprep.mubr.bf16.mxu0 %v1631
      %3558 = vmatmul.mubr.bf16.gmra.mrb[0].mxu0 %v1630
      %v3559 = vpop.f32.mrb[0].mxu0
      %v3560 = vadd.f32 %v3271, %v3559
      %v3561 = vpop.f32.mrb[0].mxu0
      %v3562 = vpop.f32.mrb[0].mxu0
      %v3563 = vadd.f32 %v3274, %v3562
      %v3564 = vpop.f32.mrb[0].mxu0
      %3565 = vmatprep.mubr.bf16.mxu0 %v1640
      %3566 = vmatmul.mubr.bf16.gmra.mrb[0].mxu0 %v1639
      %v3567 = vpop.f32.mrb[0].mxu0
      %v3568 = vadd.f32 %v3279, %v3567
      %v3569 = vpop.f32.mrb[0].mxu0
      %v3570 = vpop.f32.mrb[0].mxu0
      %v3571 = vadd.f32 %v3282, %v3570
      %v3572 = vpop.f32.mrb[0].mxu0
      %3573 = vmatprep.mubr.bf16.mxu0 %v1649
      %3574 = vmatmul.mubr.bf16.gmra.mrb[0].mxu0 %v1648
      %v3575 = vpop.f32.mrb[0].mxu0
      %v3576 = vadd.f32 %v3287, %v3575
      %v3577 = vpop.f32.mrb[0].mxu0
      %v3578 = vpop.f32.mrb[0].mxu0
      %v3579 = vadd.f32 %v3290, %v3578
      %v3580 = vpop.f32.mrb[0].mxu0
      %3581 = vmatprep.mubr.bf16.mxu0 %v1658
      %3582 = vmatmul.mubr.bf16.gmra.mrb[0].mxu0 %v1657
      %v3583 = vpop.f32.mrb[0].mxu0
      %v3584 = vadd.f32 %v3295, %v3583
      %v3585 = vpop.f32.mrb[0].mxu0
      %v3586 = vpop.f32.mrb[0].mxu0
      %v3587 = vadd.f32 %v3298, %v3586
      %v3588 = vpop.f32.mrb[0].mxu0
      %3589 = vmatprep.mubr.bf16.mxu0 %v1667
      %3590 = vmatmul.mubr.bf16.gmra.mrb[0].mxu0 %v1666
      %v3591 = vpop.f32.mrb[0].mxu0
      %v3592 = vadd.f32 %v3303, %v3591
      %v3593 = vpop.f32.mrb[0].mxu0
      %v3594 = vpop.f32.mrb[0].mxu0
      %v3595 = vadd.f32 %v3306, %v3594
      %v3596 = vpop.f32.mrb[0].mxu0
      %3597 = vmatprep.mubr.bf16.mxu0 %v1676
      %3598 = vmatmul.mubr.bf16.gmra.mrb[0].mxu0 %v1675
      %v3599 = vpop.f32.mrb[0].mxu0
      %v3600 = vadd.f32 %v3311, %v3599
      %v3601 = vpop.f32.mrb[0].mxu0
      %v3602 = vpop.f32.mrb[0].mxu0
      %v3603 = vadd.f32 %v3314, %v3602
      %v3604 = vpop.f32.mrb[0].mxu0
      %3605 = vmatprep.mubr.bf16.mxu0 %v1685
      %3606 = vmatmul.mubr.bf16.gmra.mrb[0].mxu0 %v1684
      %v3607 = vpop.f32.mrb[0].mxu0
      %v3608 = vadd.f32 %v3319, %v3607
      %v3609 = vpop.f32.mrb[0].mxu0
      %v3610 = vpop.f32.mrb[0].mxu0
      %v3611 = vadd.f32 %v3322, %v3610
      %v3612 = vpop.f32.mrb[0].mxu0
      %3613 = vmatprep.mubr.bf16.mxu0 %v1694
      %3614 = vmatmul.mubr.bf16.gmra.mrb[0].mxu0 %v1693
      %v3615 = vpop.f32.mrb[0].mxu0
      %v3616 = vadd.f32 %v3327, %v3615
      %v3617 = vpop.f32.mrb[0].mxu0
      %v3618 = vpop.f32.mrb[0].mxu0
      %v3619 = vadd.f32 %v3330, %v3618
      %v3620 = vpop.f32.mrb[0].mxu0
      %3621 = vmatprep.mubr.bf16.mxu0 %v1703
      %3622 = vmatmul.mubr.bf16.gmra.mrb[0].mxu0 %v1702
      %v3623 = vpop.f32.mrb[0].mxu0
      %v3624 = vadd.f32 %v3335, %v3623
      %v3625 = vpop.f32.mrb[0].mxu0
      %v3626 = vpop.f32.mrb[0].mxu0
      %v3627 = vadd.f32 %v3338, %v3626
      %v3628 = vpop.f32.mrb[0].mxu0
      %3629 = vmatprep.mubr.bf16.mxu0 %v1712
      %3630 = vmatmul.mubr.bf16.gmra.mrb[0].mxu0 %v1711
      %v3631 = vpop.f32.mrb[0].mxu0
      %v3632 = vadd.f32 %v3343, %v3631
      %v3633 = vpop.f32.mrb[0].mxu0
      %v3634 = vpop.f32.mrb[0].mxu0
      %v3635 = vadd.f32 %v3346, %v3634
      %v3636 = vpop.f32.mrb[0].mxu0
      %3637 = vmatprep.mubr.bf16.mxu0 %v1721
      %3638 = vmatmul.mubr.bf16.gmra.mrb[0].mxu0 %v1720
      %v3639 = vpop.f32.mrb[0].mxu0
      %v3640 = vadd.f32 %v3351, %v3639
      %v3641 = vpop.f32.mrb[0].mxu0
      %v3642 = vpop.f32.mrb[0].mxu0
      %v3643 = vadd.f32 %v3354, %v3642
      %v3644 = vpop.f32.mrb[0].mxu0
      %3645 = vmatprep.mubr.bf16.mxu0 %v1730
      %3646 = vmatmul.mubr.bf16.gmra.mrb[0].mxu0 %v1729
      %v3647 = vpop.f32.mrb[0].mxu0
      %v3648 = vadd.f32 %v3359, %v3647
      %v3649 = vpop.f32.mrb[0].mxu0
      %v3650 = vpop.f32.mrb[0].mxu0
      %v3651 = vadd.f32 %v3362, %v3650
      %v3652 = vpop.f32.mrb[0].mxu0
      %3653 = vmatprep.mubr.bf16.mxu0 %v1739
      %3654 = vmatmul.mubr.bf16.gmra.mrb[0].mxu0 %v1738
      %v3655 = vpop.f32.mrb[0].mxu0
      %v3656 = vadd.f32 %v3367, %v3655
      %v3657 = vpop.f32.mrb[0].mxu0
      %v3658 = vpop.f32.mrb[0].mxu0
      %v3659 = vadd.f32 %v3370, %v3658
      %v3660 = vpop.f32.mrb[0].mxu0
      %3661 = vmatprep.mubr.bf16.mxu0 %v1748
      %3662 = vmatmul.mubr.bf16.gmra.mrb[0].mxu0 %v1747
      %v3663 = vpop.f32.mrb[0].mxu0
      %v3664 = vadd.f32 %v3375, %v3663
      %v3665 = vpop.f32.mrb[0].mxu0
      %v3666 = vpop.f32.mrb[0].mxu0
      %v3667 = vadd.f32 %v3378, %v3666
      %v3668 = vpop.f32.mrb[0].mxu0
      %3669 = vmatprep.mubr.bf16.mxu0 %v1757
      %3670 = vmatmul.mubr.bf16.gmra.mrb[0].mxu0 %v1756
      %v3671 = vpop.f32.mrb[0].mxu0
      %v3672 = vadd.f32 %v3383, %v3671
      %v3673 = vpop.f32.mrb[0].mxu0
      %v3674 = vpop.f32.mrb[0].mxu0
      %v3675 = vadd.f32 %v3386, %v3674
      %v3676 = vpop.f32.mrb[0].mxu0
      %3677 = vmatprep.mubr.bf16.mxu0 %v1766
      %3678 = vmatmul.mubr.bf16.gmra.mrb[0].mxu0 %v1765
      %v3679 = vpop.f32.mrb[0].mxu0
      %v3680 = vadd.f32 %v3391, %v3679
      %v3681 = vpop.f32.mrb[0].mxu0
      %v3682 = vpop.f32.mrb[0].mxu0
      %v3683 = vadd.f32 %v3394, %v3682
      %v3684 = vpop.f32.mrb[0].mxu0
      %3685 = vmatprep.mubr.bf16.mxu0 %v1775
      %3686 = vmatmul.mubr.bf16.gmra.mrb[0].mxu0 %v1774
      %v3687 = vpop.f32.mrb[0].mxu0
      %v3688 = vadd.f32 %v3399, %v3687
      %v3689 = vpop.f32.mrb[0].mxu0
      %v3690 = vpop.f32.mrb[0].mxu0
      %v3691 = vadd.f32 %v3402, %v3690
      %v3692 = vpop.f32.mrb[0].mxu0
      %3693 = vmatprep.mubr.bf16.mxu0 %v1784
      %3694 = vmatmul.mubr.bf16.gmra.mrb[0].mxu0 %v1783
      %v3695 = vpop.f32.mrb[0].mxu0
      %v3696 = vadd.f32 %v3407, %v3695
      %v3697 = vpop.f32.mrb[0].mxu0
      %v3698 = vpop.f32.mrb[0].mxu0
      %v3699 = vadd.f32 %v3410, %v3698
      %v3700 = vpop.f32.mrb[0].mxu0
      %3701 = vmatprep.mubr.bf16.mxu0 %v1793
      %3702 = vmatmul.mubr.bf16.gmra.mrb[0].mxu0 %v1792
      %v3703 = vpop.f32.mrb[0].mxu0
      %v3704 = vadd.f32 %v3415, %v3703
      %v3705 = vpop.f32.mrb[0].mxu0
      %v3706 = vpop.f32.mrb[0].mxu0
      %v3707 = vadd.f32 %v3418, %v3706
      %v3708 = vpop.f32.mrb[0].mxu0
      %3709 = vmatprep.mubr.bf16.mxu0 %v1802
      %3710 = vmatmul.mubr.bf16.gmra.mrb[0].mxu0 %v1801
      %v3711 = vpop.f32.mrb[0].mxu0
      %v3712 = vadd.f32 %v3423, %v3711
      %v3713 = vpop.f32.mrb[0].mxu0
      %v3714 = vpop.f32.mrb[0].mxu0
      %v3715 = vadd.f32 %v3426, %v3714
      %v3716 = vpop.f32.mrb[0].mxu0
      %3717 = vmatprep.mubr.bf16.mxu0 %v1811
      %3718 = vmatmul.mubr.bf16.gmra.mrb[0].mxu0 %v1810
      %v3719 = vpop.f32.mrb[0].mxu0
      %v3720 = vadd.f32 %v3431, %v3719
      %v3721 = vpop.f32.mrb[0].mxu0
      %v3722 = vpop.f32.mrb[0].mxu0
      %v3723 = vadd.f32 %v3434, %v3722
      %v3724 = vpop.f32.mrb[0].mxu0
      %3725 = vmatprep.mubr.bf16.mxu0 %v1820
      %3726 = vmatmul.mubr.bf16.gmra.mrb[0].mxu0 %v1819
      %v3727 = vpop.f32.mrb[0].mxu0
      %v3728 = vadd.f32 %v3439, %v3727
      %v3729 = vpop.f32.mrb[0].mxu0
      %v3730 = vpop.f32.mrb[0].mxu0
      %v3731 = vadd.f32 %v3442, %v3730
      %v3732 = vpop.f32.mrb[0].mxu0
      %3733 = vmatprep.mubr.bf16.mxu0 %v1829
      %3734 = vmatmul.mubr.bf16.gmra.mrb[0].mxu0 %v1828
      %v3735 = vpop.f32.mrb[0].mxu0
      %v3736 = vadd.f32 %v3447, %v3735
      %v3737 = vpop.f32.mrb[0].mxu0
      %v3738 = vpop.f32.mrb[0].mxu0
      %v3739 = vadd.f32 %v3450, %v3738
      %v3740 = vpop.f32.mrb[0].mxu0
      %3741 = vmatprep.mubr.bf16.mxu0 %v1838
      %3742 = vmatmul.mubr.bf16.gmra.mrb[0].mxu0 %v1837
      %v3743 = vpop.f32.mrb[0].mxu0
      %v3744 = vadd.f32 %v3455, %v3743
      %v3745 = vpop.f32.mrb[0].mxu0
      %v3746 = vpop.f32.mrb[0].mxu0
      %v3747 = vadd.f32 %v3458, %v3746
      %v3748 = vpop.f32.mrb[0].mxu0
      %3749 = vmatprep.mubr.bf16.mxu0 %v1847
      %3750 = vmatmul.mubr.bf16.gmra.mrb[0].mxu0 %v1846
      %v3751 = vpop.f32.mrb[0].mxu0
      %v3752 = vadd.f32 %v3463, %v3751
      %v3753 = vpop.f32.mrb[0].mxu0
      %v3754 = vpop.f32.mrb[0].mxu0
      %v3755 = vadd.f32 %v3466, %v3754
      %v3756 = vpop.f32.mrb[0].mxu0
      %3757 = vmatprep.mubr.bf16.mxu0 %v1856
      %3758 = vmatmul.mubr.bf16.gmra.mrb[0].mxu0 %v1855
      %v3759 = vpop.f32.mrb[0].mxu0
      %v3760 = vadd.f32 %v3471, %v3759
      %v3761 = vpop.f32.mrb[0].mxu0
      %v3762 = vpop.f32.mrb[0].mxu0
      %v3763 = vadd.f32 %v3474, %v3762
      %v3764 = vpop.f32.mrb[0].mxu0
      %3765 = vmatprep.mubr.bf16.mxu0 %v1865
      %3766 = vmatmul.mubr.bf16.gmra.mrb[0].mxu0 %v1864
      %v3767 = vpop.f32.mrb[0].mxu0
      %v3768 = vadd.f32 %v3479, %v3767
      %v3769 = vpop.f32.mrb[0].mxu0
      %v3770 = vpop.f32.mrb[0].mxu0
      %v3771 = vadd.f32 %v3482, %v3770
      %v3772 = vpop.f32.mrb[0].mxu0
      %3773 = vmatprep.mubr.bf16.mxu0 %v1874
      %3774 = vmatmul.mubr.bf16.gmra.mrb[0].mxu0 %v1873
      %v3775 = vpop.f32.mrb[0].mxu0
      %v3776 = vadd.f32 %v3487, %v3775
      %v3777 = vpop.f32.mrb[0].mxu0
      %v3778 = vpop.f32.mrb[0].mxu0
      %v3779 = vadd.f32 %v3490, %v3778
      %v3780 = vpop.f32.mrb[0].mxu0
      %3781 = vmatprep.mubr.bf16.mxu0 %v1883
      %3782 = vmatmul.mubr.bf16.gmra.mrb[0].mxu0 %v1882
      %v3783 = vpop.f32.mrb[0].mxu0
      %v3784 = vadd.f32 %v3495, %v3783
      %v3785 = vpop.f32.mrb[0].mxu0
      %v3786 = vpop.f32.mrb[0].mxu0
      %v3787 = vadd.f32 %v3498, %v3786
      %v3788 = vpop.f32.mrb[0].mxu0
      %3789 = vmatprep.mubr.bf16.mxu0 %v1892
      %3790 = vmatmul.mubr.bf16.gmra.mrb[0].mxu0 %v1891
      %v3791 = vpop.f32.mrb[0].mxu0
      %v3792 = vadd.f32 %v3503, %v3791
      %v3793 = vpop.f32.mrb[0].mxu0
      %v3794 = vpop.f32.mrb[0].mxu0
      %v3795 = vadd.f32 %v3506, %v3794
      %v3796 = vpop.f32.mrb[0].mxu0
      %3797 = vmatprep.mubr.bf16.mxu0 %v1901
      %3798 = vmatmul.mubr.bf16.gmra.mrb[0].mxu0 %v1900
      %v3799 = vpop.f32.mrb[0].mxu0
      %v3800 = vadd.f32 %v3511, %v3799
      %v3801 = vpop.f32.mrb[0].mxu0
      %v3802 = vpop.f32.mrb[0].mxu0
      %v3803 = vadd.f32 %v3514, %v3802
      %v3804 = vpop.f32.mrb[0].mxu0
      %3805 = vdwg.mxu0
      %3806 = vmatprep.subr.bf16.mxu0 0
      %3807 = vmatpush1.bf16.msra.mxu0 %v2648
      %3808 = vmatprep.subr.bf16.mxu0 0
      %3809 = vmatpush1.bf16.msra.mxu0 0
      %3810 = vmatprep.subr.bf16.mxu0 0
      %3811 = vmatpush1.bf16.msra.mxu0 0
      %3812 = vmatprep.subr.bf16.mxu0 0
      %3813 = vmatpush1.bf16.msra.mxu0 0
      %3814 = vmatprep.subr.bf16.mxu0 0
      %3815 = vmatpush1.bf16.msra.mxu0 0
      %3816 = vmatprep.subr.bf16.mxu0 0
      %3817 = vmatpush1.bf16.msra.mxu0 0
      %3818 = vmatprep.subr.bf16.mxu0 0
      %3819 = vmatpush1.bf16.msra.mxu0 0
      %3820 = vmatprep.subr.bf16.mxu0 0
      %3821 = vmatpush1.bf16.msra.mxu0 0
      %3822 = vmatprep.subr.bf16.mxu0 0
      %3823 = vmatpush1.bf16.msra.mxu0 0
      %3824 = vmatprep.subr.bf16.mxu0 0
      %3825 = vmatpush1.bf16.msra.mxu0 0
      %3826 = vmatprep.subr.bf16.mxu0 0
      %3827 = vmatpush1.bf16.msra.mxu0 0
      %3828 = vmatprep.subr.bf16.mxu0 0
      %3829 = vmatpush1.bf16.msra.mxu0 0
      %3830 = vmatprep.subr.bf16.mxu0 0
      %3831 = vmatpush1.bf16.msra.mxu0 0
      %3832 = vmatprep.subr.bf16.mxu0 0
      %3833 = vmatpush1.bf16.msra.mxu0 0
      %3834 = vmatprep.subr.bf16.mxu0 0
      %3835 = vmatpush1.bf16.msra.mxu0 0
      %3836 = vmatprep.subr.bf16.mxu0 0
      %3837 = vmatpush1.bf16.msra.mxu0 0
      %3838 = vmatprep.mubr.bf16.mxu0 0
      %3839 = vmatmul.mubr.bf16.gmra.mrb[0].mxu0 %v2548
      %v3840 = vpop.f32.mrb[0].mxu0
      %v3841 = vadd.f32 %v3552, %v3840
      %v3842 = vpop.f32.mrb[0].mxu0
      %v3843 = vpop.f32.mrb[0].mxu0
      %v3844 = vadd.f32 %v3555, %v3843
      %v3845 = vpop.f32.mrb[0].mxu0
      %3846 = vmatprep.mubr.bf16.mxu0 0
      %3847 = vmatmul.mubr.bf16.gmra.mrb[0].mxu0 %v2551
      %v3848 = vpop.f32.mrb[0].mxu0
      %v3849 = vadd.f32 %v3560, %v3848
      %v3850 = vpop.f32.mrb[0].mxu0
      %v3851 = vpop.f32.mrb[0].mxu0
      %v3852 = vadd.f32 %v3563, %v3851
      %v3853 = vpop.f32.mrb[0].mxu0
      %3854 = vmatprep.mubr.bf16.mxu0 0
      %3855 = vmatmul.mubr.bf16.gmra.mrb[0].mxu0 %v2554
      %v3856 = vpop.f32.mrb[0].mxu0
      %v3857 = vadd.f32 %v3568, %v3856
      %v3858 = vpop.f32.mrb[0].mxu0
      %v3859 = vpop.f32.mrb[0].mxu0
      %v3860 = vadd.f32 %v3571, %v3859
      %v3861 = vpop.f32.mrb[0].mxu0
      %3862 = vmatprep.mubr.bf16.mxu0 0
      %3863 = vmatmul.mubr.bf16.gmra.mrb[0].mxu0 %v2557
      %v3864 = vpop.f32.mrb[0].mxu0
      %v3865 = vadd.f32 %v3576, %v3864
      %v3866 = vpop.f32.mrb[0].mxu0
      %v3867 = vpop.f32.mrb[0].mxu0
      %v3868 = vadd.f32 %v3579, %v3867
      %v3869 = vpop.f32.mrb[0].mxu0
      %3870 = vmatprep.mubr.bf16.mxu0 0
      %3871 = vmatmul.mubr.bf16.gmra.mrb[0].mxu0 %v2560
      %v3872 = vpop.f32.mrb[0].mxu0
      %v3873 = vadd.f32 %v3584, %v3872
      %v3874 = vpop.f32.mrb[0].mxu0
      %v3875 = vpop.f32.mrb[0].mxu0
      %v3876 = vadd.f32 %v3587, %v3875
      %v3877 = vpop.f32.mrb[0].mxu0
      %3878 = vmatprep.mubr.bf16.mxu0 0
      %3879 = vmatmul.mubr.bf16.gmra.mrb[0].mxu0 %v2563
      %v3880 = vpop.f32.mrb[0].mxu0
      %v3881 = vadd.f32 %v3592, %v3880
      %v3882 = vpop.f32.mrb[0].mxu0
      %v3883 = vpop.f32.mrb[0].mxu0
      %v3884 = vadd.f32 %v3595, %v3883
      %v3885 = vpop.f32.mrb[0].mxu0
      %3886 = vmatprep.mubr.bf16.mxu0 0
      %3887 = vmatmul.mubr.bf16.gmra.mrb[0].mxu0 %v2566
      %v3888 = vpop.f32.mrb[0].mxu0
      %v3889 = vadd.f32 %v3600, %v3888
      %v3890 = vpop.f32.mrb[0].mxu0
      %v3891 = vpop.f32.mrb[0].mxu0
      %v3892 = vadd.f32 %v3603, %v3891
      %v3893 = vpop.f32.mrb[0].mxu0
      %3894 = vmatprep.mubr.bf16.mxu0 0
      %3895 = vmatmul.mubr.bf16.gmra.mrb[0].mxu0 %v2569
      %v3896 = vpop.f32.mrb[0].mxu0
      %v3897 = vadd.f32 %v3608, %v3896
      %v3898 = vpop.f32.mrb[0].mxu0
      %v3899 = vpop.f32.mrb[0].mxu0
      %v3900 = vadd.f32 %v3611, %v3899
      %v3901 = vpop.f32.mrb[0].mxu0
      %3902 = vmatprep.mubr.bf16.mxu0 0
      %3903 = vmatmul.mubr.bf16.gmra.mrb[0].mxu0 %v2572
      %v3904 = vpop.f32.mrb[0].mxu0
      %v3905 = vadd.f32 %v3616, %v3904
      %v3906 = vpop.f32.mrb[0].mxu0
      %v3907 = vpop.f32.mrb[0].mxu0
      %v3908 = vadd.f32 %v3619, %v3907
      %v3909 = vpop.f32.mrb[0].mxu0
      %3910 = vmatprep.mubr.bf16.mxu0 0
      %3911 = vmatmul.mubr.bf16.gmra.mrb[0].mxu0 %v2575
      %v3912 = vpop.f32.mrb[0].mxu0
      %v3913 = vadd.f32 %v3624, %v3912
      %v3914 = vpop.f32.mrb[0].mxu0
      %v3915 = vpop.f32.mrb[0].mxu0
      %v3916 = vadd.f32 %v3627, %v3915
      %v3917 = vpop.f32.mrb[0].mxu0
      %3918 = vmatprep.mubr.bf16.mxu0 0
      %3919 = vmatmul.mubr.bf16.gmra.mrb[0].mxu0 %v2578
      %v3920 = vpop.f32.mrb[0].mxu0
      %v3921 = vadd.f32 %v3632, %v3920
      %v3922 = vpop.f32.mrb[0].mxu0
      %v3923 = vpop.f32.mrb[0].mxu0
      %v3924 = vadd.f32 %v3635, %v3923
      %v3925 = vpop.f32.mrb[0].mxu0
      %3926 = vmatprep.mubr.bf16.mxu0 0
      %3927 = vmatmul.mubr.bf16.gmra.mrb[0].mxu0 %v2581
      %v3928 = vpop.f32.mrb[0].mxu0
      %v3929 = vadd.f32 %v3640, %v3928
      %v3930 = vpop.f32.mrb[0].mxu0
      %v3931 = vpop.f32.mrb[0].mxu0
      %v3932 = vadd.f32 %v3643, %v3931
      %v3933 = vpop.f32.mrb[0].mxu0
      %3934 = vmatprep.mubr.bf16.mxu0 0
      %3935 = vmatmul.mubr.bf16.gmra.mrb[0].mxu0 %v2584
      %v3936 = vpop.f32.mrb[0].mxu0
      %v3937 = vadd.f32 %v3648, %v3936
      %v3938 = vpop.f32.mrb[0].mxu0
      %v3939 = vpop.f32.mrb[0].mxu0
      %v3940 = vadd.f32 %v3651, %v3939
      %v3941 = vpop.f32.mrb[0].mxu0
      %3942 = vmatprep.mubr.bf16.mxu0 0
      %3943 = vmatmul.mubr.bf16.gmra.mrb[0].mxu0 %v2587
      %v3944 = vpop.f32.mrb[0].mxu0
      %v3945 = vadd.f32 %v3656, %v3944
      %v3946 = vpop.f32.mrb[0].mxu0
      %v3947 = vpop.f32.mrb[0].mxu0
      %v3948 = vadd.f32 %v3659, %v3947
      %v3949 = vpop.f32.mrb[0].mxu0
      %3950 = vmatprep.mubr.bf16.mxu0 0
      %3951 = vmatmul.mubr.bf16.gmra.mrb[0].mxu0 %v2590
      %v3952 = vpop.f32.mrb[0].mxu0
      %v3953 = vadd.f32 %v3664, %v3952
      %v3954 = vpop.f32.mrb[0].mxu0
      %v3955 = vpop.f32.mrb[0].mxu0
      %v3956 = vadd.f32 %v3667, %v3955
      %v3957 = vpop.f32.mrb[0].mxu0
      %3958 = vmatprep.mubr.bf16.mxu0 0
      %3959 = vmatmul.mubr.bf16.gmra.mrb[0].mxu0 %v2593
      %v3960 = vpop.f32.mrb[0].mxu0
      %v3961 = vadd.f32 %v3672, %v3960
      %v3962 = vpop.f32.mrb[0].mxu0
      %v3963 = vpop.f32.mrb[0].mxu0
      %v3964 = vadd.f32 %v3675, %v3963
      %v3965 = vpop.f32.mrb[0].mxu0
      %3966 = vmatprep.mubr.bf16.mxu0 0
      %3967 = vmatmul.mubr.bf16.gmra.mrb[0].mxu0 %v2596
      %v3968 = vpop.f32.mrb[0].mxu0
      %v3969 = vadd.f32 %v3680, %v3968
      %v3970 = vpop.f32.mrb[0].mxu0
      %v3971 = vpop.f32.mrb[0].mxu0
      %v3972 = vadd.f32 %v3683, %v3971
      %v3973 = vpop.f32.mrb[0].mxu0
      %3974 = vmatprep.mubr.bf16.mxu0 0
      %3975 = vmatmul.mubr.bf16.gmra.mrb[0].mxu0 %v2599
      %v3976 = vpop.f32.mrb[0].mxu0
      %v3977 = vadd.f32 %v3688, %v3976
      %v3978 = vpop.f32.mrb[0].mxu0
      %v3979 = vpop.f32.mrb[0].mxu0
      %v3980 = vadd.f32 %v3691, %v3979
      %v3981 = vpop.f32.mrb[0].mxu0
      %3982 = vmatprep.mubr.bf16.mxu0 0
      %3983 = vmatmul.mubr.bf16.gmra.mrb[0].mxu0 %v2602
      %v3984 = vpop.f32.mrb[0].mxu0
      %v3985 = vadd.f32 %v3696, %v3984
      %v3986 = vpop.f32.mrb[0].mxu0
      %v3987 = vpop.f32.mrb[0].mxu0
      %v3988 = vadd.f32 %v3699, %v3987
      %v3989 = vpop.f32.mrb[0].mxu0
      %3990 = vmatprep.mubr.bf16.mxu0 0
      %3991 = vmatmul.mubr.bf16.gmra.mrb[0].mxu0 %v2605
      %v3992 = vpop.f32.mrb[0].mxu0
      %v3993 = vadd.f32 %v3704, %v3992
      %v3994 = vpop.f32.mrb[0].mxu0
      %v3995 = vpop.f32.mrb[0].mxu0
      %v3996 = vadd.f32 %v3707, %v3995
      %v3997 = vpop.f32.mrb[0].mxu0
      %3998 = vmatprep.mubr.bf16.mxu0 0
      %3999 = vmatmul.mubr.bf16.gmra.mrb[0].mxu0 %v2608
      %v4000 = vpop.f32.mrb[0].mxu0
      %v4001 = vadd.f32 %v3712, %v4000
      %v4002 = vpop.f32.mrb[0].mxu0
      %v4003 = vpop.f32.mrb[0].mxu0
      %v4004 = vadd.f32 %v3715, %v4003
      %v4005 = vpop.f32.mrb[0].mxu0
      %4006 = vmatprep.mubr.bf16.mxu0 0
      %4007 = vmatmul.mubr.bf16.gmra.mrb[0].mxu0 %v2611
      %v4008 = vpop.f32.mrb[0].mxu0
      %v4009 = vadd.f32 %v3720, %v4008
      %v4010 = vpop.f32.mrb[0].mxu0
      %v4011 = vpop.f32.mrb[0].mxu0
      %v4012 = vadd.f32 %v3723, %v4011
      %v4013 = vpop.f32.mrb[0].mxu0
      %4014 = vmatprep.mubr.bf16.mxu0 0
      %4015 = vmatmul.mubr.bf16.gmra.mrb[0].mxu0 %v2614
      %v4016 = vpop.f32.mrb[0].mxu0
      %v4017 = vadd.f32 %v3728, %v4016
      %v4018 = vpop.f32.mrb[0].mxu0
      %v4019 = vpop.f32.mrb[0].mxu0
      %v4020 = vadd.f32 %v3731, %v4019
      %v4021 = vpop.f32.mrb[0].mxu0
      %4022 = vmatprep.mubr.bf16.mxu0 0
      %4023 = vmatmul.mubr.bf16.gmra.mrb[0].mxu0 %v2617
      %v4024 = vpop.f32.mrb[0].mxu0
      %v4025 = vadd.f32 %v3736, %v4024
      %v4026 = vpop.f32.mrb[0].mxu0
      %v4027 = vpop.f32.mrb[0].mxu0
      %v4028 = vadd.f32 %v3739, %v4027
      %v4029 = vpop.f32.mrb[0].mxu0
      %4030 = vmatprep.mubr.bf16.mxu0 0
      %4031 = vmatmul.mubr.bf16.gmra.mrb[0].mxu0 %v2620
      %v4032 = vpop.f32.mrb[0].mxu0
      %v4033 = vadd.f32 %v3744, %v4032
      %v4034 = vpop.f32.mrb[0].mxu0
      %v4035 = vpop.f32.mrb[0].mxu0
      %v4036 = vadd.f32 %v3747, %v4035
      %v4037 = vpop.f32.mrb[0].mxu0
      %4038 = vmatprep.mubr.bf16.mxu0 0
      %4039 = vmatmul.mubr.bf16.gmra.mrb[0].mxu0 %v2623
      %v4040 = vpop.f32.mrb[0].mxu0
      %v4041 = vadd.f32 %v3752, %v4040
      %v4042 = vpop.f32.mrb[0].mxu0
      %v4043 = vpop.f32.mrb[0].mxu0
      %v4044 = vadd.f32 %v3755, %v4043
      %v4045 = vpop.f32.mrb[0].mxu0
      %4046 = vmatprep.mubr.bf16.mxu0 0
      %4047 = vmatmul.mubr.bf16.gmra.mrb[0].mxu0 %v2626
      %v4048 = vpop.f32.mrb[0].mxu0
      %v4049 = vadd.f32 %v3760, %v4048
      %v4050 = vpop.f32.mrb[0].mxu0
      %v4051 = vpop.f32.mrb[0].mxu0
      %v4052 = vadd.f32 %v3763, %v4051
      %v4053 = vpop.f32.mrb[0].mxu0
      %4054 = vmatprep.mubr.bf16.mxu0 0
      %4055 = vmatmul.mubr.bf16.gmra.mrb[0].mxu0 %v2629
      %v4056 = vpop.f32.mrb[0].mxu0
      %v4057 = vadd.f32 %v3768, %v4056
      %v4058 = vpop.f32.mrb[0].mxu0
      %v4059 = vpop.f32.mrb[0].mxu0
      %v4060 = vadd.f32 %v3771, %v4059
      %v4061 = vpop.f32.mrb[0].mxu0
      %4062 = vmatprep.mubr.bf16.mxu0 0
      %4063 = vmatmul.mubr.bf16.gmra.mrb[0].mxu0 %v2632
      %v4064 = vpop.f32.mrb[0].mxu0
      %v4065 = vadd.f32 %v3776, %v4064
      %v4066 = vpop.f32.mrb[0].mxu0
      %v4067 = vpop.f32.mrb[0].mxu0
      %v4068 = vadd.f32 %v3779, %v4067
      %v4069 = vpop.f32.mrb[0].mxu0
      %4070 = vmatprep.mubr.bf16.mxu0 0
      %4071 = vmatmul.mubr.bf16.gmra.mrb[0].mxu0 %v2635
      %v4072 = vpop.f32.mrb[0].mxu0
      %v4073 = vadd.f32 %v3784, %v4072
      %v4074 = vpop.f32.mrb[0].mxu0
      %v4075 = vpop.f32.mrb[0].mxu0
      %v4076 = vadd.f32 %v3787, %v4075
      %v4077 = vpop.f32.mrb[0].mxu0
      %4078 = vmatprep.mubr.bf16.mxu0 0
      %4079 = vmatmul.mubr.bf16.gmra.mrb[0].mxu0 %v2638
      %v4080 = vpop.f32.mrb[0].mxu0
      %v4081 = vadd.f32 %v3792, %v4080
      %v4082 = vpop.f32.mrb[0].mxu0
      %v4083 = vpop.f32.mrb[0].mxu0
      %v4084 = vadd.f32 %v3795, %v4083
      %v4085 = vpop.f32.mrb[0].mxu0
      %4086 = vmatprep.mubr.bf16.mxu0 0
      %4087 = vmatmul.mubr.bf16.gmra.mrb[0].mxu0 %v2641
      %v4088 = vpop.f32.mrb[0].mxu0
      %v4089 = vadd.f32 %v3800, %v4088
      %v4090 = vpop.f32.mrb[0].mxu0
      %v4091 = vpop.f32.mrb[0].mxu0
      %v4092 = vadd.f32 %v3803, %v4091
      %v4093 = vpop.f32.mrb[0].mxu0
      %4094 = vdwg.mxu0
      %v4095 = vld [vmem:[%s256] sm:$0x1]
      %v4097 = vlaneseq
      %v4098 = vshrl.u32 %v4097, 7
      %v4099 = vsub.s32 0, %v4098
      %v4100 = vrot.slane %v4095, %v4099
      %v4102 = vmul.f32 %v3841, %v4100
      %v4103 = vmul.f32 %v3844, %v4100
      %v4104 = vmul.f32 %v3849, %v4100
      %v4105 = vmul.f32 %v3852, %v4100
      %v4106 = vmul.f32 %v3857, %v4100
      %v4107 = vmul.f32 %v3860, %v4100
      %v4108 = vmul.f32 %v3865, %v4100
      %v4109 = vmul.f32 %v3868, %v4100
      %v4110 = vmul.f32 %v3873, %v4100
      %v4111 = vmul.f32 %v3876, %v4100
      %v4112 = vmul.f32 %v3881, %v4100
      %v4113 = vmul.f32 %v3884, %v4100
      %v4114 = vmul.f32 %v3889, %v4100
      %v4115 = vmul.f32 %v3892, %v4100
      %v4116 = vmul.f32 %v3897, %v4100
      %v4117 = vmul.f32 %v3900, %v4100
      %v4118 = vmul.f32 %v3905, %v4100
      %v4119 = vmul.f32 %v3908, %v4100
      %v4120 = vmul.f32 %v3913, %v4100
      %v4121 = vmul.f32 %v3916, %v4100
      %v4122 = vmul.f32 %v3921, %v4100
      %v4123 = vmul.f32 %v3924, %v4100
      %v4124 = vmul.f32 %v3929, %v4100
      %v4125 = vmul.f32 %v3932, %v4100
      %v4126 = vmul.f32 %v3937, %v4100
      %v4127 = vmul.f32 %v3940, %v4100
      %v4128 = vmul.f32 %v3945, %v4100
      %v4129 = vmul.f32 %v3948, %v4100
      %v4130 = vmul.f32 %v3953, %v4100
      %v4131 = vmul.f32 %v3956, %v4100
      %v4132 = vmul.f32 %v3961, %v4100
      %v4133 = vmul.f32 %v3964, %v4100
      %v4134 = vmul.f32 %v3969, %v4100
      %v4135 = vmul.f32 %v3972, %v4100
      %v4136 = vmul.f32 %v3977, %v4100
      %v4137 = vmul.f32 %v3980, %v4100
      %v4138 = vmul.f32 %v3985, %v4100
      %v4139 = vmul.f32 %v3988, %v4100
      %v4140 = vmul.f32 %v3993, %v4100
      %v4141 = vmul.f32 %v3996, %v4100
      %v4142 = vmul.f32 %v4001, %v4100
      %v4143 = vmul.f32 %v4004, %v4100
      %v4144 = vmul.f32 %v4009, %v4100
      %v4145 = vmul.f32 %v4012, %v4100
      %v4146 = vmul.f32 %v4017, %v4100
      %v4147 = vmul.f32 %v4020, %v4100
      %v4148 = vmul.f32 %v4025, %v4100
      %v4149 = vmul.f32 %v4028, %v4100
      %v4150 = vmul.f32 %v4033, %v4100
      %v4151 = vmul.f32 %v4036, %v4100
      %v4152 = vmul.f32 %v4041, %v4100
      %v4153 = vmul.f32 %v4044, %v4100
      %v4154 = vmul.f32 %v4049, %v4100
      %v4155 = vmul.f32 %v4052, %v4100
      %v4156 = vmul.f32 %v4057, %v4100
      %v4157 = vmul.f32 %v4060, %v4100
      %v4158 = vmul.f32 %v4065, %v4100
      %v4159 = vmul.f32 %v4068, %v4100
      %v4160 = vmul.f32 %v4073, %v4100
      %v4161 = vmul.f32 %v4076, %v4100
      %v4162 = vmul.f32 %v4081, %v4100
      %v4163 = vmul.f32 %v4084, %v4100
      %v4164 = vmul.f32 %v4089, %v4100
      %v4165 = vmul.f32 %v4092, %v4100
      %v4166 = vld [vmem:[%s259] sm:$0x1]
      %v4168 = vlaneseq
      %v4169 = vshrl.u32 %v4168, 7
      %v4170 = vsub.s32 0, %v4169
      %v4171 = vrot.slane %v4166, %v4170
      %v4173 = vadd.f32 %v4102, %v4171
      %v4174 = vadd.f32 %v4103, %v4171
      %v4175 = vadd.f32 %v4104, %v4171
      %v4176 = vadd.f32 %v4105, %v4171
      %v4177 = vadd.f32 %v4106, %v4171
      %v4178 = vadd.f32 %v4107, %v4171
      %v4179 = vadd.f32 %v4108, %v4171
      %v4180 = vadd.f32 %v4109, %v4171
      %v4181 = vadd.f32 %v4110, %v4171
      %v4182 = vadd.f32 %v4111, %v4171
      %v4183 = vadd.f32 %v4112, %v4171
      %v4184 = vadd.f32 %v4113, %v4171
      %v4185 = vadd.f32 %v4114, %v4171
      %v4186 = vadd.f32 %v4115, %v4171
      %v4187 = vadd.f32 %v4116, %v4171
      %v4188 = vadd.f32 %v4117, %v4171
      %v4189 = vadd.f32 %v4118, %v4171
      %v4190 = vadd.f32 %v4119, %v4171
      %v4191 = vadd.f32 %v4120, %v4171
      %v4192 = vadd.f32 %v4121, %v4171
      %v4193 = vadd.f32 %v4122, %v4171
      %v4194 = vadd.f32 %v4123, %v4171
      %v4195 = vadd.f32 %v4124, %v4171
      %v4196 = vadd.f32 %v4125, %v4171
      %v4197 = vadd.f32 %v4126, %v4171
      %v4198 = vadd.f32 %v4127, %v4171
      %v4199 = vadd.f32 %v4128, %v4171
      %v4200 = vadd.f32 %v4129, %v4171
      %v4201 = vadd.f32 %v4130, %v4171
      %v4202 = vadd.f32 %v4131, %v4171
      %v4203 = vadd.f32 %v4132, %v4171
      %v4204 = vadd.f32 %v4133, %v4171
      %v4205 = vadd.f32 %v4134, %v4171
      %v4206 = vadd.f32 %v4135, %v4171
      %v4207 = vadd.f32 %v4136, %v4171
      %v4208 = vadd.f32 %v4137, %v4171
      %v4209 = vadd.f32 %v4138, %v4171
      %v4210 = vadd.f32 %v4139, %v4171
      %v4211 = vadd.f32 %v4140, %v4171
      %v4212 = vadd.f32 %v4141, %v4171
      %v4213 = vadd.f32 %v4142, %v4171
      %v4214 = vadd.f32 %v4143, %v4171
      %v4215 = vadd.f32 %v4144, %v4171
      %v4216 = vadd.f32 %v4145, %v4171
      %v4217 = vadd.f32 %v4146, %v4171
      %v4218 = vadd.f32 %v4147, %v4171
      %v4219 = vadd.f32 %v4148, %v4171
      %v4220 = vadd.f32 %v4149, %v4171
      %v4221 = vadd.f32 %v4150, %v4171
      %v4222 = vadd.f32 %v4151, %v4171
      %v4223 = vadd.f32 %v4152, %v4171
      %v4224 = vadd.f32 %v4153, %v4171
      %v4225 = vadd.f32 %v4154, %v4171
      %v4226 = vadd.f32 %v4155, %v4171
      %v4227 = vadd.f32 %v4156, %v4171
      %v4228 = vadd.f32 %v4157, %v4171
      %v4229 = vadd.f32 %v4158, %v4171
      %v4230 = vadd.f32 %v4159, %v4171
      %v4231 = vadd.f32 %v4160, %v4171
      %v4232 = vadd.f32 %v4161, %v4171
      %v4233 = vadd.f32 %v4162, %v4171
      %v4234 = vadd.f32 %v4163, %v4171
      %v4235 = vadd.f32 %v4164, %v4171
      %v4236 = vadd.f32 %v4165, %v4171
      %v4237 = vmax.f32 %v4173, 0.0
      %v4238 = vmax.f32 %v4174, 0.0
      %v4239 = vmax.f32 %v4175, 0.0
      %v4240 = vmax.f32 %v4176, 0.0
      %v4241 = vmax.f32 %v4177, 0.0
      %v4242 = vmax.f32 %v4178, 0.0
      %v4243 = vmax.f32 %v4179, 0.0
      %v4244 = vmax.f32 %v4180, 0.0
      %v4245 = vmax.f32 %v4181, 0.0
      %v4246 = vmax.f32 %v4182, 0.0
      %v4247 = vmax.f32 %v4183, 0.0
      %v4248 = vmax.f32 %v4184, 0.0
      %v4249 = vmax.f32 %v4185, 0.0
      %v4250 = vmax.f32 %v4186, 0.0
      %v4251 = vmax.f32 %v4187, 0.0
      %v4252 = vmax.f32 %v4188, 0.0
      %v4253 = vmax.f32 %v4189, 0.0
      %v4254 = vmax.f32 %v4190, 0.0
      %v4255 = vmax.f32 %v4191, 0.0
      %v4256 = vmax.f32 %v4192, 0.0
      %v4257 = vmax.f32 %v4193, 0.0
      %v4258 = vmax.f32 %v4194, 0.0
      %v4259 = vmax.f32 %v4195, 0.0
      %v4260 = vmax.f32 %v4196, 0.0
      %v4261 = vmax.f32 %v4197, 0.0
      %v4262 = vmax.f32 %v4198, 0.0
      %v4263 = vmax.f32 %v4199, 0.0
      %v4264 = vmax.f32 %v4200, 0.0
      %v4265 = vmax.f32 %v4201, 0.0
      %v4266 = vmax.f32 %v4202, 0.0
      %v4267 = vmax.f32 %v4203, 0.0
      %v4268 = vmax.f32 %v4204, 0.0
      %v4269 = vmax.f32 %v4205, 0.0
      %v4270 = vmax.f32 %v4206, 0.0
      %v4271 = vmax.f32 %v4207, 0.0
      %v4272 = vmax.f32 %v4208, 0.0
      %v4273 = vmax.f32 %v4209, 0.0
      %v4274 = vmax.f32 %v4210, 0.0
      %v4275 = vmax.f32 %v4211, 0.0
      %v4276 = vmax.f32 %v4212, 0.0
      %v4277 = vmax.f32 %v4213, 0.0
      %v4278 = vmax.f32 %v4214, 0.0
      %v4279 = vmax.f32 %v4215, 0.0
      %v4280 = vmax.f32 %v4216, 0.0
      %v4281 = vmax.f32 %v4217, 0.0
      %v4282 = vmax.f32 %v4218, 0.0
      %v4283 = vmax.f32 %v4219, 0.0
      %v4284 = vmax.f32 %v4220, 0.0
      %v4285 = vmax.f32 %v4221, 0.0
      %v4286 = vmax.f32 %v4222, 0.0
      %v4287 = vmax.f32 %v4223, 0.0
      %v4288 = vmax.f32 %v4224, 0.0
      %v4289 = vmax.f32 %v4225, 0.0
      %v4290 = vmax.f32 %v4226, 0.0
      %v4291 = vmax.f32 %v4227, 0.0
      %v4292 = vmax.f32 %v4228, 0.0
      %v4293 = vmax.f32 %v4229, 0.0
      %v4294 = vmax.f32 %v4230, 0.0
      %v4295 = vmax.f32 %v4231, 0.0
      %v4296 = vmax.f32 %v4232, 0.0
      %v4297 = vmax.f32 %v4233, 0.0
      %v4298 = vmax.f32 %v4234, 0.0
      %v4299 = vmax.f32 %v4235, 0.0
      %v4300 = vmax.f32 %v4236, 0.0
      %v4301 = vpack.c.bf16 %v4238, %v4237
      %v4302 = vpack.c.bf16 %v4240, %v4239
      %v4303 = vpack.c.bf16 %v4242, %v4241
      %v4304 = vpack.c.bf16 %v4244, %v4243
      %v4305 = vpack.c.bf16 %v4246, %v4245
      %v4306 = vpack.c.bf16 %v4248, %v4247
      %v4307 = vpack.c.bf16 %v4250, %v4249
      %v4308 = vpack.c.bf16 %v4252, %v4251
      %v4309 = vpack.c.bf16 %v4254, %v4253
      %v4310 = vpack.c.bf16 %v4256, %v4255
      %v4311 = vpack.c.bf16 %v4258, %v4257
      %v4312 = vpack.c.bf16 %v4260, %v4259
      %v4313 = vpack.c.bf16 %v4262, %v4261
      %v4314 = vpack.c.bf16 %v4264, %v4263
      %v4315 = vpack.c.bf16 %v4266, %v4265
      %v4316 = vpack.c.bf16 %v4268, %v4267
      %v4317 = vpack.c.bf16 %v4270, %v4269
      %v4318 = vpack.c.bf16 %v4272, %v4271
      %v4319 = vpack.c.bf16 %v4274, %v4273
      %v4320 = vpack.c.bf16 %v4276, %v4275
      %v4321 = vpack.c.bf16 %v4278, %v4277
      %v4322 = vpack.c.bf16 %v4280, %v4279
      %v4323 = vpack.c.bf16 %v4282, %v4281
      %v4324 = vpack.c.bf16 %v4284, %v4283
      %v4325 = vpack.c.bf16 %v4286, %v4285
      %v4326 = vpack.c.bf16 %v4288, %v4287
      %v4327 = vpack.c.bf16 %v4290, %v4289
      %v4328 = vpack.c.bf16 %v4292, %v4291
      %v4329 = vpack.c.bf16 %v4294, %v4293
      %v4330 = vpack.c.bf16 %v4296, %v4295
      %v4331 = vpack.c.bf16 %v4298, %v4297
      %v4332 = vpack.c.bf16 %v4300, %v4299
      %v4365 = vunpack.c.l.b16 %v4301
      %v4366 = vunpack.c.h.b16 %v4301
      %v4367 = vunpack.c.l.b16 %v4302
      %v4368 = vunpack.c.h.b16 %v4302
      %v4369 = vunpack.c.l.b16 %v4303
      %v4370 = vunpack.c.h.b16 %v4303
      %v4371 = vunpack.c.l.b16 %v4304
      %v4372 = vunpack.c.h.b16 %v4304
      %v4373 = vunpack.c.l.b16 %v4305
      %v4374 = vunpack.c.h.b16 %v4305
      %v4375 = vunpack.c.l.b16 %v4306
      %v4376 = vunpack.c.h.b16 %v4306
      %v4377 = vunpack.c.l.b16 %v4307
      %v4378 = vunpack.c.h.b16 %v4307
      %v4379 = vunpack.c.l.b16 %v4308
      %v4380 = vunpack.c.h.b16 %v4308
      %v4381 = vunpack.c.l.b16 %v4309
      %v4382 = vunpack.c.h.b16 %v4309
      %v4383 = vunpack.c.l.b16 %v4310
      %v4384 = vunpack.c.h.b16 %v4310
      %v4385 = vunpack.c.l.b16 %v4311
      %v4386 = vunpack.c.h.b16 %v4311
      %v4387 = vunpack.c.l.b16 %v4312
      %v4388 = vunpack.c.h.b16 %v4312
      %v4389 = vunpack.c.l.b16 %v4313
      %v4390 = vunpack.c.h.b16 %v4313
      %v4391 = vunpack.c.l.b16 %v4314
      %v4392 = vunpack.c.h.b16 %v4314
      %v4393 = vunpack.c.l.b16 %v4315
      %v4394 = vunpack.c.h.b16 %v4315
      %v4395 = vunpack.c.l.b16 %v4316
      %v4396 = vunpack.c.h.b16 %v4316
      %v4397 = vunpack.c.l.b16 %v4317
      %v4398 = vunpack.c.h.b16 %v4317
      %v4399 = vunpack.c.l.b16 %v4318
      %v4400 = vunpack.c.h.b16 %v4318
      %v4401 = vunpack.c.l.b16 %v4319
      %v4402 = vunpack.c.h.b16 %v4319
      %v4403 = vunpack.c.l.b16 %v4320
      %v4404 = vunpack.c.h.b16 %v4320
      %v4405 = vunpack.c.l.b16 %v4321
      %v4406 = vunpack.c.h.b16 %v4321
      %v4407 = vunpack.c.l.b16 %v4322
      %v4408 = vunpack.c.h.b16 %v4322
      %v4409 = vunpack.c.l.b16 %v4323
      %v4410 = vunpack.c.h.b16 %v4323
      %v4411 = vunpack.c.l.b16 %v4324
      %v4412 = vunpack.c.h.b16 %v4324
      %v4413 = vunpack.c.l.b16 %v4325
      %v4414 = vunpack.c.h.b16 %v4325
      %v4415 = vunpack.c.l.b16 %v4326
      %v4416 = vunpack.c.h.b16 %v4326
      %v4417 = vunpack.c.l.b16 %v4327
      %v4418 = vunpack.c.h.b16 %v4327
      %v4419 = vunpack.c.l.b16 %v4328
      %v4420 = vunpack.c.h.b16 %v4328
      %v4421 = vunpack.c.l.b16 %v4329
      %v4422 = vunpack.c.h.b16 %v4329
      %v4423 = vunpack.c.l.b16 %v4330
      %v4424 = vunpack.c.h.b16 %v4330
      %v4425 = vunpack.c.l.b16 %v4331
      %v4426 = vunpack.c.h.b16 %v4331
      %v4427 = vunpack.c.l.b16 %v4332
      %v4428 = vunpack.c.h.b16 %v4332
      %v4429 = vpack.c.b16 %v4365, %v4365
      %v4430 = vpack.c.b16 %v4366, %v4366
      %v4431 = vpack.c.b16 %v4367, %v4367
      %v4432 = vpack.c.b16 %v4368, %v4368
      %v4433 = vpack.c.b16 %v4369, %v4369
      %v4434 = vpack.c.b16 %v4370, %v4370
      %v4435 = vpack.c.b16 %v4371, %v4371
      %v4436 = vpack.c.b16 %v4372, %v4372
      %v4437 = vpack.c.b16 %v4373, %v4373
      %v4438 = vpack.c.b16 %v4374, %v4374
      %v4439 = vpack.c.b16 %v4375, %v4375
      %v4440 = vpack.c.b16 %v4376, %v4376
      %v4441 = vpack.c.b16 %v4377, %v4377
      %v4442 = vpack.c.b16 %v4378, %v4378
      %v4443 = vpack.c.b16 %v4379, %v4379
      %v4444 = vpack.c.b16 %v4380, %v4380
      %v4445 = vpack.c.b16 %v4381, %v4381
      %v4446 = vpack.c.b16 %v4382, %v4382
      %v4447 = vpack.c.b16 %v4383, %v4383
      %v4448 = vpack.c.b16 %v4384, %v4384
      %v4449 = vpack.c.b16 %v4385, %v4385
      %v4450 = vpack.c.b16 %v4386, %v4386
      %v4451 = vpack.c.b16 %v4387, %v4387
      %v4452 = vpack.c.b16 %v4388, %v4388
      %v4453 = vpack.c.b16 %v4389, %v4389
      %v4454 = vpack.c.b16 %v4390, %v4390
      %v4455 = vpack.c.b16 %v4391, %v4391
      %v4456 = vpack.c.b16 %v4392, %v4392
      %v4457 = vpack.c.b16 %v4393, %v4393
      %v4458 = vpack.c.b16 %v4394, %v4394
      %v4459 = vpack.c.b16 %v4395, %v4395
      %v4460 = vpack.c.b16 %v4396, %v4396
      %v4461 = vpack.c.b16 %v4397, %v4397
      %v4462 = vpack.c.b16 %v4398, %v4398
      %v4463 = vpack.c.b16 %v4399, %v4399
      %v4464 = vpack.c.b16 %v4400, %v4400
      %v4465 = vpack.c.b16 %v4401, %v4401
      %v4466 = vpack.c.b16 %v4402, %v4402
      %v4467 = vpack.c.b16 %v4403, %v4403
      %v4468 = vpack.c.b16 %v4404, %v4404
      %v4469 = vpack.c.b16 %v4405, %v4405
      %v4470 = vpack.c.b16 %v4406, %v4406
      %v4471 = vpack.c.b16 %v4407, %v4407
      %v4472 = vpack.c.b16 %v4408, %v4408
      %v4473 = vpack.c.b16 %v4409, %v4409
      %v4474 = vpack.c.b16 %v4410, %v4410
      %v4475 = vpack.c.b16 %v4411, %v4411
      %v4476 = vpack.c.b16 %v4412, %v4412
      %v4477 = vpack.c.b16 %v4413, %v4413
      %v4478 = vpack.c.b16 %v4414, %v4414
      %v4479 = vpack.c.b16 %v4415, %v4415
      %v4480 = vpack.c.b16 %v4416, %v4416
      %v4481 = vpack.c.b16 %v4417, %v4417
      %v4482 = vpack.c.b16 %v4418, %v4418
      %v4483 = vpack.c.b16 %v4419, %v4419
      %v4484 = vpack.c.b16 %v4420, %v4420
      %v4485 = vpack.c.b16 %v4421, %v4421
      %v4486 = vpack.c.b16 %v4422, %v4422
      %v4487 = vpack.c.b16 %v4423, %v4423
      %v4488 = vpack.c.b16 %v4424, %v4424
      %v4489 = vpack.c.b16 %v4425, %v4425
      %v4490 = vpack.c.b16 %v4426, %v4426
      %v4491 = vpack.c.b16 %v4427, %v4427
      %v4492 = vpack.c.b16 %v4428, %v4428
      %4557 = vst [vmem:[%s267] sm:$0xf] %v4429
      %4558 = vst [vmem:[%s267 + $0x4] sm:$0xf] %v4430
      %4559 = vst [vmem:[%s267 + $0x8] sm:$0xf] %v4431
      %4560 = vst [vmem:[%s267 + $0xc] sm:$0xf] %v4432
      %4561 = vst [vmem:[%s267 + $0x10] sm:$0xf] %v4433
      %4562 = vst [vmem:[%s267 + $0x14] sm:$0xf] %v4434
      %4563 = vst [vmem:[%s267 + $0x18] sm:$0xf] %v4435
      %4564 = vst [vmem:[%s267 + $0x1c] sm:$0xf] %v4436
      %4565 = vst [vmem:[%s267 + $0x20] sm:$0xf] %v4437
      %4566 = vst [vmem:[%s267 + $0x24] sm:$0xf] %v4438
      %4567 = vst [vmem:[%s267 + $0x28] sm:$0xf] %v4439
      %4568 = vst [vmem:[%s267 + $0x2c] sm:$0xf] %v4440
      %4569 = vst [vmem:[%s267 + $0x30] sm:$0xf] %v4441
      %4570 = vst [vmem:[%s267 + $0x34] sm:$0xf] %v4442
      %4571 = vst [vmem:[%s267 + $0x38] sm:$0xf] %v4443
      %4572 = vst [vmem:[%s267 + $0x3c] sm:$0xf] %v4444
      %4573 = vst [vmem:[%s267 + $0x40] sm:$0xf] %v4445
      %4574 = vst [vmem:[%s267 + $0x44] sm:$0xf] %v4446
      %4575 = vst [vmem:[%s267 + $0x48] sm:$0xf] %v4447
      %4576 = vst [vmem:[%s267 + $0x4c] sm:$0xf] %v4448
      %4577 = vst [vmem:[%s267 + $0x50] sm:$0xf] %v4449
      %4578 = vst [vmem:[%s267 + $0x54] sm:$0xf] %v4450
      %4579 = vst [vmem:[%s267 + $0x58] sm:$0xf] %v4451
      %4580 = vst [vmem:[%s267 + $0x5c] sm:$0xf] %v4452
      %4581 = vst [vmem:[%s267 + $0x60] sm:$0xf] %v4453
      %4582 = vst [vmem:[%s267 + $0x64] sm:$0xf] %v4454
      %4583 = vst [vmem:[%s267 + $0x68] sm:$0xf] %v4455
      %4584 = vst [vmem:[%s267 + $0x6c] sm:$0xf] %v4456
      %4585 = vst [vmem:[%s267 + $0x70] sm:$0xf] %v4457
      %4586 = vst [vmem:[%s267 + $0x74] sm:$0xf] %v4458
      %4587 = vst [vmem:[%s267 + $0x78] sm:$0xf] %v4459
      %4588 = vst [vmem:[%s267 + $0x7c] sm:$0xf] %v4460
      %4589 = vst [vmem:[%s267 + $0x80] sm:$0xf] %v4461
      %4590 = vst [vmem:[%s267 + $0x84] sm:$0xf] %v4462
      %4591 = vst [vmem:[%s267 + $0x88] sm:$0xf] %v4463
      %4592 = vst [vmem:[%s267 + $0x8c] sm:$0xf] %v4464
      %4593 = vst [vmem:[%s267 + $0x90] sm:$0xf] %v4465
      %4594 = vst [vmem:[%s267 + $0x94] sm:$0xf] %v4466
      %4595 = vst [vmem:[%s267 + $0x98] sm:$0xf] %v4467
      %4596 = vst [vmem:[%s267 + $0x9c] sm:$0xf] %v4468
      %4597 = vst [vmem:[%s267 + $0xa0] sm:$0xf] %v4469
      %4598 = vst [vmem:[%s267 + $0xa4] sm:$0xf] %v4470
      %4599 = vst [vmem:[%s267 + $0xa8] sm:$0xf] %v4471
      %4600 = vst [vmem:[%s267 + $0xac] sm:$0xf] %v4472
      %4601 = vst [vmem:[%s267 + $0xb0] sm:$0xf] %v4473
      %4602 = vst [vmem:[%s267 + $0xb4] sm:$0xf] %v4474
      %4603 = vst [vmem:[%s267 + $0xb8] sm:$0xf] %v4475
      %4604 = vst [vmem:[%s267 + $0xbc] sm:$0xf] %v4476
      %4605 = vst [vmem:[%s267 + $0xc0] sm:$0xf] %v4477
      %4606 = vst [vmem:[%s267 + $0xc4] sm:$0xf] %v4478
      %4607 = vst [vmem:[%s267 + $0xc8] sm:$0xf] %v4479
      %4608 = vst [vmem:[%s267 + $0xcc] sm:$0xf] %v4480
      %4609 = vst [vmem:[%s267 + $0xd0] sm:$0xf] %v4481
      %4610 = vst [vmem:[%s267 + $0xd4] sm:$0xf] %v4482
      %4611 = vst [vmem:[%s267 + $0xd8] sm:$0xf] %v4483
      %4612 = vst [vmem:[%s267 + $0xdc] sm:$0xf] %v4484
      %4613 = vst [vmem:[%s267 + $0xe0] sm:$0xf] %v4485
      %4614 = vst [vmem:[%s267 + $0xe4] sm:$0xf] %v4486
      %4615 = vst [vmem:[%s267 + $0xe8] sm:$0xf] %v4487
      %4616 = vst [vmem:[%s267 + $0xec] sm:$0xf] %v4488
      %4617 = vst [vmem:[%s267 + $0xf0] sm:$0xf] %v4489
      %4618 = vst [vmem:[%s267 + $0xf4] sm:$0xf] %v4490
      %4619 = vst [vmem:[%s267 + $0xf8] sm:$0xf] %v4491
      %4620 = vst [vmem:[%s267 + $0xfc] sm:$0xf] %v4492
      %s4621 = smul.u32 64, %s19
      %p4622 = scmp.lt.s32.totalorder %s4621, 511
      %s4623 = scalar_select %p4622, %s4621, 511
      %p4624 = scmp.lt.s32.totalorder %s20, 0
      %s4625 = scalar_select %p4624, %s20, 0
      %s4626 = sadd.s32 %s4625, %s4623
      %s4627 = smul.addr %s4626, 4
      %s4628 = scalar_lea.vmem %s4, %s4627
      // Predicated region
      $region37: #{matmul_scale_bias.1} parent=35 // pred_check
        %p4629 = pneg %p151
      $region38: #{matmul_scale_bias.1} parent=35 // pred_check_branch
        %4631 = sbr.rel (%p4629) target = $region40
      $region39: #{matmul_scale_bias.1} parent=35 // pred_region
        %s4632 = smul.u32 64, %s19
      $region40: #{matmul_scale_bias.1} parent=35 // pred_fallthru
        _
    $region36: #{matmul_scale_bias.1} parent=5 // pred_fallthru
      _
    %p4633 = scmp.le.s32.totalorder 2, %s10
    // Predicated region
    $region41: #{matmul_scale_bias.1} parent=5 // pred_check
      %p4634 = pneg %p4633
    $region42: #{matmul_scale_bias.1} parent=5 // pred_check_branch
      %4636 = sbr.rel (%p4634) target = $region44
    $region43: #{matmul_scale_bias.1} parent=5 // pred_region
      %s4637 = ssub.s32 %s10, 2
      // Predicated region
      $region45: #{matmul_scale_bias.1} parent=43 // pred_check
        %p4638 = pneg %p157
      $region46: #{matmul_scale_bias.1} parent=43 // pred_check_branch
        %4640 = sbr.rel (%p4638) target = $region48
      $region47: #{matmul_scale_bias.1} parent=43 // pred_region
        %s4641 = smul.u32 64, %s21
        %p4642 = scmp.lt.s32.totalorder %s4641, 511
        %s4643 = scalar_select %p4642, %s4641, 511
        %p4644 = scmp.lt.s32.totalorder %s22, 0
        %s4645 = scalar_select %p4644, %s22, 0
        %s4646 = sadd.s32 %s4645, %s4643
        %s4647 = smul.addr %s4646, 4
        %s4648 = scalar_lea.vmem %s4, %s4647
      $region48: #{matmul_scale_bias.1} parent=43 // pred_fallthru
        _
    $region44: #{matmul_scale_bias.1} parent=5 // pred_fallthru
      _
  $region6: #{matmul_scale_bias.1} parent=0 // loop_footer
    %s14 = sadd.s32 1, %s10
  $region7: #{matmul_scale_bias.1} parent=0 // loop_footer_branch
    %9 = sbr.rel target = $region3
  $region8: #{matmul_scale_bias.1} parent=0 // loop_exit
    _

</llo_original>
